<compile_context>
chip_gen: v7x
topology: tpu7x:2x2x1
jax: 0.10.0
libtpu: 0.0.40
codegen_flags: <defaults>
</compile_context>

<pallas_src>
import functools

import jax
import jax.numpy as jnp
from jax.experimental import pallas as pl
from jax.experimental.pallas import tpu as pltpu

_LANES = 128
_ACC_CHUNK_BYTES = 64 * 1024          # f32 accumulator chunk <= 16 vregs


def _round_up(x, m):
    return ((x + m - 1) // m) * m


def _vmem_target_bytes():
    """Per-generation VMEM budget (3/4 of physical, capped at 96 MiB)."""
    try:
        cap = pltpu.get_tpu_info().vmem_capacity_bytes
        return int(min((cap * 3) // 4, 96 * 1024 * 1024))
    except Exception:
        return 32 * 1024 * 1024        # conservative, valid on v5e/v6e/v7x


# --------------------------------------------------------------------------
# One VGG block:  L x (conv3x3 pad=1 + bias + ReLU)  [+ fused 2x2/2 max-pool]
# Grid is (batch_blocks, L); the layer axis MUST stay innermost ("arbitrary"):
# the ping-pong buffers carry the activation across it, and their halos are
# zeroed only at l == 0.
# --------------------------------------------------------------------------
def _vgg_block_kernel(x_ref, w_ref, b_ref, o_ref, buf_ref, *,
                      nb, H, W, Wp, Cin, Cout, L, Hc, pool,
                      resident_w, split_l0):
    # x_ref  : (nb, H, W, Cin)            f32   block input (read at l == 0)
    # w_ref  : (L or 1, 9, Cout, Cout)    bf16  taps; K rows >= Cin are zero
    # b_ref  : (L, 1, Cout)               f32   biases (VMEM resident)
    # o_ref  : (nb, Ho, Wo, Cout)         f32   written only at l == L-1
    # buf_ref: (2*nb, H+2, Wp, Cout)      f32   ping-pong padded activations;
    #          interior rows [1:H+1], cols [8:8+W]; halo cols 7 and 8+W.
    l = pl.program_id(1)
    f32 = jnp.float32

    # ---- one-time init per batch block ------------------------------------
    @pl.when(l == 0)
    def _init():
        # Halo rows / padded columns of BOTH ping-pong halves must be zero:
        # every layer reads them and nothing else ever writes them.
        buf_ref[:, 0:1, :, :] = jnp.zeros((2 * nb, 1, Wp, Cout), f32)
        buf_ref[:, H + 1:H + 2, :, :] = jnp.zeros((2 * nb, 1, Wp, Cout), f32)
        buf_ref[:, :, 0:8, :] = jnp.zeros((2 * nb, H + 2, 8, Cout), f32)
        buf_ref[:, :, 8 + W:Wp, :] = jnp.zeros(
            (2 * nb, H + 2, Wp - 8 - W, Cout), f32)
        if (not split_l0) and Cin < Cout:
            # Layer 0 contracts all Cout channels against zero-padded weight
            # rows, so the staged channels >= Cin must also be zero.
            buf_ref[0:nb, 1:H + 1, 8:8 + W, :] = jnp.zeros((nb, H, W, Cout), f32)
        buf_ref[0:nb, 1:H + 1, 8:8 + W, 0:Cin] = x_ref[...].astype(f32)

    cur0 = (l % 2) * nb            # ping-pong half read by this layer
    nxt0 = nb - cur0               # half written by this layer
    bias = b_ref[l]                # (1, Cout) f32

    n_chunks = H // Hc
    ho_c = Hc // 2 if pool else Hc

    def conv_chunk(h0, k_in, w_idx):
        """3x3 conv + bias + ReLU for output rows [h0, h0+Hc), f32 result."""
        acc = None
        for dy in range(3):
            for dx in range(3):
                # Padded window: rows h0+dy.., cols 7+dx.. (+W); dx == 1 is the
                # sublane-aligned centre tap.
                patch = buf_ref[pl.ds(cur0, nb), pl.ds(dy + h0, Hc),
                                7 + dx:7 + dx + W, 0:k_in]
                # W % 8 == 0 on the large blocks -> this reshape is layout-free.
                lhs = patch.reshape(nb * Hc * W, k_in).astype(jnp.bfloat16)
                rhs = w_ref[w_idx, dy * 3 + dx, 0:k_in, :]     # (k_in, Cout)
                tap = jnp.dot(lhs, rhs, preferred_element_type=f32)
                acc = tap if acc is None else acc + tap
        y = jnp.maximum(acc + bias, 0.0)                       # (M, Cout) f32
        return y.reshape(nb, Hc, W, Cout)

    def store_chunk(c, h0, y):
        @pl.when(l < L - 1)
        def _():
            # Feed the next layer: aligned interior store (column offset 8).
            buf_ref[pl.ds(nxt0, nb), pl.ds(1 + h0, Hc), 8:8 + W, :] = y

        @pl.when(l == L - 1)
        def _():
            # Block output: fused 2x2/2 max-pool on the f32 chunk, streamed out.
            if pool:
                p = jnp.max(y.reshape(nb, Hc // 2, 2, W, Cout), axis=2)
                p = jnp.max(p.reshape(nb, Hc // 2, W // 2, 2, Cout), axis=3)
                o_ref[:, pl.ds(c * ho_c, ho_c), :, :] = p.astype(o_ref.dtype)
            else:
                o_ref[:, pl.ds(h0, Hc), :, :] = y.astype(o_ref.dtype)

    def run_layer(k_in, w_idx):
        def chunk_body(c, carry):
            h0 = c * Hc
            store_chunk(c, h0, conv_chunk(h0, k_in, w_idx))
            return carry
        if n_chunks == 1:
            chunk_body(0, 0)
        else:
            # fori_loop (not a static unroll) bounds live ranges / code size.
            jax.lax.fori_loop(0, n_chunks, chunk_body, 0)

    w_l = l if resident_w else 0
    if split_l0:
        # First conv contracts only the real Cin channels (Cin is a multiple of
        # 128 here, so the K slice stays lane-aligned) instead of a zero-padded
        # K == Cout — roughly halves its MXU passes.
        @pl.when(l == 0)
        def _():
            run_layer(Cin, 0)

        @pl.when(l > 0)
        def _():
            run_layer(Cout, w_l)
    else:
        run_layer(Cout, w_l)


# --------------------------------------------------------------------------
# Host-side tiling / budgeting
# --------------------------------------------------------------------------
def _block_vmem_bytes(nb, H, W, Wp, Cin, Cout, Ho, Wo, L, resident_w):
    x_b = 2 * nb * H * W * Cin * 4                      # double-buffered input
    o_b = 2 * nb * Ho * Wo * Cout * 4                   # double-buffered output
    w_b = 2 * (L if resident_w else 1) * 9 * Cout * Cout * 2
    b_b = 2 * L * Cout * 4
    buf = 2 * nb * (H + 2) * Wp * Cout * 4              # ping-pong scratch
    return x_b + o_b + w_b + b_b + buf


def _pick_nb(N, H, W, Wp, Cin, Cout, Ho, Wo, L, resident_w, budget):
    # Cap nb at N // 2 so the "parallel" batch axis has >= 2 steps whenever
    # N >= 2 (keeps both v7x TensorCores busy; harmless on v5e/v6e) — unless
    # that would shrink the matmul M below 8 rows (tiny deep blocks).
    cap = max(1, N // 2)
    if cap * H * W < 8:
        cap = N
    for nb in range(cap, 0, -1):
        if N % nb:
            continue
        if _block_vmem_bytes(nb, H, W, Wp, Cin, Cout, Ho, Wo, L,
                             resident_w) <= budget:
            return nb
    return 1


def _pick_hc(nb, H, W, Cout, pool):
    # Largest divisor of H whose f32 accumulator chunk stays <= 16 vregs; must
    # be even when the 2x2 pool is fused.  Deep blocks (tiny H*W) end up with
    # Hc == H, i.e. a single chunk and the largest possible matmul M.
    cands = [d for d in range(H, 0, -1)
             if H % d == 0 and (not pool or d % 2 == 0)]
    for hc in cands:
        if nb * hc * W * Cout * 4 <= _ACC_CHUNK_BYTES:
            return hc
    return cands[-1]


def _vgg_block(x, w_stack, b_stack, *, pool):
    # x: (N, H, W, Cin) f32; w_stack: (L, 9, Cout, Cout) bf16; b: (L, 1, Cout) f32
    N, H, W, Cin = x.shape
    L, _, Cout, _ = w_stack.shape
    Ho, Wo = (H // 2, W // 2) if pool else (H, W)
    Wp = 8 + _round_up(W + 1, 8)          # interior at cols [8:8+W]

    stack_bytes = L * 9 * Cout * Cout * 2
    resident_w = 2 * stack_bytes <= 8 * 1024 * 1024

    vmem_target = _vmem_target_bytes()
    nb = _pick_nb(N, H, W, Wp, Cin, Cout, Ho, Wo, L, resident_w,
                  vmem_target - 4 * 1024 * 1024)
    Hc = _pick_hc(nb, H, W, Cout, pool)
    usage = _block_vmem_bytes(nb, H, W, Wp, Cin, Cout, Ho, Wo, L, resident_w)
    vmem_limit = int(max(vmem_target, usage + 4 * 1024 * 1024))

    split_l0 = (Cin != Cout) and (Cin < Cout) and (Cin % _LANES == 0)

    kernel = functools.partial(
        _vgg_block_kernel, nb=nb, H=H, W=W, Wp=Wp, Cin=Cin, Cout=Cout, L=L,
        Hc=Hc, pool=pool, resident_w=resident_w, split_l0=split_l0)

    if resident_w:
        # Whole stack, constant index map -> fetched once, reused across all
        # batch blocks.
        w_spec = pl.BlockSpec((L, 9, Cout, Cout), lambda i, l: (0, 0, 0, 0))
    else:
        # Big (512-channel) stacks: stream one layer slab per grid step.
        w_spec = pl.BlockSpec((1, 9, Cout, Cout), lambda i, l: (l, 0, 0, 0))

    return pl.pallas_call(
        kernel,
        out_shape=jax.ShapeDtypeStruct((N, Ho, Wo, Cout), jnp.float32),
        grid_spec=pltpu.PrefetchScalarGridSpec(
            num_scalar_prefetch=0,
            grid=(N // nb, L),                        # layer axis innermost
            in_specs=[
                pl.BlockSpec((nb, H, W, Cin), lambda i, l: (i, 0, 0, 0)),
                w_spec,
                pl.BlockSpec((L, 1, Cout), lambda i, l: (0, 0, 0)),
            ],
            out_specs=pl.BlockSpec((nb, Ho, Wo, Cout),
                                   lambda i, l: (i, 0, 0, 0)),
            scratch_shapes=[
                pltpu.VMEM((2 * nb, H + 2, Wp, Cout), jnp.float32),
            ],
        ),
        compiler_params=pltpu.CompilerParams(
            dimension_semantics=("parallel", "arbitrary"),
            vmem_limit_bytes=vmem_limit,
        ),
    )(x, w_stack, b_stack)


# --------------------------------------------------------------------------
# VGG16 `features` with the final MaxPool dropped ( == features[:-1] ),
# grouped into 5 blocks.
# --------------------------------------------------------------------------
_VGG16_BLOCKS = (
    (3,   (64, 64),        True),
    (64,  (128, 128),      True),
    (128, (256, 256, 256), True),
    (256, (512, 512, 512), True),
    (512, (512, 512, 512), False),   # trailing max-pool removed
)


def init_params(key):
    # TODO(synk): pretrained VGG16 weights unavailable (no file/network I/O);
    # deterministic He init instead.
    blocks = []
    for cin0, couts, pool in _VGG16_BLOCKS:
        cout = couts[0]
        ws, bs = [], []
        cin = cin0
        for c in couts:
            assert c == cout
            key, kw, kb = jax.random.split(key, 3)
            w = jax.random.normal(kw, (3, 3, cin, c), jnp.float32) * jnp.sqrt(
                2.0 / (9.0 * cin))
            b = jax.random.normal(kb, (c,), jnp.float32) * 0.01
            # Taps packed as (9, K = Cout, Cout); K rows >= cin are zero (only
            # read when the kernel does not slice the contraction to cin).
            w9 = jnp.zeros((9, cout, c), jnp.float32)
            w9 = w9.at[:, :cin, :].set(w.reshape(9, cin, c))
            ws.append(w9.astype(jnp.bfloat16))
            bs.append(b.reshape(1, c))
            cin = c
        blocks.append((jnp.stack(ws), jnp.stack(bs), pool))
    return blocks


def encoder_cnn(images_nchw, params):
    # images_nchw: (N, 3, H, W) with H, W divisible by 16.
    x = jnp.transpose(images_nchw, (0, 2, 3, 1)).astype(jnp.float32)   # NHWC
    for w_stack, b_stack, pool in params:
        x = _vgg_block(x, w_stack, b_stack, pool=pool)
    N, H, W, C = x.shape
    # == torch: features.permute(0, 2, 3, 1).view(N, -1, C)
    return x.reshape(N, H * W, C)


if __name__ == "__main__":
    key = jax.random.PRNGKey(0)
    kp, kx = jax.random.split(key)
    params = init_params(kp)
    images = jax.random.normal(kx, (2, 3, 32, 32), jnp.float32)   # NCHW input

    feats = encoder_cnn(images, params)
    feats = jax.block_until_ready(feats)

    assert feats.shape == (2, 4, 512), feats.shape       # (N, H/16 * W/16, 512)
    assert bool(jnp.all(jnp.isfinite(feats)))
    assert bool(jnp.all(feats >= 0.0))                   # last op is a ReLU
    print("KERNEL_OK")
</pallas_src>

<mosaic_0001>
module attributes {stable_mosaic.version = 11 : i64} {
  func.func @_vgg_block_kernel(%arg0: i32, %arg1: i32, %arg2: memref<1x32x32x3xf32, #tpu.memory_space<vmem>>, %arg3: memref<2x9x64x64xbf16, #tpu.memory_space<vmem>>, %arg4: memref<2x1x64xf32, #tpu.memory_space<vmem>>, %arg5: memref<1x16x16x64xf32, #tpu.memory_space<vmem>>, %arg6: memref<2x34x48x64xf32, #tpu.memory_space<vmem>>) attributes {dimension_semantics = [#tpu.dimension_semantics<parallel>, #tpu.dimension_semantics<arbitrary>], iteration_bounds = array<i64: 2, 2>, scalar_prefetch = 0 : i64, scratch_operands = 1 : i64, tpu.core_type = #tpu.core_type<tc>, window_params = [{transform_indices = @transform_0, window_bounds = array<i64: 1, 32, 32, 3>}, {pipeline_mode = #tpu.pipeline_mode<synchronous>, transform_indices = @transform_1, window_bounds = array<i64: 2, 9, 64, 64>}, {pipeline_mode = #tpu.pipeline_mode<synchronous>, transform_indices = @transform_2, window_bounds = array<i64: 2, 1, 64>}, {transform_indices = @transform_3, window_bounds = array<i64: 1, 16, 16, 64>}]} {
    %c0_i32 = arith.constant 0 : i32
    %0 = arith.cmpi eq, %arg1, %c0_i32 : i32
    %1 = arith.extui %0 : i1 to i32
    %c0_i32_0 = arith.constant 0 : i32
    %2 = arith.cmpi ne, %1, %c0_i32_0 : i32
    scf.if %2 {
      %cst = arith.constant 0.000000e+00 : f32
      %19 = vector.broadcast %cst : f32 to vector<2x1x48x64xf32>
      %c0_11 = arith.constant 0 : index
      %c0_12 = arith.constant 0 : index
      %c0_13 = arith.constant 0 : index
      %c0_14 = arith.constant 0 : index
      %20 = vector.load %arg6[%c0_11, %c0_12, %c0_13, %c0_14] : memref<2x34x48x64xf32, #tpu.memory_space<vmem>>, vector<2x1x48x64xf32>
      tpu.vector_store %arg6[%c0_11, %c0_12, %c0_13, %c0_14], %19 {strides = array<i32>} : memref<2x34x48x64xf32, #tpu.memory_space<vmem>>, vector<2x1x48x64xf32>,
      %cst_15 = arith.constant 0.000000e+00 : f32
      %21 = vector.broadcast %cst_15 : f32 to vector<2x1x48x64xf32>
      %c0_16 = arith.constant 0 : index
      %c33 = arith.constant 33 : index
      %c0_17 = arith.constant 0 : index
      %c0_18 = arith.constant 0 : index
      %22 = vector.load %arg6[%c0_16, %c33, %c0_17, %c0_18] : memref<2x34x48x64xf32, #tpu.memory_space<vmem>>, vector<2x1x48x64xf32>
      tpu.vector_store %arg6[%c0_16, %c33, %c0_17, %c0_18], %21 {strides = array<i32>} : memref<2x34x48x64xf32, #tpu.memory_space<vmem>>, vector<2x1x48x64xf32>,
      %cst_19 = arith.constant 0.000000e+00 : f32
      %23 = vector.broadcast %cst_19 : f32 to vector<2x34x8x64xf32>
      %c0_20 = arith.constant 0 : index
      %c0_21 = arith.constant 0 : index
      %c0_22 = arith.constant 0 : index
      %c0_23 = arith.constant 0 : index
      %24 = vector.load %arg6[%c0_20, %c0_21, %c0_22, %c0_23] : memref<2x34x48x64xf32, #tpu.memory_space<vmem>>, vector<2x34x8x64xf32>
      tpu.vector_store %arg6[%c0_20, %c0_21, %c0_22, %c0_23], %23 {strides = array<i32>} : memref<2x34x48x64xf32, #tpu.memory_space<vmem>>, vector<2x34x8x64xf32>,
      %cst_24 = arith.constant 0.000000e+00 : f32
      %25 = vector.broadcast %cst_24 : f32 to vector<2x34x8x64xf32>
      %c0_25 = arith.constant 0 : index
      %c0_26 = arith.constant 0 : index
      %c40 = arith.constant 40 : index
      %c0_27 = arith.constant 0 : index
      %26 = vector.load %arg6[%c0_25, %c0_26, %c40, %c0_27] : memref<2x34x48x64xf32, #tpu.memory_space<vmem>>, vector<2x34x8x64xf32>
      tpu.vector_store %arg6[%c0_25, %c0_26, %c40, %c0_27], %25 {strides = array<i32>} : memref<2x34x48x64xf32, #tpu.memory_space<vmem>>, vector<2x34x8x64xf32>,
      %cst_28 = arith.constant 0.000000e+00 : f32
      %27 = vector.broadcast %cst_28 : f32 to vector<1x32x32x64xf32>
      %c0_29 = arith.constant 0 : index
      %c1 = arith.constant 1 : index
      %c8 = arith.constant 8 : index
      %c0_30 = arith.constant 0 : index
      %28 = vector.load %arg6[%c0_29, %c1, %c8, %c0_30] : memref<2x34x48x64xf32, #tpu.memory_space<vmem>>, vector<1x32x32x64xf32>
      tpu.vector_store %arg6[%c0_29, %c1, %c8, %c0_30], %27 {strides = array<i32>} : memref<2x34x48x64xf32, #tpu.memory_space<vmem>>, vector<1x32x32x64xf32>,
      %c0_31 = arith.constant 0 : index
      %c0_32 = arith.constant 0 : index
      %c0_33 = arith.constant 0 : index
      %c0_34 = arith.constant 0 : index
      %29 = vector.load %arg2[%c0_31, %c0_32, %c0_33, %c0_34] : memref<1x32x32x3xf32, #tpu.memory_space<vmem>>, vector<1x32x32x3xf32>
      %c0_35 = arith.constant 0 : index
      %c1_36 = arith.constant 1 : index
      %c8_37 = arith.constant 8 : index
      %c0_38 = arith.constant 0 : index
      %30 = vector.load %arg6[%c0_35, %c1_36, %c8_37, %c0_38] : memref<2x34x48x64xf32, #tpu.memory_space<vmem>>, vector<1x32x32x3xf32>
      tpu.vector_store %arg6[%c0_35, %c1_36, %c8_37, %c0_38], %29 {strides = array<i32>} : memref<2x34x48x64xf32, #tpu.memory_space<vmem>>, vector<1x32x32x3xf32>,
    } else {
    }
    %c2_i32 = arith.constant 2 : i32
    %c0_i32_1 = arith.constant 0 : i32
    %3 = arith.cmpi eq, %c2_i32, %c0_i32_1 : i32
    %c1_i32 = arith.constant 1 : i32
    %4 = arith.select %3, %c1_i32, %c2_i32 : i32
    %5 = arith.remsi %arg1, %4 : i32
    %c0_i32_2 = arith.constant 0 : i32
    %6 = arith.cmpi ne, %5, %c0_i32_2 : i32
    %c0_i32_3 = arith.constant 0 : i32
    %7 = arith.cmpi slt, %5, %c0_i32_3 : i32
    %c0_i32_4 = arith.constant 0 : i32
    %8 = arith.cmpi slt, %4, %c0_i32_4 : i32
    %9 = arith.xori %7, %8 : i1
    %10 = arith.andi %9, %6 : i1
    %11 = arith.addi %5, %4 : i32
    %12 = arith.select %10, %11, %5 : i32
    %c1_i32_5 = arith.constant 1 : i32
    %13 = arith.muli %12, %c1_i32_5 : i32
    %c1_i32_6 = arith.constant 1 : i32
    %14 = arith.subi %c1_i32_6, %13 : i32
    %15 = arith.index_cast %arg1 : i32 to index
    %c0 = arith.constant 0 : index
    %c0_7 = arith.constant 0 : index
    %16 = vector.load %arg4[%15, %c0, %c0_7] : memref<2x1x64xf32, #tpu.memory_space<vmem>>, vector<1x1x64xf32>
    %17 = vector.shape_cast %16 : vector<1x1x64xf32> to vector<1x64xf32>
    %c0_i32_8 = arith.constant 0 : i32
    %c4_i32 = arith.constant 4 : i32
    %18 = arith.addi %c0_i32_8, %c4_i32 : i32
    %c1_i32_9 = arith.constant 1 : i32
    scf.for %arg7 = %c0_i32_8 to %18 step %c1_i32_9  : i32 {
      %c8_i32 = arith.constant 8 : i32
      %19 = arith.muli %arg7, %c8_i32 : i32
      %c0_i32_11 = arith.constant 0 : i32
      %20 = arith.addi %c0_i32_11, %19 : i32
      %21 = arith.index_cast %13 : i32 to index
      %22 = arith.index_cast %20 : i32 to index
      %c7 = arith.constant 7 : index
      %c0_12 = arith.constant 0 : index
      %23 = vector.load %arg6[%21, %22, %c7, %c0_12] : memref<2x34x48x64xf32, #tpu.memory_space<vmem>>, vector<1x8x32x64xf32>
      %24 = vector.shape_cast %23 : vector<1x8x32x64xf32> to vector<256x64xf32>
      %25 = arith.truncf %24 : vector<256x64xf32> to vector<256x64xbf16>
      %26 = arith.index_cast %arg1 : i32 to index
      %c0_13 = arith.constant 0 : index
      %c0_14 = arith.constant 0 : index
      %c0_15 = arith.constant 0 : index
      %27 = vector.load %arg3[%26, %c0_13, %c0_14, %c0_15] : memref<2x9x64x64xbf16, #tpu.memory_space<vmem>>, vector<1x1x64x64xbf16>
      %28 = vector.shape_cast %27 : vector<1x1x64x64xbf16> to vector<64x64xbf16>
      %cst = arith.constant dense<0.000000e+00> : vector<256x64xf32>
      %29 = tpu.matmul %25, %28, %cst {dimension_numbers = #tpu.dot_dimension_numbers<[1], [0], [0], [1], [0, 0, 1, 1], [], []>} : vector<256x64xbf16>, vector<64x64xbf16>, vector<256x64xf32> -> vector<256x64xf32>
      %c0_i32_16 = arith.constant 0 : i32
      %30 = arith.addi %c0_i32_16, %19 : i32
      %31 = arith.index_cast %13 : i32 to index
      %32 = arith.index_cast %30 : i32 to index
      %c8 = arith.constant 8 : index
      %c0_17 = arith.constant 0 : index
      %33 = vector.load %arg6[%31, %32, %c8, %c0_17] : memref<2x34x48x64xf32, #tpu.memory_space<vmem>>, vector<1x8x32x64xf32>
      %34 = vector.shape_cast %33 : vector<1x8x32x64xf32> to vector<256x64xf32>
      %35 = arith.truncf %34 : vector<256x64xf32> to vector<256x64xbf16>
      %36 = arith.index_cast %arg1 : i32 to index
      %c1 = arith.constant 1 : index
      %c0_18 = arith.constant 0 : index
      %c0_19 = arith.constant 0 : index
      %37 = vector.load %arg3[%36, %c1, %c0_18, %c0_19] : memref<2x9x64x64xbf16, #tpu.memory_space<vmem>>, vector<1x1x64x64xbf16>
      %38 = vector.shape_cast %37 : vector<1x1x64x64xbf16> to vector<64x64xbf16>
      %cst_20 = arith.constant dense<0.000000e+00> : vector<256x64xf32>
      %39 = tpu.matmul %35, %38, %cst_20 {dimension_numbers = #tpu.dot_dimension_numbers<[1], [0], [0], [1], [0, 0, 1, 1], [], []>} : vector<256x64xbf16>, vector<64x64xbf16>, vector<256x64xf32> -> vector<256x64xf32>
      %40 = arith.addf %29, %39 : vector<256x64xf32>
      %c0_i32_21 = arith.constant 0 : i32
      %41 = arith.addi %c0_i32_21, %19 : i32
      %42 = arith.index_cast %13 : i32 to index
      %43 = arith.index_cast %41 : i32 to index
      %c9 = arith.constant 9 : index
      %c0_22 = arith.constant 0 : index
      %44 = vector.load %arg6[%42, %43, %c9, %c0_22] : memref<2x34x48x64xf32, #tpu.memory_space<vmem>>, vector<1x8x32x64xf32>
      %45 = vector.shape_cast %44 : vector<1x8x32x64xf32> to vector<256x64xf32>
      %46 = arith.truncf %45 : vector<256x64xf32> to vector<256x64xbf16>
      %47 = arith.index_cast %arg1 : i32 to index
      %c2 = arith.constant 2 : index
      %c0_23 = arith.constant 0 : index
      %c0_24 = arith.constant 0 : index
      %48 = vector.load %arg3[%47, %c2, %c0_23, %c0_24] : memref<2x9x64x64xbf16, #tpu.memory_space<vmem>>, vector<1x1x64x64xbf16>
      %49 = vector.shape_cast %48 : vector<1x1x64x64xbf16> to vector<64x64xbf16>
      %cst_25 = arith.constant dense<0.000000e+00> : vector<256x64xf32>
      %50 = tpu.matmul %46, %49, %cst_25 {dimension_numbers = #tpu.dot_dimension_numbers<[1], [0], [0], [1], [0, 0, 1, 1], [], []>} : vector<256x64xbf16>, vector<64x64xbf16>, vector<256x64xf32> -> vector<256x64xf32>
      %51 = arith.addf %40, %50 : vector<256x64xf32>
      %c1_i32_26 = arith.constant 1 : i32
      %52 = arith.addi %c1_i32_26, %19 : i32
      %53 = arith.index_cast %13 : i32 to index
      %54 = arith.index_cast %52 : i32 to index
      %c7_27 = arith.constant 7 : index
      %c0_28 = arith.constant 0 : index
      %55 = vector.load %arg6[%53, %54, %c7_27, %c0_28] : memref<2x34x48x64xf32, #tpu.memory_space<vmem>>, vector<1x8x32x64xf32>
      %56 = vector.shape_cast %55 : vector<1x8x32x64xf32> to vector<256x64xf32>
      %57 = arith.truncf %56 : vector<256x64xf32> to vector<256x64xbf16>
      %58 = arith.index_cast %arg1 : i32 to index
      %c3 = arith.constant 3 : index
      %c0_29 = arith.constant 0 : index
      %c0_30 = arith.constant 0 : index
      %59 = vector.load %arg3[%58, %c3, %c0_29, %c0_30] : memref<2x9x64x64xbf16, #tpu.memory_space<vmem>>, vector<1x1x64x64xbf16>
      %60 = vector.shape_cast %59 : vector<1x1x64x64xbf16> to vector<64x64xbf16>
      %cst_31 = arith.constant dense<0.000000e+00> : vector<256x64xf32>
      %61 = tpu.matmul %57, %60, %cst_31 {dimension_numbers = #tpu.dot_dimension_numbers<[1], [0], [0], [1], [0, 0, 1, 1], [], []>} : vector<256x64xbf16>, vector<64x64xbf16>, vector<256x64xf32> -> vector<256x64xf32>
      %62 = arith.addf %51, %61 : vector<256x64xf32>
      %c1_i32_32 = arith.constant 1 : i32
      %63 = arith.addi %c1_i32_32, %19 : i32
      %64 = arith.index_cast %13 : i32 to index
      %65 = arith.index_cast %63 : i32 to index
      %c8_33 = arith.constant 8 : index
      %c0_34 = arith.constant 0 : index
      %66 = vector.load %arg6[%64, %65, %c8_33, %c0_34] : memref<2x34x48x64xf32, #tpu.memory_space<vmem>>, vector<1x8x32x64xf32>
      %67 = vector.shape_cast %66 : vector<1x8x32x64xf32> to vector<256x64xf32>
      %68 = arith.truncf %67 : vector<256x64xf32> to vector<256x64xbf16>
      %69 = arith.index_cast %arg1 : i32 to index
      %c4 = arith.constant 4 : index
      %c0_35 = arith.constant 0 : index
      %c0_36 = arith.constant 0 : index
      %70 = vector.load %arg3[%69, %c4, %c0_35, %c0_36] : memref<2x9x64x64xbf16, #tpu.memory_space<vmem>>, vector<1x1x64x64xbf16>
      %71 = vector.shape_cast %70 : vector<1x1x64x64xbf16> to vector<64x64xbf16>
      %cst_37 = arith.constant dense<0.000000e+00> : vector<256x64xf32>
      %72 = tpu.matmul %68, %71, %cst_37 {dimension_numbers = #tpu.dot_dimension_numbers<[1], [0], [0], [1], [0, 0, 1, 1], [], []>} : vector<256x64xbf16>, vector<64x64xbf16>, vector<256x64xf32> -> vector<256x64xf32>
      %73 = arith.addf %62, %72 : vector<256x64xf32>
      %c1_i32_38 = arith.constant 1 : i32
      %74 = arith.addi %c1_i32_38, %19 : i32
      %75 = arith.index_cast %13 : i32 to index
      %76 = arith.index_cast %74 : i32 to index
      %c9_39 = arith.constant 9 : index
      %c0_40 = arith.constant 0 : index
      %77 = vector.load %arg6[%75, %76, %c9_39, %c0_40] : memref<2x34x48x64xf32, #tpu.memory_space<vmem>>, vector<1x8x32x64xf32>
      %78 = vector.shape_cast %77 : vector<1x8x32x64xf32> to vector<256x64xf32>
      %79 = arith.truncf %78 : vector<256x64xf32> to vector<256x64xbf16>
      %80 = arith.index_cast %arg1 : i32 to index
      %c5 = arith.constant 5 : index
      %c0_41 = arith.constant 0 : index
      %c0_42 = arith.constant 0 : index
      %81 = vector.load %arg3[%80, %c5, %c0_41, %c0_42] : memref<2x9x64x64xbf16, #tpu.memory_space<vmem>>, vector<1x1x64x64xbf16>
      %82 = vector.shape_cast %81 : vector<1x1x64x64xbf16> to vector<64x64xbf16>
      %cst_43 = arith.constant dense<0.000000e+00> : vector<256x64xf32>
      %83 = tpu.matmul %79, %82, %cst_43 {dimension_numbers = #tpu.dot_dimension_numbers<[1], [0], [0], [1], [0, 0, 1, 1], [], []>} : vector<256x64xbf16>, vector<64x64xbf16>, vector<256x64xf32> -> vector<256x64xf32>
      %84 = arith.addf %73, %83 : vector<256x64xf32>
      %c2_i32_44 = arith.constant 2 : i32
      %85 = arith.addi %c2_i32_44, %19 : i32
      %86 = arith.index_cast %13 : i32 to index
      %87 = arith.index_cast %85 : i32 to index
      %c7_45 = arith.constant 7 : index
      %c0_46 = arith.constant 0 : index
      %88 = vector.load %arg6[%86, %87, %c7_45, %c0_46] : memref<2x34x48x64xf32, #tpu.memory_space<vmem>>, vector<1x8x32x64xf32>
      %89 = vector.shape_cast %88 : vector<1x8x32x64xf32> to vector<256x64xf32>
      %90 = arith.truncf %89 : vector<256x64xf32> to vector<256x64xbf16>
      %91 = arith.index_cast %arg1 : i32 to index
      %c6 = arith.constant 6 : index
      %c0_47 = arith.constant 0 : index
      %c0_48 = arith.constant 0 : index
      %92 = vector.load %arg3[%91, %c6, %c0_47, %c0_48] : memref<2x9x64x64xbf16, #tpu.memory_space<vmem>>, vector<1x1x64x64xbf16>
      %93 = vector.shape_cast %92 : vector<1x1x64x64xbf16> to vector<64x64xbf16>
      %cst_49 = arith.constant dense<0.000000e+00> : vector<256x64xf32>
      %94 = tpu.matmul %90, %93, %cst_49 {dimension_numbers = #tpu.dot_dimension_numbers<[1], [0], [0], [1], [0, 0, 1, 1], [], []>} : vector<256x64xbf16>, vector<64x64xbf16>, vector<256x64xf32> -> vector<256x64xf32>
      %95 = arith.addf %84, %94 : vector<256x64xf32>
      %c2_i32_50 = arith.constant 2 : i32
      %96 = arith.addi %c2_i32_50, %19 : i32
      %97 = arith.index_cast %13 : i32 to index
      %98 = arith.index_cast %96 : i32 to index
      %c8_51 = arith.constant 8 : index
      %c0_52 = arith.constant 0 : index
      %99 = vector.load %arg6[%97, %98, %c8_51, %c0_52] : memref<2x34x48x64xf32, #tpu.memory_space<vmem>>, vector<1x8x32x64xf32>
      %100 = vector.shape_cast %99 : vector<1x8x32x64xf32> to vector<256x64xf32>
      %101 = arith.truncf %100 : vector<256x64xf32> to vector<256x64xbf16>
      %102 = arith.index_cast %arg1 : i32 to index
      %c7_53 = arith.constant 7 : index
      %c0_54 = arith.constant 0 : index
      %c0_55 = arith.constant 0 : index
      %103 = vector.load %arg3[%102, %c7_53, %c0_54, %c0_55] : memref<2x9x64x64xbf16, #tpu.memory_space<vmem>>, vector<1x1x64x64xbf16>
      %104 = vector.shape_cast %103 : vector<1x1x64x64xbf16> to vector<64x64xbf16>
      %cst_56 = arith.constant dense<0.000000e+00> : vector<256x64xf32>
      %105 = tpu.matmul %101, %104, %cst_56 {dimension_numbers = #tpu.dot_dimension_numbers<[1], [0], [0], [1], [0, 0, 1, 1], [], []>} : vector<256x64xbf16>, vector<64x64xbf16>, vector<256x64xf32> -> vector<256x64xf32>
      %106 = arith.addf %95, %105 : vector<256x64xf32>
      %c2_i32_57 = arith.constant 2 : i32
      %107 = arith.addi %c2_i32_57, %19 : i32
      %108 = arith.index_cast %13 : i32 to index
      %109 = arith.index_cast %107 : i32 to index
      %c9_58 = arith.constant 9 : index
      %c0_59 = arith.constant 0 : index
      %110 = vector.load %arg6[%108, %109, %c9_58, %c0_59] : memref<2x34x48x64xf32, #tpu.memory_space<vmem>>, vector<1x8x32x64xf32>
      %111 = vector.shape_cast %110 : vector<1x8x32x64xf32> to vector<256x64xf32>
      %112 = arith.truncf %111 : vector<256x64xf32> to vector<256x64xbf16>
      %113 = arith.index_cast %arg1 : i32 to index
      %c8_60 = arith.constant 8 : index
      %c0_61 = arith.constant 0 : index
      %c0_62 = arith.constant 0 : index
      %114 = vector.load %arg3[%113, %c8_60, %c0_61, %c0_62] : memref<2x9x64x64xbf16, #tpu.memory_space<vmem>>, vector<1x1x64x64xbf16>
      %115 = vector.shape_cast %114 : vector<1x1x64x64xbf16> to vector<64x64xbf16>
      %cst_63 = arith.constant dense<0.000000e+00> : vector<256x64xf32>
      %116 = tpu.matmul %112, %115, %cst_63 {dimension_numbers = #tpu.dot_dimension_numbers<[1], [0], [0], [1], [0, 0, 1, 1], [], []>} : vector<256x64xbf16>, vector<64x64xbf16>, vector<256x64xf32> -> vector<256x64xf32>
      %117 = arith.addf %106, %116 : vector<256x64xf32>
      %118 = vector.broadcast %17 : vector<1x64xf32> to vector<256x64xf32>
      %119 = arith.addf %117, %118 : vector<256x64xf32>
      %cst_64 = arith.constant 0.000000e+00 : f32
      %120 = vector.broadcast %cst_64 : f32 to vector<256x64xf32>
      %121 = arith.maximumf %119, %120 : vector<256x64xf32>
      %122 = vector.shape_cast %121 : vector<256x64xf32> to vector<1x8x32x64xf32>
      %c1_i32_65 = arith.constant 1 : i32
      %123 = arith.cmpi slt, %arg1, %c1_i32_65 : i32
      %124 = arith.extui %123 : i1 to i32
      %c0_i32_66 = arith.constant 0 : i32
      %125 = arith.cmpi ne, %124, %c0_i32_66 : i32
      scf.if %125 {
        %c1_i32_69 = arith.constant 1 : i32
        %129 = arith.addi %c1_i32_69, %19 : i32
        %130 = arith.index_cast %14 : i32 to index
        %131 = arith.index_cast %129 : i32 to index
        %c8_70 = arith.constant 8 : index
        %c0_71 = arith.constant 0 : index
        %132 = vector.load %arg6[%130, %131, %c8_70, %c0_71] : memref<2x34x48x64xf32, #tpu.memory_space<vmem>>, vector<1x8x32x64xf32>
        tpu.vector_store %arg6[%130, %131, %c8_70, %c0_71], %122 {strides = array<i32>} : memref<2x34x48x64xf32, #tpu.memory_space<vmem>>, vector<1x8x32x64xf32>,
      } else {
      }
      %c1_i32_67 = arith.constant 1 : i32
      %126 = arith.cmpi eq, %arg1, %c1_i32_67 : i32
      %127 = arith.extui %126 : i1 to i32
      %c0_i32_68 = arith.constant 0 : i32
      %128 = arith.cmpi ne, %127, %c0_i32_68 : i32
      scf.if %128 {
        %129 = vector.shape_cast %122 : vector<1x8x32x64xf32> to vector<1x4x2x32x64xf32>
        %cst_69 = arith.constant dense<0xFF800000> : vector<1x4x32x64xf32>
        %130 = vector.multi_reduction <maximumf>, %129, %cst_69 [2] : vector<1x4x2x32x64xf32> to vector<1x4x32x64xf32>
        %131 = vector.shape_cast %130 : vector<1x4x32x64xf32> to vector<1x4x16x2x64xf32>
        %cst_70 = arith.constant dense<0xFF800000> : vector<1x4x16x64xf32>
        %132 = vector.multi_reduction <maximumf>, %131, %cst_70 [3] : vector<1x4x16x2x64xf32> to vector<1x4x16x64xf32>
        %c4_i32_71 = arith.constant 4 : i32
        %133 = arith.muli %arg7, %c4_i32_71 : i32
        %c0_72 = arith.constant 0 : index
        %134 = arith.index_cast %133 : i32 to index
        %c0_73 = arith.constant 0 : index
        %c0_74 = arith.constant 0 : index
        %135 = vector.load %arg5[%c0_72, %134, %c0_73, %c0_74] : memref<1x16x16x64xf32, #tpu.memory_space<vmem>>, vector<1x4x16x64xf32>
        tpu.vector_store %arg5[%c0_72, %134, %c0_73, %c0_74], %132 {strides = array<i32>} : memref<1x16x16x64xf32, #tpu.memory_space<vmem>>, vector<1x4x16x64xf32>,
      } else {
      }
    }
    %c4_i32_10 = arith.constant 4 : i32
    return
  }
  func.func @transform_0(%arg0: i32, %arg1: i32) -> (i32, i32, i32, i32) {
    %c0_i32 = arith.constant 0 : i32
    %c0_i32_0 = arith.constant 0 : i32
    %c0_i32_1 = arith.constant 0 : i32
    %c0_i32_2 = arith.constant 0 : i32
    return %arg0, %c0_i32, %c0_i32_0, %c0_i32_1 : i32, i32, i32, i32
  }
  func.func @transform_1(%arg0: i32, %arg1: i32) -> (i32, i32, i32, i32) {
    %c0_i32 = arith.constant 0 : i32
    %c0_i32_0 = arith.constant 0 : i32
    %c0_i32_1 = arith.constant 0 : i32
    %c0_i32_2 = arith.constant 0 : i32
    %c0_i32_3 = arith.constant 0 : i32
    return %c0_i32, %c0_i32_0, %c0_i32_1, %c0_i32_2 : i32, i32, i32, i32
  }
  func.func @transform_2(%arg0: i32, %arg1: i32) -> (i32, i32, i32) {
    %c0_i32 = arith.constant 0 : i32
    %c0_i32_0 = arith.constant 0 : i32
    %c0_i32_1 = arith.constant 0 : i32
    %c0_i32_2 = arith.constant 0 : i32
    return %c0_i32, %c0_i32_0, %c0_i32_1 : i32, i32, i32
  }
  func.func @transform_3(%arg0: i32, %arg1: i32) -> (i32, i32, i32, i32) {
    %c0_i32 = arith.constant 0 : i32
    %c0_i32_0 = arith.constant 0 : i32
    %c0_i32_1 = arith.constant 0 : i32
    %c0_i32_2 = arith.constant 0 : i32
    return %arg0, %c0_i32, %c0_i32_0, %c0_i32_1 : i32, i32, i32, i32
  }
}

</mosaic_0001>

<llo_original>
// kernel: tpu_custom_call.1
$region0: #{tpu_custom_call.1}
  #allocation0 [shape = 'u32[]', space=smem, size = 0x4, offset = 0x4, fixed_abs, tag = 'smem constant byte address 0x4 - core index']
  #allocation1 [shape = 'u32[144,128]{1,0:T(1,128)}', space=vmem, size = 0x12000, scoped, tag = 'internal scratch']
  #allocation2 [shape = 'f32[2,34,48,64]{3,2,1,0:T(8,128)}', space=vmem, size = 0x198000, scoped, tag = 'scratch operand']
  %s0 = inlined_call_operand.vmem [shape: f32[2,32,32,3], index: 0, kind: input, shape index: {}]
  %s1 = inlined_call_operand.vmem [shape: bf16[2,9,64,64], index: 1, kind: input, shape index: {}]
  %s2 = inlined_call_operand.vmem [shape: f32[2,1,64], index: 2, kind: input, shape index: {}]
  %s3 = inlined_call_operand.hbm [shape: f32[2,16,16,64], index: 3, kind: output, shape index: {}]
  %s4 = sld [smem:[#allocation0]]
  $region64: #{tpu_custom_call.1} parent=0
    _
  %s6 = ssub.s32 1, %s4
  %s7 = scalar_select 0, %s6, %s4
  $region1: #{tpu_custom_call.1} parent=0
    #allocation3 [shape = 'u8[262144]{0}', space=vmem, size = 0x40000, scoped, tag = 'output window, operand 0']
    #allocation4 [shape = 's32[2]{0}', space=sflag, size = 0x8, scoped, tag = 'scoped memory for tpu_custom_call.1']
    %8 = vsyncpa [#allocation4], 0
    %s9 = scalar_lea.sflag [#allocation4], 1
    %10 = vsyncpa %s9, 0
    loop: start=0, step=1, limit=6
    $region2: #{tpu_custom_call.1} parent=1 // loop_pre_header
      _
    $region3: #{tpu_custom_call.1} parent=1 // loop_header
      %s12 = sphi 0, %s16
      %p13 = scmp.ge.s32.totalorder %s12, 6
      %s19 = sphi 0, %s31
      %s20 = sphi 0, %s27
      %s21 = sphi 0, %s19
      %s22 = sphi 0, %s20
      %s23 = sphi 0, %s21
      %s24 = sphi 0, %s22
      %s34 = sphi 0, %s36
      %s37 = sphi 0, %s34
      %s38 = sphi 0, %s37
      %s54 = sphi 0, %s38
      %s58 = sphi 0, %s58
      %s60 = sphi 0, %s58
      %s61 = sphi 0, %s60
      %s75 = sphi 0, %s61
      %s79 = sphi 0, %s79
      %s81 = sphi 0, %s79
      %s82 = sphi 0, %s81
      %s96 = sphi 0, %s82
      %s102 = sphi 0, %s104
      %s105 = sphi 0, %s102
      %s106 = sphi 0, %s105
      %s122 = sphi 0, %s106
    $region4: #{tpu_custom_call.1} parent=1 // loop_header_branch
      %15 = sbr.rel (%p13) target = $region8
    $region5: #{tpu_custom_call.1} parent=1 // loop_body
      %s17 = ssub.s32 %s12, 1
      %s18 = ssub.s32 %s12, 2
      %s25 = sadd.s32 1, %s20
      %p26 = scmp.ge.s32.totalorder %s25, 2
      %s27 = scalar_select %p26, 0, %s25
      %s28 = sadd.s32 1, %s19
      %s29 = scalar_select %p26, %s28, %s19
      %p30 = scmp.ge.s32.totalorder %s29, 2
      %s31 = scalar_select %p30, 0, %s29
      %s32 = ssub.s32 %s19, %s31
      %p33 = scmp.eq.s32.totalorder %s32, 0
      %s35 = sadd.s32 %s34, 1
      %s36 = scalar_select %p33, %s34, %s35
      %p39 = pneg %p33
      %p40 = scmp.eq.s32.totalorder %s12, 3
      %p41 = por %p39, %p40
      %p42 = scmp.ne.s32.totalorder %s34, %s37
      %p43 = scmp.eq.s32.totalorder %s12, 0
      %p44 = por %p42, %p43
      %p45 = scmp.ne.s32.totalorder %s34, %s37
      %p46 = scmp.eq.s32.totalorder %s17, 3
      %p47 = por %p45, %p46
      %p48 = scmp.ne.s32.totalorder %s37, %s38
      %p49 = scmp.eq.s32.totalorder %s17, 0
      %p50 = por %p48, %p49
      %p51 = scmp.ne.s32.totalorder %s37, %s38
      %p52 = scmp.eq.s32.totalorder %s18, 3
      %p53 = por %p51, %p52
      %p55 = scmp.ne.s32.totalorder %s38, %s54
      %p56 = scmp.eq.s32.totalorder %s18, 0
      %p57 = por %p55, %p56
      %s59 = sadd.s32 %s58, 1
      %p62 = scmp.eq.s32.totalorder %s12, 3
      %p63 = scmp.ne.s32.totalorder %s58, %s60
      %p64 = scmp.eq.s32.totalorder %s12, 0
      %p65 = por %p63, %p64
      %p66 = scmp.ne.s32.totalorder %s58, %s60
      %p67 = scmp.eq.s32.totalorder %s17, 3
      %p68 = por %p66, %p67
      %p69 = scmp.ne.s32.totalorder %s60, %s61
      %p70 = scmp.eq.s32.totalorder %s17, 0
      %p71 = por %p69, %p70
      %p72 = scmp.ne.s32.totalorder %s60, %s61
      %p73 = scmp.eq.s32.totalorder %s18, 3
      %p74 = por %p72, %p73
      %p76 = scmp.ne.s32.totalorder %s61, %s75
      %p77 = scmp.eq.s32.totalorder %s18, 0
      %p78 = por %p76, %p77
      %s80 = sadd.s32 %s79, 1
      %p83 = scmp.eq.s32.totalorder %s12, 3
      %p84 = scmp.ne.s32.totalorder %s79, %s81
      %p85 = scmp.eq.s32.totalorder %s12, 0
      %p86 = por %p84, %p85
      %p87 = scmp.ne.s32.totalorder %s79, %s81
      %p88 = scmp.eq.s32.totalorder %s17, 3
      %p89 = por %p87, %p88
      %p90 = scmp.ne.s32.totalorder %s81, %s82
      %p91 = scmp.eq.s32.totalorder %s17, 0
      %p92 = por %p90, %p91
      %p93 = scmp.ne.s32.totalorder %s81, %s82
      %p94 = scmp.eq.s32.totalorder %s18, 3
      %p95 = por %p93, %p94
      %p97 = scmp.ne.s32.totalorder %s82, %s96
      %p98 = scmp.eq.s32.totalorder %s18, 0
      %p99 = por %p97, %p98
      %s100 = ssub.s32 %s19, %s31
      %p101 = scmp.eq.s32.totalorder %s100, 0
      %s103 = sadd.s32 %s102, 1
      %s104 = scalar_select %p101, %s102, %s103
      %p107 = pneg %p101
      %p108 = scmp.eq.s32.totalorder %s12, 3
      %p109 = por %p107, %p108
      %p110 = scmp.ne.s32.totalorder %s102, %s105
      %p111 = scmp.eq.s32.totalorder %s12, 0
      %p112 = por %p110, %p111
      %p113 = scmp.ne.s32.totalorder %s102, %s105
      %p114 = scmp.eq.s32.totalorder %s17, 3
      %p115 = por %p113, %p114
      %p116 = scmp.ne.s32.totalorder %s105, %s106
      %p117 = scmp.eq.s32.totalorder %s17, 0
      %p118 = por %p116, %p117
      %p119 = scmp.ne.s32.totalorder %s105, %s106
      %p120 = scmp.eq.s32.totalorder %s18, 3
      %p121 = por %p119, %p120
      %p123 = scmp.ne.s32.totalorder %s106, %s122
      %p124 = scmp.eq.s32.totalorder %s18, 0
      %p125 = por %p123, %p124
      %p126 = scmp.le.s32.totalorder 1, %s12
      %p127 = scmp.lt.s32.totalorder %s12, 5
      %p128 = pnand %p126, %p127
      %p129 = pneg %p128
      // Predicated region
      $region9: #{tpu_custom_call.1} parent=5 // pred_check
        _
      $region10: #{tpu_custom_call.1} parent=5 // pred_check_branch
        %131 = sbr.rel (%p128) target = $region12
      $region11: #{tpu_custom_call.1} parent=5 // pred_region
        %s132 = ssub.s32 %s12, 1
        // Predicated region
        $region13: #{tpu_custom_call.1} parent=11 // pred_check
          %p133 = pneg %p71
        $region14: #{tpu_custom_call.1} parent=11 // pred_check_branch
          %135 = sbr.rel (%p133) target = $region16
        $region15: #{tpu_custom_call.1} parent=11 // pred_region
          _
        $region16: #{tpu_custom_call.1} parent=11 // pred_fallthru
          _
        // Predicated region
        $region17: #{tpu_custom_call.1} parent=11 // pred_check
          %p136 = pneg %p92
        $region18: #{tpu_custom_call.1} parent=11 // pred_check_branch
          %138 = sbr.rel (%p136) target = $region20
        $region19: #{tpu_custom_call.1} parent=11 // pred_region
          _
        $region20: #{tpu_custom_call.1} parent=11 // pred_fallthru
          _
      $region12: #{tpu_custom_call.1} parent=5 // pred_fallthru
        _
      %p139 = scmp.lt.s32.totalorder %s12, 4
      // Predicated region
      $region21: #{tpu_custom_call.1} parent=5 // pred_check
        %p140 = pneg %p139
      $region22: #{tpu_custom_call.1} parent=5 // pred_check_branch
        %142 = sbr.rel (%p140) target = $region24
      $region23: #{tpu_custom_call.1} parent=5 // pred_region
        // Predicated region
        $region25: #{tpu_custom_call.1} parent=23 // pred_check
          %p143 = pneg %p44
        $region26: #{tpu_custom_call.1} parent=23 // pred_check_branch
          %145 = sbr.rel (%p143) target = $region28
        $region27: #{tpu_custom_call.1} parent=23 // pred_region
          %p146 = scmp.lt.s32.totalorder %s19, 1
          %s147 = scalar_select %p146, %s19, 1
          %s148 = smul.addr %s147, 128
          %s149 = smul.addr %s148, 8
          %s150 = scalar_lea.vmem %s0, %s149
        $region28: #{tpu_custom_call.1} parent=23 // pred_fallthru
          _
      $region24: #{tpu_custom_call.1} parent=5 // pred_fallthru
        _
      %p151 = scmp.le.s32.totalorder 1, %s12
      %p152 = scmp.lt.s32.totalorder %s12, 5
      %p153 = pnand %p151, %p152
      %p154 = pneg %p153
      // Predicated region
      $region29: #{tpu_custom_call.1} parent=5 // pred_check
        _
      $region30: #{tpu_custom_call.1} parent=5 // pred_check_branch
        %156 = sbr.rel (%p153) target = $region32
      $region31: #{tpu_custom_call.1} parent=5 // pred_region
        %s157 = ssub.s32 %s12, 1
        %p158 = scmp.lt.s32.totalorder %s21, 1
        %s159 = scalar_select %p158, %s21, 1
        %s160 = smul.addr %s159, 128
        %s161 = smul.addr %s160, 8
        %s162 = scalar_lea.vmem %s0, %s161
        %p163 = pneg %p50
        %p164 = pneg %p47
        %p165 = pneg %p71
        %p166 = pneg %p68
        %p167 = pneg %p92
        %p168 = pneg %p89
        %p169 = pneg %p118
        %p170 = pneg %p115
        %s171 = sand.u32 %s105, 1
        %s172 = scalar_lea.sflag [#allocation4], %s171
        %s173 = sand.u32 %s105, 1
        %s174 = smul.addr %s173, 256
        %s175 = scalar_lea.vmem [#allocation3], %s174
        %p176 = scmp.lt.s32.totalorder %s21, 1
        %s177 = scalar_select %p176, %s21, 1
        %s178 = smul.addr %s177, 128
        %s179 = smul.addr %s178, 8
        %s180 = scalar_lea.vmem %s0, %s179
        %p182 = scmp.eq.s32.totalorder %s22, 0
        // Predicated region
        $region33: #{tpu_custom_call.1} parent=31 // pred_check
          %p183 = pneg %p182
        $region34: #{tpu_custom_call.1} parent=31 // pred_check_branch
          %185 = sbr.rel (%p183) target = $region36
        $region35: #{tpu_custom_call.1} parent=31 // pred_region
          %vm186 = vcmask 523264
          %187 = vst.msk [vmem:[#allocation2] sm:$0xff] %vm186, 0.0
          %188 = vst.msk [vmem:[#allocation2 + $0x8] sm:$0xff] %vm186, 0.0
          %189 = vst.msk [vmem:[#allocation2 + $0x10] sm:$0xff] %vm186, 0.0
          %190 = vst.msk [vmem:[#allocation2 + $0x18] sm:$0xff] %vm186, 0.0
          %191 = vst.msk [vmem:[#allocation2 + $0x20] sm:$0xff] %vm186, 0.0
          %192 = vst.msk [vmem:[#allocation2 + $0x28] sm:$0xff] %vm186, 0.0
          %193 = vst.msk [vmem:[#allocation2 + $0x660] sm:$0xff] %vm186, 0.0
          %194 = vst.msk [vmem:[#allocation2 + $0x668] sm:$0xff] %vm186, 0.0
          %195 = vst.msk [vmem:[#allocation2 + $0x670] sm:$0xff] %vm186, 0.0
          %196 = vst.msk [vmem:[#allocation2 + $0x678] sm:$0xff] %vm186, 0.0
          %197 = vst.msk [vmem:[#allocation2 + $0x680] sm:$0xff] %vm186, 0.0
          %198 = vst.msk [vmem:[#allocation2 + $0x688] sm:$0xff] %vm186, 0.0
          %s199 = scalar_lea.vmem [#allocation2], 1584
          %200 = vst.msk [vmem:[%s199] sm:$0xff] %vm186, 0.0
          %201 = vst.msk [vmem:[%s199 + $0x8] sm:$0xff] %vm186, 0.0
          %202 = vst.msk [vmem:[%s199 + $0x10] sm:$0xff] %vm186, 0.0
          %203 = vst.msk [vmem:[%s199 + $0x18] sm:$0xff] %vm186, 0.0
          %204 = vst.msk [vmem:[%s199 + $0x20] sm:$0xff] %vm186, 0.0
          %205 = vst.msk [vmem:[%s199 + $0x28] sm:$0xff] %vm186, 0.0
          %206 = vst.msk [vmem:[%s199 + $0x660] sm:$0xff] %vm186, 0.0
          %207 = vst.msk [vmem:[%s199 + $0x668] sm:$0xff] %vm186, 0.0
          %208 = vst.msk [vmem:[%s199 + $0x670] sm:$0xff] %vm186, 0.0
          %209 = vst.msk [vmem:[%s199 + $0x678] sm:$0xff] %vm186, 0.0
          %210 = vst.msk [vmem:[%s199 + $0x680] sm:$0xff] %vm186, 0.0
          %211 = vst.msk [vmem:[%s199 + $0x688] sm:$0xff] %vm186, 0.0
          %212 = vst.msk [vmem:[#allocation2] sm:$0xff] %vm186, 0.0
          %213 = vst.msk [vmem:[#allocation2 + $0x30] sm:$0xff] %vm186, 0.0
          %214 = vst.msk [vmem:[#allocation2 + $0x60] sm:$0xff] %vm186, 0.0
          %215 = vst.msk [vmem:[#allocation2 + $0x90] sm:$0xff] %vm186, 0.0
          %216 = vst.msk [vmem:[#allocation2 + $0xc0] sm:$0xff] %vm186, 0.0
          %217 = vst.msk [vmem:[#allocation2 + $0xf0] sm:$0xff] %vm186, 0.0
          %218 = vst.msk [vmem:[#allocation2 + $0x120] sm:$0xff] %vm186, 0.0
          %219 = vst.msk [vmem:[#allocation2 + $0x150] sm:$0xff] %vm186, 0.0
          %220 = vst.msk [vmem:[#allocation2 + $0x180] sm:$0xff] %vm186, 0.0
          %221 = vst.msk [vmem:[#allocation2 + $0x1b0] sm:$0xff] %vm186, 0.0
          %222 = vst.msk [vmem:[#allocation2 + $0x1e0] sm:$0xff] %vm186, 0.0
          %223 = vst.msk [vmem:[#allocation2 + $0x210] sm:$0xff] %vm186, 0.0
          %224 = vst.msk [vmem:[#allocation2 + $0x240] sm:$0xff] %vm186, 0.0
          %225 = vst.msk [vmem:[#allocation2 + $0x270] sm:$0xff] %vm186, 0.0
          %226 = vst.msk [vmem:[#allocation2 + $0x2a0] sm:$0xff] %vm186, 0.0
          %227 = vst.msk [vmem:[#allocation2 + $0x2d0] sm:$0xff] %vm186, 0.0
          %228 = vst.msk [vmem:[#allocation2 + $0x300] sm:$0xff] %vm186, 0.0
          %229 = vst.msk [vmem:[#allocation2 + $0x330] sm:$0xff] %vm186, 0.0
          %230 = vst.msk [vmem:[#allocation2 + $0x360] sm:$0xff] %vm186, 0.0
          %231 = vst.msk [vmem:[#allocation2 + $0x390] sm:$0xff] %vm186, 0.0
          %232 = vst.msk [vmem:[#allocation2 + $0x3c0] sm:$0xff] %vm186, 0.0
          %233 = vst.msk [vmem:[#allocation2 + $0x3f0] sm:$0xff] %vm186, 0.0
          %234 = vst.msk [vmem:[#allocation2 + $0x420] sm:$0xff] %vm186, 0.0
          %235 = vst.msk [vmem:[#allocation2 + $0x450] sm:$0xff] %vm186, 0.0
          %236 = vst.msk [vmem:[#allocation2 + $0x480] sm:$0xff] %vm186, 0.0
          %237 = vst.msk [vmem:[#allocation2 + $0x4b0] sm:$0xff] %vm186, 0.0
          %238 = vst.msk [vmem:[#allocation2 + $0x4e0] sm:$0xff] %vm186, 0.0
          %239 = vst.msk [vmem:[#allocation2 + $0x510] sm:$0xff] %vm186, 0.0
          %240 = vst.msk [vmem:[#allocation2 + $0x540] sm:$0xff] %vm186, 0.0
          %241 = vst.msk [vmem:[#allocation2 + $0x570] sm:$0xff] %vm186, 0.0
          %242 = vst.msk [vmem:[#allocation2 + $0x5a0] sm:$0xff] %vm186, 0.0
          %243 = vst.msk [vmem:[#allocation2 + $0x5d0] sm:$0xff] %vm186, 0.0
          %244 = vst.msk [vmem:[#allocation2 + $0x600] sm:$0xff] %vm186, 0.0
          %245 = vst.msk [vmem:[#allocation2 + $0x630] sm:$0xff] %vm186, 0.0
          %246 = vst.msk [vmem:[#allocation2 + $0x660] sm:$0xff] %vm186, 0.0
          %247 = vst.msk [vmem:[#allocation2 + $0x690] sm:$0xff] %vm186, 0.0
          %248 = vst.msk [vmem:[#allocation2 + $0x6c0] sm:$0xff] %vm186, 0.0
          %249 = vst.msk [vmem:[#allocation2 + $0x6f0] sm:$0xff] %vm186, 0.0
          %250 = vst.msk [vmem:[#allocation2 + $0x720] sm:$0xff] %vm186, 0.0
          %251 = vst.msk [vmem:[#allocation2 + $0x750] sm:$0xff] %vm186, 0.0
          %252 = vst.msk [vmem:[#allocation2 + $0x780] sm:$0xff] %vm186, 0.0
          %253 = vst.msk [vmem:[#allocation2 + $0x7b0] sm:$0xff] %vm186, 0.0
          %254 = vst.msk [vmem:[#allocation2 + $0x7e0] sm:$0xff] %vm186, 0.0
          %255 = vst.msk [vmem:[#allocation2 + $0x810] sm:$0xff] %vm186, 0.0
          %256 = vst.msk [vmem:[#allocation2 + $0x840] sm:$0xff] %vm186, 0.0
          %257 = vst.msk [vmem:[#allocation2 + $0x870] sm:$0xff] %vm186, 0.0
          %258 = vst.msk [vmem:[#allocation2 + $0x8a0] sm:$0xff] %vm186, 0.0
          %259 = vst.msk [vmem:[#allocation2 + $0x8d0] sm:$0xff] %vm186, 0.0
          %260 = vst.msk [vmem:[#allocation2 + $0x900] sm:$0xff] %vm186, 0.0
          %261 = vst.msk [vmem:[#allocation2 + $0x930] sm:$0xff] %vm186, 0.0
          %262 = vst.msk [vmem:[#allocation2 + $0x960] sm:$0xff] %vm186, 0.0
          %263 = vst.msk [vmem:[#allocation2 + $0x990] sm:$0xff] %vm186, 0.0
          %264 = vst.msk [vmem:[#allocation2 + $0x9c0] sm:$0xff] %vm186, 0.0
          %265 = vst.msk [vmem:[#allocation2 + $0x9f0] sm:$0xff] %vm186, 0.0
          %266 = vst.msk [vmem:[#allocation2 + $0xa20] sm:$0xff] %vm186, 0.0
          %267 = vst.msk [vmem:[#allocation2 + $0xa50] sm:$0xff] %vm186, 0.0
          %268 = vst.msk [vmem:[#allocation2 + $0xa80] sm:$0xff] %vm186, 0.0
          %269 = vst.msk [vmem:[#allocation2 + $0xab0] sm:$0xff] %vm186, 0.0
          %270 = vst.msk [vmem:[#allocation2 + $0xae0] sm:$0xff] %vm186, 0.0
          %271 = vst.msk [vmem:[#allocation2 + $0xb10] sm:$0xff] %vm186, 0.0
          %272 = vst.msk [vmem:[#allocation2 + $0xb40] sm:$0xff] %vm186, 0.0
          %273 = vst.msk [vmem:[#allocation2 + $0xb70] sm:$0xff] %vm186, 0.0
          %274 = vst.msk [vmem:[#allocation2 + $0xba0] sm:$0xff] %vm186, 0.0
          %275 = vst.msk [vmem:[#allocation2 + $0xbd0] sm:$0xff] %vm186, 0.0
          %276 = vst.msk [vmem:[#allocation2 + $0xc00] sm:$0xff] %vm186, 0.0
          %277 = vst.msk [vmem:[#allocation2 + $0xc30] sm:$0xff] %vm186, 0.0
          %278 = vst.msk [vmem:[#allocation2 + $0xc60] sm:$0xff] %vm186, 0.0
          %279 = vst.msk [vmem:[#allocation2 + $0xc90] sm:$0xff] %vm186, 0.0
          %280 = vst.msk [vmem:[#allocation2 + $0x28] sm:$0xff] %vm186, 0.0
          %281 = vst.msk [vmem:[#allocation2 + $0x58] sm:$0xff] %vm186, 0.0
          %282 = vst.msk [vmem:[#allocation2 + $0x88] sm:$0xff] %vm186, 0.0
          %283 = vst.msk [vmem:[#allocation2 + $0xb8] sm:$0xff] %vm186, 0.0
          %284 = vst.msk [vmem:[#allocation2 + $0xe8] sm:$0xff] %vm186, 0.0
          %285 = vst.msk [vmem:[#allocation2 + $0x118] sm:$0xff] %vm186, 0.0
          %286 = vst.msk [vmem:[#allocation2 + $0x148] sm:$0xff] %vm186, 0.0
          %287 = vst.msk [vmem:[#allocation2 + $0x178] sm:$0xff] %vm186, 0.0
          %288 = vst.msk [vmem:[#allocation2 + $0x1a8] sm:$0xff] %vm186, 0.0
          %289 = vst.msk [vmem:[#allocation2 + $0x1d8] sm:$0xff] %vm186, 0.0
          %290 = vst.msk [vmem:[#allocation2 + $0x208] sm:$0xff] %vm186, 0.0
          %291 = vst.msk [vmem:[#allocation2 + $0x238] sm:$0xff] %vm186, 0.0
          %292 = vst.msk [vmem:[#allocation2 + $0x268] sm:$0xff] %vm186, 0.0
          %293 = vst.msk [vmem:[#allocation2 + $0x298] sm:$0xff] %vm186, 0.0
          %294 = vst.msk [vmem:[#allocation2 + $0x2c8] sm:$0xff] %vm186, 0.0
          %295 = vst.msk [vmem:[#allocation2 + $0x2f8] sm:$0xff] %vm186, 0.0
          %296 = vst.msk [vmem:[#allocation2 + $0x328] sm:$0xff] %vm186, 0.0
          %297 = vst.msk [vmem:[#allocation2 + $0x358] sm:$0xff] %vm186, 0.0
          %298 = vst.msk [vmem:[#allocation2 + $0x388] sm:$0xff] %vm186, 0.0
          %299 = vst.msk [vmem:[#allocation2 + $0x3b8] sm:$0xff] %vm186, 0.0
          %300 = vst.msk [vmem:[#allocation2 + $0x3e8] sm:$0xff] %vm186, 0.0
          %301 = vst.msk [vmem:[#allocation2 + $0x418] sm:$0xff] %vm186, 0.0
          %302 = vst.msk [vmem:[#allocation2 + $0x448] sm:$0xff] %vm186, 0.0
          %303 = vst.msk [vmem:[#allocation2 + $0x478] sm:$0xff] %vm186, 0.0
          %304 = vst.msk [vmem:[#allocation2 + $0x4a8] sm:$0xff] %vm186, 0.0
          %305 = vst.msk [vmem:[#allocation2 + $0x4d8] sm:$0xff] %vm186, 0.0
          %306 = vst.msk [vmem:[#allocation2 + $0x508] sm:$0xff] %vm186, 0.0
          %307 = vst.msk [vmem:[#allocation2 + $0x538] sm:$0xff] %vm186, 0.0
          %308 = vst.msk [vmem:[#allocation2 + $0x568] sm:$0xff] %vm186, 0.0
          %309 = vst.msk [vmem:[#allocation2 + $0x598] sm:$0xff] %vm186, 0.0
          %310 = vst.msk [vmem:[#allocation2 + $0x5c8] sm:$0xff] %vm186, 0.0
          %311 = vst.msk [vmem:[#allocation2 + $0x5f8] sm:$0xff] %vm186, 0.0
          %312 = vst.msk [vmem:[#allocation2 + $0x628] sm:$0xff] %vm186, 0.0
          %313 = vst.msk [vmem:[#allocation2 + $0x658] sm:$0xff] %vm186, 0.0
          %314 = vst.msk [vmem:[#allocation2 + $0x688] sm:$0xff] %vm186, 0.0
          %315 = vst.msk [vmem:[#allocation2 + $0x6b8] sm:$0xff] %vm186, 0.0
          %316 = vst.msk [vmem:[#allocation2 + $0x6e8] sm:$0xff] %vm186, 0.0
          %317 = vst.msk [vmem:[#allocation2 + $0x718] sm:$0xff] %vm186, 0.0
          %318 = vst.msk [vmem:[#allocation2 + $0x748] sm:$0xff] %vm186, 0.0
          %319 = vst.msk [vmem:[#allocation2 + $0x778] sm:$0xff] %vm186, 0.0
          %320 = vst.msk [vmem:[#allocation2 + $0x7a8] sm:$0xff] %vm186, 0.0
          %321 = vst.msk [vmem:[#allocation2 + $0x7d8] sm:$0xff] %vm186, 0.0
          %322 = vst.msk [vmem:[#allocation2 + $0x808] sm:$0xff] %vm186, 0.0
          %323 = vst.msk [vmem:[#allocation2 + $0x838] sm:$0xff] %vm186, 0.0
          %324 = vst.msk [vmem:[#allocation2 + $0x868] sm:$0xff] %vm186, 0.0
          %325 = vst.msk [vmem:[#allocation2 + $0x898] sm:$0xff] %vm186, 0.0
          %326 = vst.msk [vmem:[#allocation2 + $0x8c8] sm:$0xff] %vm186, 0.0
          %327 = vst.msk [vmem:[#allocation2 + $0x8f8] sm:$0xff] %vm186, 0.0
          %328 = vst.msk [vmem:[#allocation2 + $0x928] sm:$0xff] %vm186, 0.0
          %329 = vst.msk [vmem:[#allocation2 + $0x958] sm:$0xff] %vm186, 0.0
          %330 = vst.msk [vmem:[#allocation2 + $0x988] sm:$0xff] %vm186, 0.0
          %331 = vst.msk [vmem:[#allocation2 + $0x9b8] sm:$0xff] %vm186, 0.0
          %332 = vst.msk [vmem:[#allocation2 + $0x9e8] sm:$0xff] %vm186, 0.0
          %333 = vst.msk [vmem:[#allocation2 + $0xa18] sm:$0xff] %vm186, 0.0
          %334 = vst.msk [vmem:[#allocation2 + $0xa48] sm:$0xff] %vm186, 0.0
          %335 = vst.msk [vmem:[#allocation2 + $0xa78] sm:$0xff] %vm186, 0.0
          %336 = vst.msk [vmem:[#allocation2 + $0xaa8] sm:$0xff] %vm186, 0.0
          %337 = vst.msk [vmem:[#allocation2 + $0xad8] sm:$0xff] %vm186, 0.0
          %338 = vst.msk [vmem:[#allocation2 + $0xb08] sm:$0xff] %vm186, 0.0
          %339 = vst.msk [vmem:[#allocation2 + $0xb38] sm:$0xff] %vm186, 0.0
          %340 = vst.msk [vmem:[#allocation2 + $0xb68] sm:$0xff] %vm186, 0.0
          %341 = vst.msk [vmem:[#allocation2 + $0xb98] sm:$0xff] %vm186, 0.0
          %342 = vst.msk [vmem:[#allocation2 + $0xbc8] sm:$0xff] %vm186, 0.0
          %343 = vst.msk [vmem:[#allocation2 + $0xbf8] sm:$0xff] %vm186, 0.0
          %344 = vst.msk [vmem:[#allocation2 + $0xc28] sm:$0xff] %vm186, 0.0
          %345 = vst.msk [vmem:[#allocation2 + $0xc58] sm:$0xff] %vm186, 0.0
          %346 = vst.msk [vmem:[#allocation2 + $0xc88] sm:$0xff] %vm186, 0.0
          %347 = vst.msk [vmem:[#allocation2 + $0xcb8] sm:$0xff] %vm186, 0.0
          %s348 = scalar_lea.vmem [#allocation2], 48
          %349 = vst.msk [vmem:[%s348 + $0x8] sm:$0xff] %vm186, 0.0
          %350 = vst.msk [vmem:[%s348 + $0x10] sm:$0xff] %vm186, 0.0
          %351 = vst.msk [vmem:[%s348 + $0x18] sm:$0xff] %vm186, 0.0
          %352 = vst.msk [vmem:[%s348 + $0x20] sm:$0xff] %vm186, 0.0
          %353 = vst.msk [vmem:[%s348 + $0x38] sm:$0xff] %vm186, 0.0
          %354 = vst.msk [vmem:[%s348 + $0x40] sm:$0xff] %vm186, 0.0
          %355 = vst.msk [vmem:[%s348 + $0x48] sm:$0xff] %vm186, 0.0
          %356 = vst.msk [vmem:[%s348 + $0x50] sm:$0xff] %vm186, 0.0
          %357 = vst.msk [vmem:[%s348 + $0x68] sm:$0xff] %vm186, 0.0
          %358 = vst.msk [vmem:[%s348 + $0x70] sm:$0xff] %vm186, 0.0
          %359 = vst.msk [vmem:[%s348 + $0x78] sm:$0xff] %vm186, 0.0
          %360 = vst.msk [vmem:[%s348 + $0x80] sm:$0xff] %vm186, 0.0
          %361 = vst.msk [vmem:[%s348 + $0x98] sm:$0xff] %vm186, 0.0
          %362 = vst.msk [vmem:[%s348 + $0xa0] sm:$0xff] %vm186, 0.0
          %363 = vst.msk [vmem:[%s348 + $0xa8] sm:$0xff] %vm186, 0.0
          %364 = vst.msk [vmem:[%s348 + $0xb0] sm:$0xff] %vm186, 0.0
          %365 = vst.msk [vmem:[%s348 + $0xc8] sm:$0xff] %vm186, 0.0
          %366 = vst.msk [vmem:[%s348 + $0xd0] sm:$0xff] %vm186, 0.0
          %367 = vst.msk [vmem:[%s348 + $0xd8] sm:$0xff] %vm186, 0.0
          %368 = vst.msk [vmem:[%s348 + $0xe0] sm:$0xff] %vm186, 0.0
          %369 = vst.msk [vmem:[%s348 + $0xf8] sm:$0xff] %vm186, 0.0
          %370 = vst.msk [vmem:[%s348 + $0x100] sm:$0xff] %vm186, 0.0
          %371 = vst.msk [vmem:[%s348 + $0x108] sm:$0xff] %vm186, 0.0
          %372 = vst.msk [vmem:[%s348 + $0x110] sm:$0xff] %vm186, 0.0
          %373 = vst.msk [vmem:[%s348 + $0x128] sm:$0xff] %vm186, 0.0
          %374 = vst.msk [vmem:[%s348 + $0x130] sm:$0xff] %vm186, 0.0
          %375 = vst.msk [vmem:[%s348 + $0x138] sm:$0xff] %vm186, 0.0
          %376 = vst.msk [vmem:[%s348 + $0x140] sm:$0xff] %vm186, 0.0
          %377 = vst.msk [vmem:[%s348 + $0x158] sm:$0xff] %vm186, 0.0
          %378 = vst.msk [vmem:[%s348 + $0x160] sm:$0xff] %vm186, 0.0
          %379 = vst.msk [vmem:[%s348 + $0x168] sm:$0xff] %vm186, 0.0
          %380 = vst.msk [vmem:[%s348 + $0x170] sm:$0xff] %vm186, 0.0
          %381 = vst.msk [vmem:[%s348 + $0x188] sm:$0xff] %vm186, 0.0
          %382 = vst.msk [vmem:[%s348 + $0x190] sm:$0xff] %vm186, 0.0
          %383 = vst.msk [vmem:[%s348 + $0x198] sm:$0xff] %vm186, 0.0
          %384 = vst.msk [vmem:[%s348 + $0x1a0] sm:$0xff] %vm186, 0.0
          %385 = vst.msk [vmem:[%s348 + $0x1b8] sm:$0xff] %vm186, 0.0
          %386 = vst.msk [vmem:[%s348 + $0x1c0] sm:$0xff] %vm186, 0.0
          %387 = vst.msk [vmem:[%s348 + $0x1c8] sm:$0xff] %vm186, 0.0
          %388 = vst.msk [vmem:[%s348 + $0x1d0] sm:$0xff] %vm186, 0.0
          %389 = vst.msk [vmem:[%s348 + $0x1e8] sm:$0xff] %vm186, 0.0
          %390 = vst.msk [vmem:[%s348 + $0x1f0] sm:$0xff] %vm186, 0.0
          %391 = vst.msk [vmem:[%s348 + $0x1f8] sm:$0xff] %vm186, 0.0
          %392 = vst.msk [vmem:[%s348 + $0x200] sm:$0xff] %vm186, 0.0
          %393 = vst.msk [vmem:[%s348 + $0x218] sm:$0xff] %vm186, 0.0
          %394 = vst.msk [vmem:[%s348 + $0x220] sm:$0xff] %vm186, 0.0
          %395 = vst.msk [vmem:[%s348 + $0x228] sm:$0xff] %vm186, 0.0
          %396 = vst.msk [vmem:[%s348 + $0x230] sm:$0xff] %vm186, 0.0
          %397 = vst.msk [vmem:[%s348 + $0x248] sm:$0xff] %vm186, 0.0
          %398 = vst.msk [vmem:[%s348 + $0x250] sm:$0xff] %vm186, 0.0
          %399 = vst.msk [vmem:[%s348 + $0x258] sm:$0xff] %vm186, 0.0
          %400 = vst.msk [vmem:[%s348 + $0x260] sm:$0xff] %vm186, 0.0
          %401 = vst.msk [vmem:[%s348 + $0x278] sm:$0xff] %vm186, 0.0
          %402 = vst.msk [vmem:[%s348 + $0x280] sm:$0xff] %vm186, 0.0
          %403 = vst.msk [vmem:[%s348 + $0x288] sm:$0xff] %vm186, 0.0
          %404 = vst.msk [vmem:[%s348 + $0x290] sm:$0xff] %vm186, 0.0
          %405 = vst.msk [vmem:[%s348 + $0x2a8] sm:$0xff] %vm186, 0.0
          %406 = vst.msk [vmem:[%s348 + $0x2b0] sm:$0xff] %vm186, 0.0
          %407 = vst.msk [vmem:[%s348 + $0x2b8] sm:$0xff] %vm186, 0.0
          %408 = vst.msk [vmem:[%s348 + $0x2c0] sm:$0xff] %vm186, 0.0
          %409 = vst.msk [vmem:[%s348 + $0x2d8] sm:$0xff] %vm186, 0.0
          %410 = vst.msk [vmem:[%s348 + $0x2e0] sm:$0xff] %vm186, 0.0
          %411 = vst.msk [vmem:[%s348 + $0x2e8] sm:$0xff] %vm186, 0.0
          %412 = vst.msk [vmem:[%s348 + $0x2f0] sm:$0xff] %vm186, 0.0
          %413 = vst.msk [vmem:[%s348 + $0x308] sm:$0xff] %vm186, 0.0
          %414 = vst.msk [vmem:[%s348 + $0x310] sm:$0xff] %vm186, 0.0
          %415 = vst.msk [vmem:[%s348 + $0x318] sm:$0xff] %vm186, 0.0
          %416 = vst.msk [vmem:[%s348 + $0x320] sm:$0xff] %vm186, 0.0
          %417 = vst.msk [vmem:[%s348 + $0x338] sm:$0xff] %vm186, 0.0
          %418 = vst.msk [vmem:[%s348 + $0x340] sm:$0xff] %vm186, 0.0
          %419 = vst.msk [vmem:[%s348 + $0x348] sm:$0xff] %vm186, 0.0
          %420 = vst.msk [vmem:[%s348 + $0x350] sm:$0xff] %vm186, 0.0
          %421 = vst.msk [vmem:[%s348 + $0x368] sm:$0xff] %vm186, 0.0
          %422 = vst.msk [vmem:[%s348 + $0x370] sm:$0xff] %vm186, 0.0
          %423 = vst.msk [vmem:[%s348 + $0x378] sm:$0xff] %vm186, 0.0
          %424 = vst.msk [vmem:[%s348 + $0x380] sm:$0xff] %vm186, 0.0
          %425 = vst.msk [vmem:[%s348 + $0x398] sm:$0xff] %vm186, 0.0
          %426 = vst.msk [vmem:[%s348 + $0x3a0] sm:$0xff] %vm186, 0.0
          %427 = vst.msk [vmem:[%s348 + $0x3a8] sm:$0xff] %vm186, 0.0
          %428 = vst.msk [vmem:[%s348 + $0x3b0] sm:$0xff] %vm186, 0.0
          %429 = vst.msk [vmem:[%s348 + $0x3c8] sm:$0xff] %vm186, 0.0
          %430 = vst.msk [vmem:[%s348 + $0x3d0] sm:$0xff] %vm186, 0.0
          %431 = vst.msk [vmem:[%s348 + $0x3d8] sm:$0xff] %vm186, 0.0
          %432 = vst.msk [vmem:[%s348 + $0x3e0] sm:$0xff] %vm186, 0.0
          %433 = vst.msk [vmem:[%s348 + $0x3f8] sm:$0xff] %vm186, 0.0
          %434 = vst.msk [vmem:[%s348 + $0x400] sm:$0xff] %vm186, 0.0
          %435 = vst.msk [vmem:[%s348 + $0x408] sm:$0xff] %vm186, 0.0
          %436 = vst.msk [vmem:[%s348 + $0x410] sm:$0xff] %vm186, 0.0
          %437 = vst.msk [vmem:[%s348 + $0x428] sm:$0xff] %vm186, 0.0
          %438 = vst.msk [vmem:[%s348 + $0x430] sm:$0xff] %vm186, 0.0
          %439 = vst.msk [vmem:[%s348 + $0x438] sm:$0xff] %vm186, 0.0
          %440 = vst.msk [vmem:[%s348 + $0x440] sm:$0xff] %vm186, 0.0
          %441 = vst.msk [vmem:[%s348 + $0x458] sm:$0xff] %vm186, 0.0
          %442 = vst.msk [vmem:[%s348 + $0x460] sm:$0xff] %vm186, 0.0
          %443 = vst.msk [vmem:[%s348 + $0x468] sm:$0xff] %vm186, 0.0
          %444 = vst.msk [vmem:[%s348 + $0x470] sm:$0xff] %vm186, 0.0
          %445 = vst.msk [vmem:[%s348 + $0x488] sm:$0xff] %vm186, 0.0
          %446 = vst.msk [vmem:[%s348 + $0x490] sm:$0xff] %vm186, 0.0
          %447 = vst.msk [vmem:[%s348 + $0x498] sm:$0xff] %vm186, 0.0
          %448 = vst.msk [vmem:[%s348 + $0x4a0] sm:$0xff] %vm186, 0.0
          %449 = vst.msk [vmem:[%s348 + $0x4b8] sm:$0xff] %vm186, 0.0
          %450 = vst.msk [vmem:[%s348 + $0x4c0] sm:$0xff] %vm186, 0.0
          %451 = vst.msk [vmem:[%s348 + $0x4c8] sm:$0xff] %vm186, 0.0
          %452 = vst.msk [vmem:[%s348 + $0x4d0] sm:$0xff] %vm186, 0.0
          %453 = vst.msk [vmem:[%s348 + $0x4e8] sm:$0xff] %vm186, 0.0
          %454 = vst.msk [vmem:[%s348 + $0x4f0] sm:$0xff] %vm186, 0.0
          %455 = vst.msk [vmem:[%s348 + $0x4f8] sm:$0xff] %vm186, 0.0
          %456 = vst.msk [vmem:[%s348 + $0x500] sm:$0xff] %vm186, 0.0
          %457 = vst.msk [vmem:[%s348 + $0x518] sm:$0xff] %vm186, 0.0
          %458 = vst.msk [vmem:[%s348 + $0x520] sm:$0xff] %vm186, 0.0
          %459 = vst.msk [vmem:[%s348 + $0x528] sm:$0xff] %vm186, 0.0
          %460 = vst.msk [vmem:[%s348 + $0x530] sm:$0xff] %vm186, 0.0
          %461 = vst.msk [vmem:[%s348 + $0x548] sm:$0xff] %vm186, 0.0
          %462 = vst.msk [vmem:[%s348 + $0x550] sm:$0xff] %vm186, 0.0
          %463 = vst.msk [vmem:[%s348 + $0x558] sm:$0xff] %vm186, 0.0
          %464 = vst.msk [vmem:[%s348 + $0x560] sm:$0xff] %vm186, 0.0
          %465 = vst.msk [vmem:[%s348 + $0x578] sm:$0xff] %vm186, 0.0
          %466 = vst.msk [vmem:[%s348 + $0x580] sm:$0xff] %vm186, 0.0
          %467 = vst.msk [vmem:[%s348 + $0x588] sm:$0xff] %vm186, 0.0
          %468 = vst.msk [vmem:[%s348 + $0x590] sm:$0xff] %vm186, 0.0
          %469 = vst.msk [vmem:[%s348 + $0x5a8] sm:$0xff] %vm186, 0.0
          %470 = vst.msk [vmem:[%s348 + $0x5b0] sm:$0xff] %vm186, 0.0
          %471 = vst.msk [vmem:[%s348 + $0x5b8] sm:$0xff] %vm186, 0.0
          %472 = vst.msk [vmem:[%s348 + $0x5c0] sm:$0xff] %vm186, 0.0
          %473 = vst.msk [vmem:[%s348 + $0x5d8] sm:$0xff] %vm186, 0.0
          %474 = vst.msk [vmem:[%s348 + $0x5e0] sm:$0xff] %vm186, 0.0
          %475 = vst.msk [vmem:[%s348 + $0x5e8] sm:$0xff] %vm186, 0.0
          %476 = vst.msk [vmem:[%s348 + $0x5f0] sm:$0xff] %vm186, 0.0
          %v477 = vld [vmem:[%s180] sm:$0xff]
          %v478 = vld [vmem:[%s180 + $0x8] sm:$0xff]
          %v479 = vld [vmem:[%s180 + $0x10] sm:$0xff]
          %v480 = vld [vmem:[%s180 + $0x18] sm:$0xff]
          %v481 = vld [vmem:[%s180 + $0x20] sm:$0xff]
          %v482 = vld [vmem:[%s180 + $0x28] sm:$0xff]
          %v483 = vld [vmem:[%s180 + $0x30] sm:$0xff]
          %v484 = vld [vmem:[%s180 + $0x38] sm:$0xff]
          %v485 = vld [vmem:[%s180 + $0x40] sm:$0xff]
          %v486 = vld [vmem:[%s180 + $0x48] sm:$0xff]
          %v487 = vld [vmem:[%s180 + $0x50] sm:$0xff]
          %v488 = vld [vmem:[%s180 + $0x58] sm:$0xff]
          %v489 = vld [vmem:[%s180 + $0x60] sm:$0xff]
          %v490 = vld [vmem:[%s180 + $0x68] sm:$0xff]
          %v491 = vld [vmem:[%s180 + $0x70] sm:$0xff]
          %v492 = vld [vmem:[%s180 + $0x78] sm:$0xff]
          %v493 = vld [vmem:[%s180 + $0x80] sm:$0xff]
          %v494 = vld [vmem:[%s180 + $0x88] sm:$0xff]
          %v495 = vld [vmem:[%s180 + $0x90] sm:$0xff]
          %v496 = vld [vmem:[%s180 + $0x98] sm:$0xff]
          %v497 = vld [vmem:[%s180 + $0xa0] sm:$0xff]
          %v498 = vld [vmem:[%s180 + $0xa8] sm:$0xff]
          %v499 = vld [vmem:[%s180 + $0xb0] sm:$0xff]
          %v500 = vld [vmem:[%s180 + $0xb8] sm:$0xff]
          %v501 = vld [vmem:[%s180 + $0xc0] sm:$0xff]
          %v502 = vld [vmem:[%s180 + $0xc8] sm:$0xff]
          %v503 = vld [vmem:[%s180 + $0xd0] sm:$0xff]
          %v504 = vld [vmem:[%s180 + $0xd8] sm:$0xff]
          %v505 = vld [vmem:[%s180 + $0xe0] sm:$0xff]
          %v506 = vld [vmem:[%s180 + $0xe8] sm:$0xff]
          %v507 = vld [vmem:[%s180 + $0xf0] sm:$0xff]
          %v508 = vld [vmem:[%s180 + $0xf8] sm:$0xff]
          %v509 = vld [vmem:[%s180 + $0x100] sm:$0xff]
          %v510 = vld [vmem:[%s180 + $0x108] sm:$0xff]
          %v511 = vld [vmem:[%s180 + $0x110] sm:$0xff]
          %v512 = vld [vmem:[%s180 + $0x118] sm:$0xff]
          %v513 = vld [vmem:[%s180 + $0x120] sm:$0xff]
          %v514 = vld [vmem:[%s180 + $0x128] sm:$0xff]
          %v515 = vld [vmem:[%s180 + $0x130] sm:$0xff]
          %v516 = vld [vmem:[%s180 + $0x138] sm:$0xff]
          %v517 = vld [vmem:[%s180 + $0x140] sm:$0xff]
          %v518 = vld [vmem:[%s180 + $0x148] sm:$0xff]
          %v519 = vld [vmem:[%s180 + $0x150] sm:$0xff]
          %v520 = vld [vmem:[%s180 + $0x158] sm:$0xff]
          %v521 = vld [vmem:[%s180 + $0x160] sm:$0xff]
          %v522 = vld [vmem:[%s180 + $0x168] sm:$0xff]
          %v523 = vld [vmem:[%s180 + $0x170] sm:$0xff]
          %v524 = vld [vmem:[%s180 + $0x178] sm:$0xff]
          %v525 = vld [vmem:[%s180 + $0x180] sm:$0xff]
          %v526 = vld [vmem:[%s180 + $0x188] sm:$0xff]
          %v527 = vld [vmem:[%s180 + $0x190] sm:$0xff]
          %v528 = vld [vmem:[%s180 + $0x198] sm:$0xff]
          %v529 = vld [vmem:[%s180 + $0x1a0] sm:$0xff]
          %v530 = vld [vmem:[%s180 + $0x1a8] sm:$0xff]
          %v531 = vld [vmem:[%s180 + $0x1b0] sm:$0xff]
          %v532 = vld [vmem:[%s180 + $0x1b8] sm:$0xff]
          %v533 = vld [vmem:[%s180 + $0x1c0] sm:$0xff]
          %v534 = vld [vmem:[%s180 + $0x1c8] sm:$0xff]
          %v535 = vld [vmem:[%s180 + $0x1d0] sm:$0xff]
          %v536 = vld [vmem:[%s180 + $0x1d8] sm:$0xff]
          %v537 = vld [vmem:[%s180 + $0x1e0] sm:$0xff]
          %v538 = vld [vmem:[%s180 + $0x1e8] sm:$0xff]
          %v539 = vld [vmem:[%s180 + $0x1f0] sm:$0xff]
          %v540 = vld [vmem:[%s180 + $0x1f8] sm:$0xff]
          %v541 = vld [vmem:[%s180 + $0x200] sm:$0xff]
          %v542 = vld [vmem:[%s180 + $0x208] sm:$0xff]
          %v543 = vld [vmem:[%s180 + $0x210] sm:$0xff]
          %v544 = vld [vmem:[%s180 + $0x218] sm:$0xff]
          %v545 = vld [vmem:[%s180 + $0x220] sm:$0xff]
          %v546 = vld [vmem:[%s180 + $0x228] sm:$0xff]
          %v547 = vld [vmem:[%s180 + $0x230] sm:$0xff]
          %v548 = vld [vmem:[%s180 + $0x238] sm:$0xff]
          %v549 = vld [vmem:[%s180 + $0x240] sm:$0xff]
          %v550 = vld [vmem:[%s180 + $0x248] sm:$0xff]
          %v551 = vld [vmem:[%s180 + $0x250] sm:$0xff]
          %v552 = vld [vmem:[%s180 + $0x258] sm:$0xff]
          %v553 = vld [vmem:[%s180 + $0x260] sm:$0xff]
          %v554 = vld [vmem:[%s180 + $0x268] sm:$0xff]
          %v555 = vld [vmem:[%s180 + $0x270] sm:$0xff]
          %v556 = vld [vmem:[%s180 + $0x278] sm:$0xff]
          %v557 = vld [vmem:[%s180 + $0x280] sm:$0xff]
          %v558 = vld [vmem:[%s180 + $0x288] sm:$0xff]
          %v559 = vld [vmem:[%s180 + $0x290] sm:$0xff]
          %v560 = vld [vmem:[%s180 + $0x298] sm:$0xff]
          %v561 = vld [vmem:[%s180 + $0x2a0] sm:$0xff]
          %v562 = vld [vmem:[%s180 + $0x2a8] sm:$0xff]
          %v563 = vld [vmem:[%s180 + $0x2b0] sm:$0xff]
          %v564 = vld [vmem:[%s180 + $0x2b8] sm:$0xff]
          %v565 = vld [vmem:[%s180 + $0x2c0] sm:$0xff]
          %v566 = vld [vmem:[%s180 + $0x2c8] sm:$0xff]
          %v567 = vld [vmem:[%s180 + $0x2d0] sm:$0xff]
          %v568 = vld [vmem:[%s180 + $0x2d8] sm:$0xff]
          %v569 = vld [vmem:[%s180 + $0x2e0] sm:$0xff]
          %v570 = vld [vmem:[%s180 + $0x2e8] sm:$0xff]
          %v571 = vld [vmem:[%s180 + $0x2f0] sm:$0xff]
          %v572 = vld [vmem:[%s180 + $0x2f8] sm:$0xff]
          %v573 = vld [vmem:[%s180 + $0x300] sm:$0xff]
          %v574 = vld [vmem:[%s180 + $0x308] sm:$0xff]
          %v575 = vld [vmem:[%s180 + $0x310] sm:$0xff]
          %v576 = vld [vmem:[%s180 + $0x318] sm:$0xff]
          %v577 = vld [vmem:[%s180 + $0x320] sm:$0xff]
          %v578 = vld [vmem:[%s180 + $0x328] sm:$0xff]
          %v579 = vld [vmem:[%s180 + $0x330] sm:$0xff]
          %v580 = vld [vmem:[%s180 + $0x338] sm:$0xff]
          %v581 = vld [vmem:[%s180 + $0x340] sm:$0xff]
          %v582 = vld [vmem:[%s180 + $0x348] sm:$0xff]
          %v583 = vld [vmem:[%s180 + $0x350] sm:$0xff]
          %v584 = vld [vmem:[%s180 + $0x358] sm:$0xff]
          %v585 = vld [vmem:[%s180 + $0x360] sm:$0xff]
          %v586 = vld [vmem:[%s180 + $0x368] sm:$0xff]
          %v587 = vld [vmem:[%s180 + $0x370] sm:$0xff]
          %v588 = vld [vmem:[%s180 + $0x378] sm:$0xff]
          %v589 = vld [vmem:[%s180 + $0x380] sm:$0xff]
          %v590 = vld [vmem:[%s180 + $0x388] sm:$0xff]
          %v591 = vld [vmem:[%s180 + $0x390] sm:$0xff]
          %v592 = vld [vmem:[%s180 + $0x398] sm:$0xff]
          %v593 = vld [vmem:[%s180 + $0x3a0] sm:$0xff]
          %v594 = vld [vmem:[%s180 + $0x3a8] sm:$0xff]
          %v595 = vld [vmem:[%s180 + $0x3b0] sm:$0xff]
          %v596 = vld [vmem:[%s180 + $0x3b8] sm:$0xff]
          %v597 = vld [vmem:[%s180 + $0x3c0] sm:$0xff]
          %v598 = vld [vmem:[%s180 + $0x3c8] sm:$0xff]
          %v599 = vld [vmem:[%s180 + $0x3d0] sm:$0xff]
          %v600 = vld [vmem:[%s180 + $0x3d8] sm:$0xff]
          %v601 = vld [vmem:[%s180 + $0x3e0] sm:$0xff]
          %v602 = vld [vmem:[%s180 + $0x3e8] sm:$0xff]
          %v603 = vld [vmem:[%s180 + $0x3f0] sm:$0xff]
          %v604 = vld [vmem:[%s180 + $0x3f8] sm:$0xff]
          %vm605 = vcmask 23552
          %606 = vst.msk [vmem:[%s348 + $0x8] sm:$0xff] %vm605, %v477
          %607 = vst.msk [vmem:[%s348 + $0x10] sm:$0xff] %vm605, %v478
          %608 = vst.msk [vmem:[%s348 + $0x18] sm:$0xff] %vm605, %v479
          %609 = vst.msk [vmem:[%s348 + $0x20] sm:$0xff] %vm605, %v480
          %610 = vst.msk [vmem:[%s348 + $0x38] sm:$0xff] %vm605, %v481
          %611 = vst.msk [vmem:[%s348 + $0x40] sm:$0xff] %vm605, %v482
          %612 = vst.msk [vmem:[%s348 + $0x48] sm:$0xff] %vm605, %v483
          %613 = vst.msk [vmem:[%s348 + $0x50] sm:$0xff] %vm605, %v484
          %614 = vst.msk [vmem:[%s348 + $0x68] sm:$0xff] %vm605, %v485
          %615 = vst.msk [vmem:[%s348 + $0x70] sm:$0xff] %vm605, %v486
          %616 = vst.msk [vmem:[%s348 + $0x78] sm:$0xff] %vm605, %v487
          %617 = vst.msk [vmem:[%s348 + $0x80] sm:$0xff] %vm605, %v488
          %618 = vst.msk [vmem:[%s348 + $0x98] sm:$0xff] %vm605, %v489
          %619 = vst.msk [vmem:[%s348 + $0xa0] sm:$0xff] %vm605, %v490
          %620 = vst.msk [vmem:[%s348 + $0xa8] sm:$0xff] %vm605, %v491
          %621 = vst.msk [vmem:[%s348 + $0xb0] sm:$0xff] %vm605, %v492
          %622 = vst.msk [vmem:[%s348 + $0xc8] sm:$0xff] %vm605, %v493
          %623 = vst.msk [vmem:[%s348 + $0xd0] sm:$0xff] %vm605, %v494
          %624 = vst.msk [vmem:[%s348 + $0xd8] sm:$0xff] %vm605, %v495
          %625 = vst.msk [vmem:[%s348 + $0xe0] sm:$0xff] %vm605, %v496
          %626 = vst.msk [vmem:[%s348 + $0xf8] sm:$0xff] %vm605, %v497
          %627 = vst.msk [vmem:[%s348 + $0x100] sm:$0xff] %vm605, %v498
          %628 = vst.msk [vmem:[%s348 + $0x108] sm:$0xff] %vm605, %v499
          %629 = vst.msk [vmem:[%s348 + $0x110] sm:$0xff] %vm605, %v500
          %630 = vst.msk [vmem:[%s348 + $0x128] sm:$0xff] %vm605, %v501
          %631 = vst.msk [vmem:[%s348 + $0x130] sm:$0xff] %vm605, %v502
          %632 = vst.msk [vmem:[%s348 + $0x138] sm:$0xff] %vm605, %v503
          %633 = vst.msk [vmem:[%s348 + $0x140] sm:$0xff] %vm605, %v504
          %634 = vst.msk [vmem:[%s348 + $0x158] sm:$0xff] %vm605, %v505
          %635 = vst.msk [vmem:[%s348 + $0x160] sm:$0xff] %vm605, %v506
          %636 = vst.msk [vmem:[%s348 + $0x168] sm:$0xff] %vm605, %v507
          %637 = vst.msk [vmem:[%s348 + $0x170] sm:$0xff] %vm605, %v508
          %638 = vst.msk [vmem:[%s348 + $0x188] sm:$0xff] %vm605, %v509
          %639 = vst.msk [vmem:[%s348 + $0x190] sm:$0xff] %vm605, %v510
          %640 = vst.msk [vmem:[%s348 + $0x198] sm:$0xff] %vm605, %v511
          %641 = vst.msk [vmem:[%s348 + $0x1a0] sm:$0xff] %vm605, %v512
          %642 = vst.msk [vmem:[%s348 + $0x1b8] sm:$0xff] %vm605, %v513
          %643 = vst.msk [vmem:[%s348 + $0x1c0] sm:$0xff] %vm605, %v514
          %644 = vst.msk [vmem:[%s348 + $0x1c8] sm:$0xff] %vm605, %v515
          %645 = vst.msk [vmem:[%s348 + $0x1d0] sm:$0xff] %vm605, %v516
          %646 = vst.msk [vmem:[%s348 + $0x1e8] sm:$0xff] %vm605, %v517
          %647 = vst.msk [vmem:[%s348 + $0x1f0] sm:$0xff] %vm605, %v518
          %648 = vst.msk [vmem:[%s348 + $0x1f8] sm:$0xff] %vm605, %v519
          %649 = vst.msk [vmem:[%s348 + $0x200] sm:$0xff] %vm605, %v520
          %650 = vst.msk [vmem:[%s348 + $0x218] sm:$0xff] %vm605, %v521
          %651 = vst.msk [vmem:[%s348 + $0x220] sm:$0xff] %vm605, %v522
          %652 = vst.msk [vmem:[%s348 + $0x228] sm:$0xff] %vm605, %v523
          %653 = vst.msk [vmem:[%s348 + $0x230] sm:$0xff] %vm605, %v524
          %654 = vst.msk [vmem:[%s348 + $0x248] sm:$0xff] %vm605, %v525
          %655 = vst.msk [vmem:[%s348 + $0x250] sm:$0xff] %vm605, %v526
          %656 = vst.msk [vmem:[%s348 + $0x258] sm:$0xff] %vm605, %v527
          %657 = vst.msk [vmem:[%s348 + $0x260] sm:$0xff] %vm605, %v528
          %658 = vst.msk [vmem:[%s348 + $0x278] sm:$0xff] %vm605, %v529
          %659 = vst.msk [vmem:[%s348 + $0x280] sm:$0xff] %vm605, %v530
          %660 = vst.msk [vmem:[%s348 + $0x288] sm:$0xff] %vm605, %v531
          %661 = vst.msk [vmem:[%s348 + $0x290] sm:$0xff] %vm605, %v532
          %662 = vst.msk [vmem:[%s348 + $0x2a8] sm:$0xff] %vm605, %v533
          %663 = vst.msk [vmem:[%s348 + $0x2b0] sm:$0xff] %vm605, %v534
          %664 = vst.msk [vmem:[%s348 + $0x2b8] sm:$0xff] %vm605, %v535
          %665 = vst.msk [vmem:[%s348 + $0x2c0] sm:$0xff] %vm605, %v536
          %666 = vst.msk [vmem:[%s348 + $0x2d8] sm:$0xff] %vm605, %v537
          %667 = vst.msk [vmem:[%s348 + $0x2e0] sm:$0xff] %vm605, %v538
          %668 = vst.msk [vmem:[%s348 + $0x2e8] sm:$0xff] %vm605, %v539
          %669 = vst.msk [vmem:[%s348 + $0x2f0] sm:$0xff] %vm605, %v540
          %670 = vst.msk [vmem:[%s348 + $0x308] sm:$0xff] %vm605, %v541
          %671 = vst.msk [vmem:[%s348 + $0x310] sm:$0xff] %vm605, %v542
          %672 = vst.msk [vmem:[%s348 + $0x318] sm:$0xff] %vm605, %v543
          %673 = vst.msk [vmem:[%s348 + $0x320] sm:$0xff] %vm605, %v544
          %674 = vst.msk [vmem:[%s348 + $0x338] sm:$0xff] %vm605, %v545
          %675 = vst.msk [vmem:[%s348 + $0x340] sm:$0xff] %vm605, %v546
          %676 = vst.msk [vmem:[%s348 + $0x348] sm:$0xff] %vm605, %v547
          %677 = vst.msk [vmem:[%s348 + $0x350] sm:$0xff] %vm605, %v548
          %678 = vst.msk [vmem:[%s348 + $0x368] sm:$0xff] %vm605, %v549
          %679 = vst.msk [vmem:[%s348 + $0x370] sm:$0xff] %vm605, %v550
          %680 = vst.msk [vmem:[%s348 + $0x378] sm:$0xff] %vm605, %v551
          %681 = vst.msk [vmem:[%s348 + $0x380] sm:$0xff] %vm605, %v552
          %682 = vst.msk [vmem:[%s348 + $0x398] sm:$0xff] %vm605, %v553
          %683 = vst.msk [vmem:[%s348 + $0x3a0] sm:$0xff] %vm605, %v554
          %684 = vst.msk [vmem:[%s348 + $0x3a8] sm:$0xff] %vm605, %v555
          %685 = vst.msk [vmem:[%s348 + $0x3b0] sm:$0xff] %vm605, %v556
          %686 = vst.msk [vmem:[%s348 + $0x3c8] sm:$0xff] %vm605, %v557
          %687 = vst.msk [vmem:[%s348 + $0x3d0] sm:$0xff] %vm605, %v558
          %688 = vst.msk [vmem:[%s348 + $0x3d8] sm:$0xff] %vm605, %v559
          %689 = vst.msk [vmem:[%s348 + $0x3e0] sm:$0xff] %vm605, %v560
          %690 = vst.msk [vmem:[%s348 + $0x3f8] sm:$0xff] %vm605, %v561
          %691 = vst.msk [vmem:[%s348 + $0x400] sm:$0xff] %vm605, %v562
          %692 = vst.msk [vmem:[%s348 + $0x408] sm:$0xff] %vm605, %v563
          %693 = vst.msk [vmem:[%s348 + $0x410] sm:$0xff] %vm605, %v564
          %694 = vst.msk [vmem:[%s348 + $0x428] sm:$0xff] %vm605, %v565
          %695 = vst.msk [vmem:[%s348 + $0x430] sm:$0xff] %vm605, %v566
          %696 = vst.msk [vmem:[%s348 + $0x438] sm:$0xff] %vm605, %v567
          %697 = vst.msk [vmem:[%s348 + $0x440] sm:$0xff] %vm605, %v568
          %698 = vst.msk [vmem:[%s348 + $0x458] sm:$0xff] %vm605, %v569
          %699 = vst.msk [vmem:[%s348 + $0x460] sm:$0xff] %vm605, %v570
          %700 = vst.msk [vmem:[%s348 + $0x468] sm:$0xff] %vm605, %v571
          %701 = vst.msk [vmem:[%s348 + $0x470] sm:$0xff] %vm605, %v572
          %702 = vst.msk [vmem:[%s348 + $0x488] sm:$0xff] %vm605, %v573
          %703 = vst.msk [vmem:[%s348 + $0x490] sm:$0xff] %vm605, %v574
          %704 = vst.msk [vmem:[%s348 + $0x498] sm:$0xff] %vm605, %v575
          %705 = vst.msk [vmem:[%s348 + $0x4a0] sm:$0xff] %vm605, %v576
          %706 = vst.msk [vmem:[%s348 + $0x4b8] sm:$0xff] %vm605, %v577
          %707 = vst.msk [vmem:[%s348 + $0x4c0] sm:$0xff] %vm605, %v578
          %708 = vst.msk [vmem:[%s348 + $0x4c8] sm:$0xff] %vm605, %v579
          %709 = vst.msk [vmem:[%s348 + $0x4d0] sm:$0xff] %vm605, %v580
          %710 = vst.msk [vmem:[%s348 + $0x4e8] sm:$0xff] %vm605, %v581
          %711 = vst.msk [vmem:[%s348 + $0x4f0] sm:$0xff] %vm605, %v582
          %712 = vst.msk [vmem:[%s348 + $0x4f8] sm:$0xff] %vm605, %v583
          %713 = vst.msk [vmem:[%s348 + $0x500] sm:$0xff] %vm605, %v584
          %714 = vst.msk [vmem:[%s348 + $0x518] sm:$0xff] %vm605, %v585
          %715 = vst.msk [vmem:[%s348 + $0x520] sm:$0xff] %vm605, %v586
          %716 = vst.msk [vmem:[%s348 + $0x528] sm:$0xff] %vm605, %v587
          %717 = vst.msk [vmem:[%s348 + $0x530] sm:$0xff] %vm605, %v588
          %718 = vst.msk [vmem:[%s348 + $0x548] sm:$0xff] %vm605, %v589
          %719 = vst.msk [vmem:[%s348 + $0x550] sm:$0xff] %vm605, %v590
          %720 = vst.msk [vmem:[%s348 + $0x558] sm:$0xff] %vm605, %v591
          %721 = vst.msk [vmem:[%s348 + $0x560] sm:$0xff] %vm605, %v592
          %722 = vst.msk [vmem:[%s348 + $0x578] sm:$0xff] %vm605, %v593
          %723 = vst.msk [vmem:[%s348 + $0x580] sm:$0xff] %vm605, %v594
          %724 = vst.msk [vmem:[%s348 + $0x588] sm:$0xff] %vm605, %v595
          %725 = vst.msk [vmem:[%s348 + $0x590] sm:$0xff] %vm605, %v596
          %726 = vst.msk [vmem:[%s348 + $0x5a8] sm:$0xff] %vm605, %v597
          %727 = vst.msk [vmem:[%s348 + $0x5b0] sm:$0xff] %vm605, %v598
          %728 = vst.msk [vmem:[%s348 + $0x5b8] sm:$0xff] %vm605, %v599
          %729 = vst.msk [vmem:[%s348 + $0x5c0] sm:$0xff] %vm605, %v600
          %730 = vst.msk [vmem:[%s348 + $0x5d8] sm:$0xff] %vm605, %v601
          %731 = vst.msk [vmem:[%s348 + $0x5e0] sm:$0xff] %vm605, %v602
          %732 = vst.msk [vmem:[%s348 + $0x5e8] sm:$0xff] %vm605, %v603
          %733 = vst.msk [vmem:[%s348 + $0x5f0] sm:$0xff] %vm605, %v604
        $region36: #{tpu_custom_call.1} parent=31 // pred_fallthru
          _
        %p734 = scmp.lt.s32.totalorder %s22, 0
        %s735 = ssub.s32 0, %s22
        %s736 = scalar_select %p734, %s735, %s22
        %s737 = sand.u32 %s736, 1
        %s738 = ssub.s32 0, %s737
        %s739 = scalar_select %p734, %s738, %s737
        %p740 = scmp.ne.s32.totalorder %s739, 0
        %p741 = scmp.lt.s32.totalorder %s739, 0
        %p742 = pnand %p741, %p740
        %p743 = pneg %p742
        %s744 = sadd.s32 %s739, 2
        %s745 = scalar_select %p743, %s744, %s739
        %s746 = ssub.s32 1, %s745
        %s747 = scalar_lea.vmem %s2, %s22
        %v748 = vld [vmem:[%s747] sm:$0x1]
        loop: start=0, step=1, limit=4
        $region37: #{tpu_custom_call.1} parent=31 // loop_pre_header
          _
        $region38: #{tpu_custom_call.1} parent=31 // loop_header
          %s750 = sphi 0, %s754
          %p751 = scmp.ge.s32.totalorder %s750, 4
        $region39: #{tpu_custom_call.1} parent=31 // loop_header_branch
          %753 = sbr.rel (%p751) target = $region43
        $region40: #{tpu_custom_call.1} parent=31 // loop_body
          %s755 = smul.u32 %s750, 8
          %s756 = smul.u32 %s755, 48
          %s757 = smul.u32 %s745, 1632
          %s758 = sadd.s32 %s756, %s757
          %s759 = scalar_lea.vmem [#allocation2], %s758
          %v760 = vld [vmem:[%s759 + $0x7] sm:$0xff]
          %v761 = vld [vmem:[%s759 + $0xf] sm:$0xff]
          %v762 = vld [vmem:[%s759 + $0x17] sm:$0xff]
          %v763 = vld [vmem:[%s759 + $0x1f] sm:$0xff]
          %v764 = vld [vmem:[%s759 + $0x37] sm:$0xff]
          %v765 = vld [vmem:[%s759 + $0x3f] sm:$0xff]
          %v766 = vld [vmem:[%s759 + $0x47] sm:$0xff]
          %v767 = vld [vmem:[%s759 + $0x4f] sm:$0xff]
          %v768 = vld [vmem:[%s759 + $0x67] sm:$0xff]
          %v769 = vld [vmem:[%s759 + $0x6f] sm:$0xff]
          %v770 = vld [vmem:[%s759 + $0x77] sm:$0xff]
          %v771 = vld [vmem:[%s759 + $0x7f] sm:$0xff]
          %v772 = vld [vmem:[%s759 + $0x97] sm:$0xff]
          %v773 = vld [vmem:[%s759 + $0x9f] sm:$0xff]
          %v774 = vld [vmem:[%s759 + $0xa7] sm:$0xff]
          %v775 = vld [vmem:[%s759 + $0xaf] sm:$0xff]
          %v776 = vld [vmem:[%s759 + $0xc7] sm:$0xff]
          %v777 = vld [vmem:[%s759 + $0xcf] sm:$0xff]
          %v778 = vld [vmem:[%s759 + $0xd7] sm:$0xff]
          %v779 = vld [vmem:[%s759 + $0xdf] sm:$0xff]
          %v780 = vld [vmem:[%s759 + $0xf7] sm:$0xff]
          %v781 = vld [vmem:[%s759 + $0xff] sm:$0xff]
          %v782 = vld [vmem:[%s759 + $0x107] sm:$0xff]
          %v783 = vld [vmem:[%s759 + $0x10f] sm:$0xff]
          %v784 = vld [vmem:[%s759 + $0x127] sm:$0xff]
          %v785 = vld [vmem:[%s759 + $0x12f] sm:$0xff]
          %v786 = vld [vmem:[%s759 + $0x137] sm:$0xff]
          %v787 = vld [vmem:[%s759 + $0x13f] sm:$0xff]
          %v788 = vld [vmem:[%s759 + $0x157] sm:$0xff]
          %v789 = vld [vmem:[%s759 + $0x15f] sm:$0xff]
          %v790 = vld [vmem:[%s759 + $0x167] sm:$0xff]
          %v791 = vld [vmem:[%s759 + $0x16f] sm:$0xff]
          %v792 = vpack.c.bf16 %v761, %v760
          %v793 = vpack.c.bf16 %v763, %v762
          %v794 = vpack.c.bf16 %v765, %v764
          %v795 = vpack.c.bf16 %v767, %v766
          %v796 = vpack.c.bf16 %v769, %v768
          %v797 = vpack.c.bf16 %v771, %v770
          %v798 = vpack.c.bf16 %v773, %v772
          %v799 = vpack.c.bf16 %v775, %v774
          %v800 = vpack.c.bf16 %v777, %v776
          %v801 = vpack.c.bf16 %v779, %v778
          %v802 = vpack.c.bf16 %v781, %v780
          %v803 = vpack.c.bf16 %v783, %v782
          %v804 = vpack.c.bf16 %v785, %v784
          %v805 = vpack.c.bf16 %v787, %v786
          %v806 = vpack.c.bf16 %v789, %v788
          %v807 = vpack.c.bf16 %v791, %v790
          %s808 = smul.u32 %s22, 72
          %s809 = smul.addr %s808, 4
          %s810 = scalar_lea.vmem %s1, %s809
          %v811 = vld [vmem:[%s810] sm:$0xf]
          %v812 = vld [vmem:[%s810 + $0x4] sm:$0xf]
          %v813 = vld [vmem:[%s810 + $0x8] sm:$0xf]
          %v814 = vld [vmem:[%s810 + $0xc] sm:$0xf]
          %v815 = vld [vmem:[%s810 + $0x10] sm:$0xf]
          %v816 = vld [vmem:[%s810 + $0x14] sm:$0xf]
          %v817 = vld [vmem:[%s810 + $0x18] sm:$0xf]
          %v818 = vld [vmem:[%s810 + $0x1c] sm:$0xf]
          %v819 = vld [vmem:[%s759 + $0x8] sm:$0xff]
          %v820 = vld [vmem:[%s759 + $0x10] sm:$0xff]
          %v821 = vld [vmem:[%s759 + $0x18] sm:$0xff]
          %v822 = vld [vmem:[%s759 + $0x20] sm:$0xff]
          %v823 = vld [vmem:[%s759 + $0x38] sm:$0xff]
          %v824 = vld [vmem:[%s759 + $0x40] sm:$0xff]
          %v825 = vld [vmem:[%s759 + $0x48] sm:$0xff]
          %v826 = vld [vmem:[%s759 + $0x50] sm:$0xff]
          %v827 = vld [vmem:[%s759 + $0x68] sm:$0xff]
          %v828 = vld [vmem:[%s759 + $0x70] sm:$0xff]
          %v829 = vld [vmem:[%s759 + $0x78] sm:$0xff]
          %v830 = vld [vmem:[%s759 + $0x80] sm:$0xff]
          %v831 = vld [vmem:[%s759 + $0x98] sm:$0xff]
          %v832 = vld [vmem:[%s759 + $0xa0] sm:$0xff]
          %v833 = vld [vmem:[%s759 + $0xa8] sm:$0xff]
          %v834 = vld [vmem:[%s759 + $0xb0] sm:$0xff]
          %v835 = vld [vmem:[%s759 + $0xc8] sm:$0xff]
          %v836 = vld [vmem:[%s759 + $0xd0] sm:$0xff]
          %v837 = vld [vmem:[%s759 + $0xd8] sm:$0xff]
          %v838 = vld [vmem:[%s759 + $0xe0] sm:$0xff]
          %v839 = vld [vmem:[%s759 + $0xf8] sm:$0xff]
          %v840 = vld [vmem:[%s759 + $0x100] sm:$0xff]
          %v841 = vld [vmem:[%s759 + $0x108] sm:$0xff]
          %v842 = vld [vmem:[%s759 + $0x110] sm:$0xff]
          %v843 = vld [vmem:[%s759 + $0x128] sm:$0xff]
          %v844 = vld [vmem:[%s759 + $0x130] sm:$0xff]
          %v845 = vld [vmem:[%s759 + $0x138] sm:$0xff]
          %v846 = vld [vmem:[%s759 + $0x140] sm:$0xff]
          %v847 = vld [vmem:[%s759 + $0x158] sm:$0xff]
          %v848 = vld [vmem:[%s759 + $0x160] sm:$0xff]
          %v849 = vld [vmem:[%s759 + $0x168] sm:$0xff]
          %v850 = vld [vmem:[%s759 + $0x170] sm:$0xff]
          %v851 = vpack.c.bf16 %v820, %v819
          %v852 = vpack.c.bf16 %v822, %v821
          %v853 = vpack.c.bf16 %v824, %v823
          %v854 = vpack.c.bf16 %v826, %v825
          %v855 = vpack.c.bf16 %v828, %v827
          %v856 = vpack.c.bf16 %v830, %v829
          %v857 = vpack.c.bf16 %v832, %v831
          %v858 = vpack.c.bf16 %v834, %v833
          %v859 = vpack.c.bf16 %v836, %v835
          %v860 = vpack.c.bf16 %v838, %v837
          %v861 = vpack.c.bf16 %v840, %v839
          %v862 = vpack.c.bf16 %v842, %v841
          %v863 = vpack.c.bf16 %v844, %v843
          %v864 = vpack.c.bf16 %v846, %v845
          %v865 = vpack.c.bf16 %v848, %v847
          %v866 = vpack.c.bf16 %v850, %v849
          %s867 = sadd.s32 8, %s808
          %s868 = smul.addr %s867, 4
          %s869 = scalar_lea.vmem %s1, %s868
          %v870 = vld [vmem:[%s869] sm:$0xf]
          %v871 = vld [vmem:[%s869 + $0x4] sm:$0xf]
          %v872 = vld [vmem:[%s869 + $0x8] sm:$0xf]
          %v873 = vld [vmem:[%s869 + $0xc] sm:$0xf]
          %v874 = vld [vmem:[%s869 + $0x10] sm:$0xf]
          %v875 = vld [vmem:[%s869 + $0x14] sm:$0xf]
          %v876 = vld [vmem:[%s869 + $0x18] sm:$0xf]
          %v877 = vld [vmem:[%s869 + $0x1c] sm:$0xf]
          %v886 = vunpack.c.l.b16 %v870
          %v887 = vunpack.c.l.b16 %v871
          %v888 = vunpack.c.l.b16 %v872
          %v889 = vunpack.c.l.b16 %v873
          %v890 = vunpack.c.l.b16 %v874
          %v891 = vunpack.c.l.b16 %v875
          %v892 = vunpack.c.l.b16 %v876
          %v893 = vunpack.c.l.b16 %v877
          %v894 = vpack.c.b16 %v887, %v886
          %v895 = vpack.c.b16 %v889, %v888
          %v896 = vpack.c.b16 %v891, %v890
          %v897 = vpack.c.b16 %v893, %v892
          %vm902 = vcmask 523264
          %v904 = vsel %vm902, %v851, 0
          %v907 = vsel %vm902, %v852, 0
          %v910 = vsel %vm902, %v853, 0
          %v913 = vsel %vm902, %v854, 0
          %v916 = vsel %vm902, %v855, 0
          %v919 = vsel %vm902, %v856, 0
          %v922 = vsel %vm902, %v857, 0
          %v925 = vsel %vm902, %v858, 0
          %v928 = vsel %vm902, %v859, 0
          %v931 = vsel %vm902, %v860, 0
          %v934 = vsel %vm902, %v861, 0
          %v937 = vsel %vm902, %v862, 0
          %v940 = vsel %vm902, %v863, 0
          %v943 = vsel %vm902, %v864, 0
          %v946 = vsel %vm902, %v865, 0
          %v949 = vsel %vm902, %v866, 0
          %951 = vmatprep.subr.bf16.mxu0 0
          %952 = vmatpush1.bf16.msra.mxu0 %v894
          %953 = vmatprep.subr.bf16.mxu0 0
          %954 = vmatpush1.bf16.msra.mxu0 %v895
          %955 = vmatprep.subr.bf16.mxu0 0
          %956 = vmatpush1.bf16.msra.mxu0 %v896
          %957 = vmatprep.subr.bf16.mxu0 0
          %958 = vmatpush1.bf16.msra.mxu0 %v897
          %959 = vmatprep.subr.bf16.mxu0 0
          %960 = vmatpush1.bf16.msra.mxu0 0
          %961 = vmatprep.subr.bf16.mxu0 0
          %962 = vmatpush1.bf16.msra.mxu0 0
          %963 = vmatprep.subr.bf16.mxu0 0
          %964 = vmatpush1.bf16.msra.mxu0 0
          %965 = vmatprep.subr.bf16.mxu0 0
          %966 = vmatpush1.bf16.msra.mxu0 0
          %967 = vmatprep.subr.bf16.mxu0 0
          %968 = vmatpush1.bf16.msra.mxu0 0
          %969 = vmatprep.subr.bf16.mxu0 0
          %970 = vmatpush1.bf16.msra.mxu0 0
          %971 = vmatprep.subr.bf16.mxu0 0
          %972 = vmatpush1.bf16.msra.mxu0 0
          %973 = vmatprep.subr.bf16.mxu0 0
          %974 = vmatpush1.bf16.msra.mxu0 0
          %975 = vmatprep.subr.bf16.mxu0 0
          %976 = vmatpush1.bf16.msra.mxu0 0
          %977 = vmatprep.subr.bf16.mxu0 0
          %978 = vmatpush1.bf16.msra.mxu0 0
          %979 = vmatprep.subr.bf16.mxu0 0
          %980 = vmatpush1.bf16.msra.mxu0 0
          %981 = vmatprep.subr.bf16.mxu0 0
          %982 = vmatpush1.bf16.msra.mxu0 0
          %983 = vmatprep.mubr.bf16.mxu0 0
          %984 = vmatmul.mubr.bf16.gmra.mrb[0].mxu0 %v904
          %v985 = vpop.f32.mrb[0].mxu0
          %v986 = vadd.f32 0.0, %v985
          %v987 = vpop.f32.mrb[0].mxu0
          %v988 = vpop.f32.mrb[0].mxu0
          %v989 = vadd.f32 0.0, %v988
          %v990 = vpop.f32.mrb[0].mxu0
          %991 = vmatprep.mubr.bf16.mxu0 0
          %992 = vmatmul.mubr.bf16.gmra.mrb[0].mxu0 %v907
          %v993 = vpop.f32.mrb[0].mxu0
          %v994 = vadd.f32 0.0, %v993
          %v995 = vpop.f32.mrb[0].mxu0
          %v996 = vpop.f32.mrb[0].mxu0
          %v997 = vadd.f32 0.0, %v996
          %v998 = vpop.f32.mrb[0].mxu0
          %999 = vmatprep.mubr.bf16.mxu0 0
          %1000 = vmatmul.mubr.bf16.gmra.mrb[0].mxu0 %v910
          %v1001 = vpop.f32.mrb[0].mxu0
          %v1002 = vadd.f32 0.0, %v1001
          %v1003 = vpop.f32.mrb[0].mxu0
          %v1004 = vpop.f32.mrb[0].mxu0
          %v1005 = vadd.f32 0.0, %v1004
          %v1006 = vpop.f32.mrb[0].mxu0
          %1007 = vmatprep.mubr.bf16.mxu0 0
          %1008 = vmatmul.mubr.bf16.gmra.mrb[0].mxu0 %v913
          %v1009 = vpop.f32.mrb[0].mxu0
          %v1010 = vadd.f32 0.0, %v1009
          %v1011 = vpop.f32.mrb[0].mxu0
          %v1012 = vpop.f32.mrb[0].mxu0
          %v1013 = vadd.f32 0.0, %v1012
          %v1014 = vpop.f32.mrb[0].mxu0
          %1015 = vmatprep.mubr.bf16.mxu0 0
          %1016 = vmatmul.mubr.bf16.gmra.mrb[0].mxu0 %v916
          %v1017 = vpop.f32.mrb[0].mxu0
          %v1018 = vadd.f32 0.0, %v1017
          %v1019 = vpop.f32.mrb[0].mxu0
          %v1020 = vpop.f32.mrb[0].mxu0
          %v1021 = vadd.f32 0.0, %v1020
          %v1022 = vpop.f32.mrb[0].mxu0
          %1023 = vmatprep.mubr.bf16.mxu0 0
          %1024 = vmatmul.mubr.bf16.gmra.mrb[0].mxu0 %v919
          %v1025 = vpop.f32.mrb[0].mxu0
          %v1026 = vadd.f32 0.0, %v1025
          %v1027 = vpop.f32.mrb[0].mxu0
          %v1028 = vpop.f32.mrb[0].mxu0
          %v1029 = vadd.f32 0.0, %v1028
          %v1030 = vpop.f32.mrb[0].mxu0
          %1031 = vmatprep.mubr.bf16.mxu0 0
          %1032 = vmatmul.mubr.bf16.gmra.mrb[0].mxu0 %v922
          %v1033 = vpop.f32.mrb[0].mxu0
          %v1034 = vadd.f32 0.0, %v1033
          %v1035 = vpop.f32.mrb[0].mxu0
          %v1036 = vpop.f32.mrb[0].mxu0
          %v1037 = vadd.f32 0.0, %v1036
          %v1038 = vpop.f32.mrb[0].mxu0
          %1039 = vmatprep.mubr.bf16.mxu0 0
          %1040 = vmatmul.mubr.bf16.gmra.mrb[0].mxu0 %v925
          %v1041 = vpop.f32.mrb[0].mxu0
          %v1042 = vadd.f32 0.0, %v1041
          %v1043 = vpop.f32.mrb[0].mxu0
          %v1044 = vpop.f32.mrb[0].mxu0
          %v1045 = vadd.f32 0.0, %v1044
          %v1046 = vpop.f32.mrb[0].mxu0
          %1047 = vmatprep.mubr.bf16.mxu0 0
          %1048 = vmatmul.mubr.bf16.gmra.mrb[0].mxu0 %v928
          %v1049 = vpop.f32.mrb[0].mxu0
          %v1050 = vadd.f32 0.0, %v1049
          %v1051 = vpop.f32.mrb[0].mxu0
          %v1052 = vpop.f32.mrb[0].mxu0
          %v1053 = vadd.f32 0.0, %v1052
          %v1054 = vpop.f32.mrb[0].mxu0
          %1055 = vmatprep.mubr.bf16.mxu0 0
          %1056 = vmatmul.mubr.bf16.gmra.mrb[0].mxu0 %v931
          %v1057 = vpop.f32.mrb[0].mxu0
          %v1058 = vadd.f32 0.0, %v1057
          %v1059 = vpop.f32.mrb[0].mxu0
          %v1060 = vpop.f32.mrb[0].mxu0
          %v1061 = vadd.f32 0.0, %v1060
          %v1062 = vpop.f32.mrb[0].mxu0
          %1063 = vmatprep.mubr.bf16.mxu0 0
          %1064 = vmatmul.mubr.bf16.gmra.mrb[0].mxu0 %v934
          %v1065 = vpop.f32.mrb[0].mxu0
          %v1066 = vadd.f32 0.0, %v1065
          %v1067 = vpop.f32.mrb[0].mxu0
          %v1068 = vpop.f32.mrb[0].mxu0
          %v1069 = vadd.f32 0.0, %v1068
          %v1070 = vpop.f32.mrb[0].mxu0
          %1071 = vmatprep.mubr.bf16.mxu0 0
          %1072 = vmatmul.mubr.bf16.gmra.mrb[0].mxu0 %v937
          %v1073 = vpop.f32.mrb[0].mxu0
          %v1074 = vadd.f32 0.0, %v1073
          %v1075 = vpop.f32.mrb[0].mxu0
          %v1076 = vpop.f32.mrb[0].mxu0
          %v1077 = vadd.f32 0.0, %v1076
          %v1078 = vpop.f32.mrb[0].mxu0
          %1079 = vmatprep.mubr.bf16.mxu0 0
          %1080 = vmatmul.mubr.bf16.gmra.mrb[0].mxu0 %v940
          %v1081 = vpop.f32.mrb[0].mxu0
          %v1082 = vadd.f32 0.0, %v1081
          %v1083 = vpop.f32.mrb[0].mxu0
          %v1084 = vpop.f32.mrb[0].mxu0
          %v1085 = vadd.f32 0.0, %v1084
          %v1086 = vpop.f32.mrb[0].mxu0
          %1087 = vmatprep.mubr.bf16.mxu0 0
          %1088 = vmatmul.mubr.bf16.gmra.mrb[0].mxu0 %v943
          %v1089 = vpop.f32.mrb[0].mxu0
          %v1090 = vadd.f32 0.0, %v1089
          %v1091 = vpop.f32.mrb[0].mxu0
          %v1092 = vpop.f32.mrb[0].mxu0
          %v1093 = vadd.f32 0.0, %v1092
          %v1094 = vpop.f32.mrb[0].mxu0
          %1095 = vmatprep.mubr.bf16.mxu0 0
          %1096 = vmatmul.mubr.bf16.gmra.mrb[0].mxu0 %v946
          %v1097 = vpop.f32.mrb[0].mxu0
          %v1098 = vadd.f32 0.0, %v1097
          %v1099 = vpop.f32.mrb[0].mxu0
          %v1100 = vpop.f32.mrb[0].mxu0
          %v1101 = vadd.f32 0.0, %v1100
          %v1102 = vpop.f32.mrb[0].mxu0
          %1103 = vmatprep.mubr.bf16.mxu0 0
          %1104 = vmatmul.mubr.bf16.gmra.mrb[0].mxu0 %v949
          %v1105 = vpop.f32.mrb[0].mxu0
          %v1106 = vadd.f32 0.0, %v1105
          %v1107 = vpop.f32.mrb[0].mxu0
          %v1108 = vpop.f32.mrb[0].mxu0
          %v1109 = vadd.f32 0.0, %v1108
          %v1110 = vpop.f32.mrb[0].mxu0
          %1111 = vdwg.mxu0
          %v1120 = vunpack.c.l.b16 %v811
          %v1121 = vunpack.c.l.b16 %v812
          %v1122 = vunpack.c.l.b16 %v813
          %v1123 = vunpack.c.l.b16 %v814
          %v1124 = vunpack.c.l.b16 %v815
          %v1125 = vunpack.c.l.b16 %v816
          %v1126 = vunpack.c.l.b16 %v817
          %v1127 = vunpack.c.l.b16 %v818
          %v1128 = vpack.c.b16 %v1121, %v1120
          %v1129 = vpack.c.b16 %v1123, %v1122
          %v1130 = vpack.c.b16 %v1125, %v1124
          %v1131 = vpack.c.b16 %v1127, %v1126
          %v1137 = vsel %vm902, %v792, 0
          %v1140 = vsel %vm902, %v793, 0
          %v1143 = vsel %vm902, %v794, 0
          %v1146 = vsel %vm902, %v795, 0
          %v1149 = vsel %vm902, %v796, 0
          %v1152 = vsel %vm902, %v797, 0
          %v1155 = vsel %vm902, %v798, 0
          %v1158 = vsel %vm902, %v799, 0
          %v1161 = vsel %vm902, %v800, 0
          %v1164 = vsel %vm902, %v801, 0
          %v1167 = vsel %vm902, %v802, 0
          %v1170 = vsel %vm902, %v803, 0
          %v1173 = vsel %vm902, %v804, 0
          %v1176 = vsel %vm902, %v805, 0
          %v1179 = vsel %vm902, %v806, 0
          %v1182 = vsel %vm902, %v807, 0
          %1184 = vmatprep.subr.bf16.mxu0 0
          %1185 = vmatpush1.bf16.msra.mxu0 %v1128
          %1186 = vmatprep.subr.bf16.mxu0 0
          %1187 = vmatpush1.bf16.msra.mxu0 %v1129
          %1188 = vmatprep.subr.bf16.mxu0 0
          %1189 = vmatpush1.bf16.msra.mxu0 %v1130
          %1190 = vmatprep.subr.bf16.mxu0 0
          %1191 = vmatpush1.bf16.msra.mxu0 %v1131
          %1192 = vmatprep.subr.bf16.mxu0 0
          %1193 = vmatpush1.bf16.msra.mxu0 0
          %1194 = vmatprep.subr.bf16.mxu0 0
          %1195 = vmatpush1.bf16.msra.mxu0 0
          %1196 = vmatprep.subr.bf16.mxu0 0
          %1197 = vmatpush1.bf16.msra.mxu0 0
          %1198 = vmatprep.subr.bf16.mxu0 0
          %1199 = vmatpush1.bf16.msra.mxu0 0
          %1200 = vmatprep.subr.bf16.mxu0 0
          %1201 = vmatpush1.bf16.msra.mxu0 0
          %1202 = vmatprep.subr.bf16.mxu0 0
          %1203 = vmatpush1.bf16.msra.mxu0 0
          %1204 = vmatprep.subr.bf16.mxu0 0
          %1205 = vmatpush1.bf16.msra.mxu0 0
          %1206 = vmatprep.subr.bf16.mxu0 0
          %1207 = vmatpush1.bf16.msra.mxu0 0
          %1208 = vmatprep.subr.bf16.mxu0 0
          %1209 = vmatpush1.bf16.msra.mxu0 0
          %1210 = vmatprep.subr.bf16.mxu0 0
          %1211 = vmatpush1.bf16.msra.mxu0 0
          %1212 = vmatprep.subr.bf16.mxu0 0
          %1213 = vmatpush1.bf16.msra.mxu0 0
          %1214 = vmatprep.subr.bf16.mxu0 0
          %1215 = vmatpush1.bf16.msra.mxu0 0
          %1216 = vmatprep.mubr.bf16.mxu0 0
          %1217 = vmatmul.mubr.bf16.gmra.mrb[0].mxu0 %v1137
          %v1218 = vpop.f32.mrb[0].mxu0
          %v1219 = vadd.f32 %v986, %v1218
          %v1220 = vpop.f32.mrb[0].mxu0
          %v1221 = vpop.f32.mrb[0].mxu0
          %v1222 = vadd.f32 %v989, %v1221
          %v1223 = vpop.f32.mrb[0].mxu0
          %1224 = vmatprep.mubr.bf16.mxu0 0
          %1225 = vmatmul.mubr.bf16.gmra.mrb[0].mxu0 %v1140
          %v1226 = vpop.f32.mrb[0].mxu0
          %v1227 = vadd.f32 %v994, %v1226
          %v1228 = vpop.f32.mrb[0].mxu0
          %v1229 = vpop.f32.mrb[0].mxu0
          %v1230 = vadd.f32 %v997, %v1229
          %v1231 = vpop.f32.mrb[0].mxu0
          %1232 = vmatprep.mubr.bf16.mxu0 0
          %1233 = vmatmul.mubr.bf16.gmra.mrb[0].mxu0 %v1143
          %v1234 = vpop.f32.mrb[0].mxu0
          %v1235 = vadd.f32 %v1002, %v1234
          %v1236 = vpop.f32.mrb[0].mxu0
          %v1237 = vpop.f32.mrb[0].mxu0
          %v1238 = vadd.f32 %v1005, %v1237
          %v1239 = vpop.f32.mrb[0].mxu0
          %1240 = vmatprep.mubr.bf16.mxu0 0
          %1241 = vmatmul.mubr.bf16.gmra.mrb[0].mxu0 %v1146
          %v1242 = vpop.f32.mrb[0].mxu0
          %v1243 = vadd.f32 %v1010, %v1242
          %v1244 = vpop.f32.mrb[0].mxu0
          %v1245 = vpop.f32.mrb[0].mxu0
          %v1246 = vadd.f32 %v1013, %v1245
          %v1247 = vpop.f32.mrb[0].mxu0
          %1248 = vmatprep.mubr.bf16.mxu0 0
          %1249 = vmatmul.mubr.bf16.gmra.mrb[0].mxu0 %v1149
          %v1250 = vpop.f32.mrb[0].mxu0
          %v1251 = vadd.f32 %v1018, %v1250
          %v1252 = vpop.f32.mrb[0].mxu0
          %v1253 = vpop.f32.mrb[0].mxu0
          %v1254 = vadd.f32 %v1021, %v1253
          %v1255 = vpop.f32.mrb[0].mxu0
          %1256 = vmatprep.mubr.bf16.mxu0 0
          %1257 = vmatmul.mubr.bf16.gmra.mrb[0].mxu0 %v1152
          %v1258 = vpop.f32.mrb[0].mxu0
          %v1259 = vadd.f32 %v1026, %v1258
          %v1260 = vpop.f32.mrb[0].mxu0
          %v1261 = vpop.f32.mrb[0].mxu0
          %v1262 = vadd.f32 %v1029, %v1261
          %v1263 = vpop.f32.mrb[0].mxu0
          %1264 = vmatprep.mubr.bf16.mxu0 0
          %1265 = vmatmul.mubr.bf16.gmra.mrb[0].mxu0 %v1155
          %v1266 = vpop.f32.mrb[0].mxu0
          %v1267 = vadd.f32 %v1034, %v1266
          %v1268 = vpop.f32.mrb[0].mxu0
          %v1269 = vpop.f32.mrb[0].mxu0
          %v1270 = vadd.f32 %v1037, %v1269
          %v1271 = vpop.f32.mrb[0].mxu0
          %1272 = vmatprep.mubr.bf16.mxu0 0
          %1273 = vmatmul.mubr.bf16.gmra.mrb[0].mxu0 %v1158
          %v1274 = vpop.f32.mrb[0].mxu0
          %v1275 = vadd.f32 %v1042, %v1274
          %v1276 = vpop.f32.mrb[0].mxu0
          %v1277 = vpop.f32.mrb[0].mxu0
          %v1278 = vadd.f32 %v1045, %v1277
          %v1279 = vpop.f32.mrb[0].mxu0
          %1280 = vmatprep.mubr.bf16.mxu0 0
          %1281 = vmatmul.mubr.bf16.gmra.mrb[0].mxu0 %v1161
          %v1282 = vpop.f32.mrb[0].mxu0
          %v1283 = vadd.f32 %v1050, %v1282
          %v1284 = vpop.f32.mrb[0].mxu0
          %v1285 = vpop.f32.mrb[0].mxu0
          %v1286 = vadd.f32 %v1053, %v1285
          %v1287 = vpop.f32.mrb[0].mxu0
          %1288 = vmatprep.mubr.bf16.mxu0 0
          %1289 = vmatmul.mubr.bf16.gmra.mrb[0].mxu0 %v1164
          %v1290 = vpop.f32.mrb[0].mxu0
          %v1291 = vadd.f32 %v1058, %v1290
          %v1292 = vpop.f32.mrb[0].mxu0
          %v1293 = vpop.f32.mrb[0].mxu0
          %v1294 = vadd.f32 %v1061, %v1293
          %v1295 = vpop.f32.mrb[0].mxu0
          %1296 = vmatprep.mubr.bf16.mxu0 0
          %1297 = vmatmul.mubr.bf16.gmra.mrb[0].mxu0 %v1167
          %v1298 = vpop.f32.mrb[0].mxu0
          %v1299 = vadd.f32 %v1066, %v1298
          %v1300 = vpop.f32.mrb[0].mxu0
          %v1301 = vpop.f32.mrb[0].mxu0
          %v1302 = vadd.f32 %v1069, %v1301
          %v1303 = vpop.f32.mrb[0].mxu0
          %1304 = vmatprep.mubr.bf16.mxu0 0
          %1305 = vmatmul.mubr.bf16.gmra.mrb[0].mxu0 %v1170
          %v1306 = vpop.f32.mrb[0].mxu0
          %v1307 = vadd.f32 %v1074, %v1306
          %v1308 = vpop.f32.mrb[0].mxu0
          %v1309 = vpop.f32.mrb[0].mxu0
          %v1310 = vadd.f32 %v1077, %v1309
          %v1311 = vpop.f32.mrb[0].mxu0
          %1312 = vmatprep.mubr.bf16.mxu0 0
          %1313 = vmatmul.mubr.bf16.gmra.mrb[0].mxu0 %v1173
          %v1314 = vpop.f32.mrb[0].mxu0
          %v1315 = vadd.f32 %v1082, %v1314
          %v1316 = vpop.f32.mrb[0].mxu0
          %v1317 = vpop.f32.mrb[0].mxu0
          %v1318 = vadd.f32 %v1085, %v1317
          %v1319 = vpop.f32.mrb[0].mxu0
          %1320 = vmatprep.mubr.bf16.mxu0 0
          %1321 = vmatmul.mubr.bf16.gmra.mrb[0].mxu0 %v1176
          %v1322 = vpop.f32.mrb[0].mxu0
          %v1323 = vadd.f32 %v1090, %v1322
          %v1324 = vpop.f32.mrb[0].mxu0
          %v1325 = vpop.f32.mrb[0].mxu0
          %v1326 = vadd.f32 %v1093, %v1325
          %v1327 = vpop.f32.mrb[0].mxu0
          %1328 = vmatprep.mubr.bf16.mxu0 0
          %1329 = vmatmul.mubr.bf16.gmra.mrb[0].mxu0 %v1179
          %v1330 = vpop.f32.mrb[0].mxu0
          %v1331 = vadd.f32 %v1098, %v1330
          %v1332 = vpop.f32.mrb[0].mxu0
          %v1333 = vpop.f32.mrb[0].mxu0
          %v1334 = vadd.f32 %v1101, %v1333
          %v1335 = vpop.f32.mrb[0].mxu0
          %1336 = vmatprep.mubr.bf16.mxu0 0
          %1337 = vmatmul.mubr.bf16.gmra.mrb[0].mxu0 %v1182
          %v1338 = vpop.f32.mrb[0].mxu0
          %v1339 = vadd.f32 %v1106, %v1338
          %v1340 = vpop.f32.mrb[0].mxu0
          %v1341 = vpop.f32.mrb[0].mxu0
          %v1342 = vadd.f32 %v1109, %v1341
          %v1343 = vpop.f32.mrb[0].mxu0
          %1344 = vdwg.mxu0
          %v1345 = vld [vmem:[%s759 + $0x9] sm:$0xff]
          %v1346 = vld [vmem:[%s759 + $0x11] sm:$0xff]
          %v1347 = vld [vmem:[%s759 + $0x19] sm:$0xff]
          %v1348 = vld [vmem:[%s759 + $0x21] sm:$0xff]
          %v1349 = vld [vmem:[%s759 + $0x39] sm:$0xff]
          %v1350 = vld [vmem:[%s759 + $0x41] sm:$0xff]
          %v1351 = vld [vmem:[%s759 + $0x49] sm:$0xff]
          %v1352 = vld [vmem:[%s759 + $0x51] sm:$0xff]
          %v1353 = vld [vmem:[%s759 + $0x69] sm:$0xff]
          %v1354 = vld [vmem:[%s759 + $0x71] sm:$0xff]
          %v1355 = vld [vmem:[%s759 + $0x79] sm:$0xff]
          %v1356 = vld [vmem:[%s759 + $0x81] sm:$0xff]
          %v1357 = vld [vmem:[%s759 + $0x99] sm:$0xff]
          %v1358 = vld [vmem:[%s759 + $0xa1] sm:$0xff]
          %v1359 = vld [vmem:[%s759 + $0xa9] sm:$0xff]
          %v1360 = vld [vmem:[%s759 + $0xb1] sm:$0xff]
          %v1361 = vld [vmem:[%s759 + $0xc9] sm:$0xff]
          %v1362 = vld [vmem:[%s759 + $0xd1] sm:$0xff]
          %v1363 = vld [vmem:[%s759 + $0xd9] sm:$0xff]
          %v1364 = vld [vmem:[%s759 + $0xe1] sm:$0xff]
          %v1365 = vld [vmem:[%s759 + $0xf9] sm:$0xff]
          %v1366 = vld [vmem:[%s759 + $0x101] sm:$0xff]
          %v1367 = vld [vmem:[%s759 + $0x109] sm:$0xff]
          %v1368 = vld [vmem:[%s759 + $0x111] sm:$0xff]
          %v1369 = vld [vmem:[%s759 + $0x129] sm:$0xff]
          %v1370 = vld [vmem:[%s759 + $0x131] sm:$0xff]
          %v1371 = vld [vmem:[%s759 + $0x139] sm:$0xff]
          %v1372 = vld [vmem:[%s759 + $0x141] sm:$0xff]
          %v1373 = vld [vmem:[%s759 + $0x159] sm:$0xff]
          %v1374 = vld [vmem:[%s759 + $0x161] sm:$0xff]
          %v1375 = vld [vmem:[%s759 + $0x169] sm:$0xff]
          %v1376 = vld [vmem:[%s759 + $0x171] sm:$0xff]
          %v1377 = vpack.c.bf16 %v1346, %v1345
          %v1378 = vpack.c.bf16 %v1348, %v1347
          %v1379 = vpack.c.bf16 %v1350, %v1349
          %v1380 = vpack.c.bf16 %v1352, %v1351
          %v1381 = vpack.c.bf16 %v1354, %v1353
          %v1382 = vpack.c.bf16 %v1356, %v1355
          %v1383 = vpack.c.bf16 %v1358, %v1357
          %v1384 = vpack.c.bf16 %v1360, %v1359
          %v1385 = vpack.c.bf16 %v1362, %v1361
          %v1386 = vpack.c.bf16 %v1364, %v1363
          %v1387 = vpack.c.bf16 %v1366, %v1365
          %v1388 = vpack.c.bf16 %v1368, %v1367
          %v1389 = vpack.c.bf16 %v1370, %v1369
          %v1390 = vpack.c.bf16 %v1372, %v1371
          %v1391 = vpack.c.bf16 %v1374, %v1373
          %v1392 = vpack.c.bf16 %v1376, %v1375
          %s1393 = sadd.s32 16, %s808
          %s1394 = smul.addr %s1393, 4
          %s1395 = scalar_lea.vmem %s1, %s1394
          %v1396 = vld [vmem:[%s1395] sm:$0xf]
          %v1397 = vld [vmem:[%s1395 + $0x4] sm:$0xf]
          %v1398 = vld [vmem:[%s1395 + $0x8] sm:$0xf]
          %v1399 = vld [vmem:[%s1395 + $0xc] sm:$0xf]
          %v1400 = vld [vmem:[%s1395 + $0x10] sm:$0xf]
          %v1401 = vld [vmem:[%s1395 + $0x14] sm:$0xf]
          %v1402 = vld [vmem:[%s1395 + $0x18] sm:$0xf]
          %v1403 = vld [vmem:[%s1395 + $0x1c] sm:$0xf]
          %v1412 = vunpack.c.l.b16 %v1396
          %v1413 = vunpack.c.l.b16 %v1397
          %v1414 = vunpack.c.l.b16 %v1398
          %v1415 = vunpack.c.l.b16 %v1399
          %v1416 = vunpack.c.l.b16 %v1400
          %v1417 = vunpack.c.l.b16 %v1401
          %v1418 = vunpack.c.l.b16 %v1402
          %v1419 = vunpack.c.l.b16 %v1403
          %v1420 = vpack.c.b16 %v1413, %v1412
          %v1421 = vpack.c.b16 %v1415, %v1414
          %v1422 = vpack.c.b16 %v1417, %v1416
          %v1423 = vpack.c.b16 %v1419, %v1418
          %v1429 = vsel %vm902, %v1377, 0
          %v1432 = vsel %vm902, %v1378, 0
          %v1435 = vsel %vm902, %v1379, 0
          %v1438 = vsel %vm902, %v1380, 0
          %v1441 = vsel %vm902, %v1381, 0
          %v1444 = vsel %vm902, %v1382, 0
          %v1447 = vsel %vm902, %v1383, 0
          %v1450 = vsel %vm902, %v1384, 0
          %v1453 = vsel %vm902, %v1385, 0
          %v1456 = vsel %vm902, %v1386, 0
          %v1459 = vsel %vm902, %v1387, 0
          %v1462 = vsel %vm902, %v1388, 0
          %v1465 = vsel %vm902, %v1389, 0
          %v1468 = vsel %vm902, %v1390, 0
          %v1471 = vsel %vm902, %v1391, 0
          %v1474 = vsel %vm902, %v1392, 0
          %1476 = vmatprep.subr.bf16.mxu0 0
          %1477 = vmatpush1.bf16.msra.mxu0 %v1420
          %1478 = vmatprep.subr.bf16.mxu0 0
          %1479 = vmatpush1.bf16.msra.mxu0 %v1421
          %1480 = vmatprep.subr.bf16.mxu0 0
          %1481 = vmatpush1.bf16.msra.mxu0 %v1422
          %1482 = vmatprep.subr.bf16.mxu0 0
          %1483 = vmatpush1.bf16.msra.mxu0 %v1423
          %1484 = vmatprep.subr.bf16.mxu0 0
          %1485 = vmatpush1.bf16.msra.mxu0 0
          %1486 = vmatprep.subr.bf16.mxu0 0
          %1487 = vmatpush1.bf16.msra.mxu0 0
          %1488 = vmatprep.subr.bf16.mxu0 0
          %1489 = vmatpush1.bf16.msra.mxu0 0
          %1490 = vmatprep.subr.bf16.mxu0 0
          %1491 = vmatpush1.bf16.msra.mxu0 0
          %1492 = vmatprep.subr.bf16.mxu0 0
          %1493 = vmatpush1.bf16.msra.mxu0 0
          %1494 = vmatprep.subr.bf16.mxu0 0
          %1495 = vmatpush1.bf16.msra.mxu0 0
          %1496 = vmatprep.subr.bf16.mxu0 0
          %1497 = vmatpush1.bf16.msra.mxu0 0
          %1498 = vmatprep.subr.bf16.mxu0 0
          %1499 = vmatpush1.bf16.msra.mxu0 0
          %1500 = vmatprep.subr.bf16.mxu0 0
          %1501 = vmatpush1.bf16.msra.mxu0 0
          %1502 = vmatprep.subr.bf16.mxu0 0
          %1503 = vmatpush1.bf16.msra.mxu0 0
          %1504 = vmatprep.subr.bf16.mxu0 0
          %1505 = vmatpush1.bf16.msra.mxu0 0
          %1506 = vmatprep.subr.bf16.mxu0 0
          %1507 = vmatpush1.bf16.msra.mxu0 0
          %1508 = vmatprep.mubr.bf16.mxu0 0
          %1509 = vmatmul.mubr.bf16.gmra.mrb[0].mxu0 %v1429
          %v1510 = vpop.f32.mrb[0].mxu0
          %v1511 = vadd.f32 0.0, %v1510
          %v1512 = vpop.f32.mrb[0].mxu0
          %v1513 = vpop.f32.mrb[0].mxu0
          %v1514 = vadd.f32 0.0, %v1513
          %v1515 = vpop.f32.mrb[0].mxu0
          %1516 = vmatprep.mubr.bf16.mxu0 0
          %1517 = vmatmul.mubr.bf16.gmra.mrb[0].mxu0 %v1432
          %v1518 = vpop.f32.mrb[0].mxu0
          %v1519 = vadd.f32 0.0, %v1518
          %v1520 = vpop.f32.mrb[0].mxu0
          %v1521 = vpop.f32.mrb[0].mxu0
          %v1522 = vadd.f32 0.0, %v1521
          %v1523 = vpop.f32.mrb[0].mxu0
          %1524 = vmatprep.mubr.bf16.mxu0 0
          %1525 = vmatmul.mubr.bf16.gmra.mrb[0].mxu0 %v1435
          %v1526 = vpop.f32.mrb[0].mxu0
          %v1527 = vadd.f32 0.0, %v1526
          %v1528 = vpop.f32.mrb[0].mxu0
          %v1529 = vpop.f32.mrb[0].mxu0
          %v1530 = vadd.f32 0.0, %v1529
          %v1531 = vpop.f32.mrb[0].mxu0
          %1532 = vmatprep.mubr.bf16.mxu0 0
          %1533 = vmatmul.mubr.bf16.gmra.mrb[0].mxu0 %v1438
          %v1534 = vpop.f32.mrb[0].mxu0
          %v1535 = vadd.f32 0.0, %v1534
          %v1536 = vpop.f32.mrb[0].mxu0
          %v1537 = vpop.f32.mrb[0].mxu0
          %v1538 = vadd.f32 0.0, %v1537
          %v1539 = vpop.f32.mrb[0].mxu0
          %1540 = vmatprep.mubr.bf16.mxu0 0
          %1541 = vmatmul.mubr.bf16.gmra.mrb[0].mxu0 %v1441
          %v1542 = vpop.f32.mrb[0].mxu0
          %v1543 = vadd.f32 0.0, %v1542
          %v1544 = vpop.f32.mrb[0].mxu0
          %v1545 = vpop.f32.mrb[0].mxu0
          %v1546 = vadd.f32 0.0, %v1545
          %v1547 = vpop.f32.mrb[0].mxu0
          %1548 = vmatprep.mubr.bf16.mxu0 0
          %1549 = vmatmul.mubr.bf16.gmra.mrb[0].mxu0 %v1444
          %v1550 = vpop.f32.mrb[0].mxu0
          %v1551 = vadd.f32 0.0, %v1550
          %v1552 = vpop.f32.mrb[0].mxu0
          %v1553 = vpop.f32.mrb[0].mxu0
          %v1554 = vadd.f32 0.0, %v1553
          %v1555 = vpop.f32.mrb[0].mxu0
          %1556 = vmatprep.mubr.bf16.mxu0 0
          %1557 = vmatmul.mubr.bf16.gmra.mrb[0].mxu0 %v1447
          %v1558 = vpop.f32.mrb[0].mxu0
          %v1559 = vadd.f32 0.0, %v1558
          %v1560 = vpop.f32.mrb[0].mxu0
          %v1561 = vpop.f32.mrb[0].mxu0
          %v1562 = vadd.f32 0.0, %v1561
          %v1563 = vpop.f32.mrb[0].mxu0
          %1564 = vmatprep.mubr.bf16.mxu0 0
          %1565 = vmatmul.mubr.bf16.gmra.mrb[0].mxu0 %v1450
          %v1566 = vpop.f32.mrb[0].mxu0
          %v1567 = vadd.f32 0.0, %v1566
          %v1568 = vpop.f32.mrb[0].mxu0
          %v1569 = vpop.f32.mrb[0].mxu0
          %v1570 = vadd.f32 0.0, %v1569
          %v1571 = vpop.f32.mrb[0].mxu0
          %1572 = vmatprep.mubr.bf16.mxu0 0
          %1573 = vmatmul.mubr.bf16.gmra.mrb[0].mxu0 %v1453
          %v1574 = vpop.f32.mrb[0].mxu0
          %v1575 = vadd.f32 0.0, %v1574
          %v1576 = vpop.f32.mrb[0].mxu0
          %v1577 = vpop.f32.mrb[0].mxu0
          %v1578 = vadd.f32 0.0, %v1577
          %v1579 = vpop.f32.mrb[0].mxu0
          %1580 = vmatprep.mubr.bf16.mxu0 0
          %1581 = vmatmul.mubr.bf16.gmra.mrb[0].mxu0 %v1456
          %v1582 = vpop.f32.mrb[0].mxu0
          %v1583 = vadd.f32 0.0, %v1582
          %v1584 = vpop.f32.mrb[0].mxu0
          %v1585 = vpop.f32.mrb[0].mxu0
          %v1586 = vadd.f32 0.0, %v1585
          %v1587 = vpop.f32.mrb[0].mxu0
          %1588 = vmatprep.mubr.bf16.mxu0 0
          %1589 = vmatmul.mubr.bf16.gmra.mrb[0].mxu0 %v1459
          %v1590 = vpop.f32.mrb[0].mxu0
          %v1591 = vadd.f32 0.0, %v1590
          %v1592 = vpop.f32.mrb[0].mxu0
          %v1593 = vpop.f32.mrb[0].mxu0
          %v1594 = vadd.f32 0.0, %v1593
          %v1595 = vpop.f32.mrb[0].mxu0
          %1596 = vmatprep.mubr.bf16.mxu0 0
          %1597 = vmatmul.mubr.bf16.gmra.mrb[0].mxu0 %v1462
          %v1598 = vpop.f32.mrb[0].mxu0
          %v1599 = vadd.f32 0.0, %v1598
          %v1600 = vpop.f32.mrb[0].mxu0
          %v1601 = vpop.f32.mrb[0].mxu0
          %v1602 = vadd.f32 0.0, %v1601
          %v1603 = vpop.f32.mrb[0].mxu0
          %1604 = vmatprep.mubr.bf16.mxu0 0
          %1605 = vmatmul.mubr.bf16.gmra.mrb[0].mxu0 %v1465
          %v1606 = vpop.f32.mrb[0].mxu0
          %v1607 = vadd.f32 0.0, %v1606
          %v1608 = vpop.f32.mrb[0].mxu0
          %v1609 = vpop.f32.mrb[0].mxu0
          %v1610 = vadd.f32 0.0, %v1609
          %v1611 = vpop.f32.mrb[0].mxu0
          %1612 = vmatprep.mubr.bf16.mxu0 0
          %1613 = vmatmul.mubr.bf16.gmra.mrb[0].mxu0 %v1468
          %v1614 = vpop.f32.mrb[0].mxu0
          %v1615 = vadd.f32 0.0, %v1614
          %v1616 = vpop.f32.mrb[0].mxu0
          %v1617 = vpop.f32.mrb[0].mxu0
          %v1618 = vadd.f32 0.0, %v1617
          %v1619 = vpop.f32.mrb[0].mxu0
          %1620 = vmatprep.mubr.bf16.mxu0 0
          %1621 = vmatmul.mubr.bf16.gmra.mrb[0].mxu0 %v1471
          %v1622 = vpop.f32.mrb[0].mxu0
          %v1623 = vadd.f32 0.0, %v1622
          %v1624 = vpop.f32.mrb[0].mxu0
          %v1625 = vpop.f32.mrb[0].mxu0
          %v1626 = vadd.f32 0.0, %v1625
          %v1627 = vpop.f32.mrb[0].mxu0
          %1628 = vmatprep.mubr.bf16.mxu0 0
          %1629 = vmatmul.mubr.bf16.gmra.mrb[0].mxu0 %v1474
          %v1630 = vpop.f32.mrb[0].mxu0
          %v1631 = vadd.f32 0.0, %v1630
          %v1632 = vpop.f32.mrb[0].mxu0
          %v1633 = vpop.f32.mrb[0].mxu0
          %v1634 = vadd.f32 0.0, %v1633
          %v1635 = vpop.f32.mrb[0].mxu0
          %1636 = vdwg.mxu0
          %v1637 = vadd.f32 %v1219, %v1511
          %v1638 = vadd.f32 %v1222, %v1514
          %v1639 = vadd.f32 %v1227, %v1519
          %v1640 = vadd.f32 %v1230, %v1522
          %v1641 = vadd.f32 %v1235, %v1527
          %v1642 = vadd.f32 %v1238, %v1530
          %v1643 = vadd.f32 %v1243, %v1535
          %v1644 = vadd.f32 %v1246, %v1538
          %v1645 = vadd.f32 %v1251, %v1543
          %v1646 = vadd.f32 %v1254, %v1546
          %v1647 = vadd.f32 %v1259, %v1551
          %v1648 = vadd.f32 %v1262, %v1554
          %v1649 = vadd.f32 %v1267, %v1559
          %v1650 = vadd.f32 %v1270, %v1562
          %v1651 = vadd.f32 %v1275, %v1567
          %v1652 = vadd.f32 %v1278, %v1570
          %v1653 = vadd.f32 %v1283, %v1575
          %v1654 = vadd.f32 %v1286, %v1578
          %v1655 = vadd.f32 %v1291, %v1583
          %v1656 = vadd.f32 %v1294, %v1586
          %v1657 = vadd.f32 %v1299, %v1591
          %v1658 = vadd.f32 %v1302, %v1594
          %v1659 = vadd.f32 %v1307, %v1599
          %v1660 = vadd.f32 %v1310, %v1602
          %v1661 = vadd.f32 %v1315, %v1607
          %v1662 = vadd.f32 %v1318, %v1610
          %v1663 = vadd.f32 %v1323, %v1615
          %v1664 = vadd.f32 %v1326, %v1618
          %v1665 = vadd.f32 %v1331, %v1623
          %v1666 = vadd.f32 %v1334, %v1626
          %v1667 = vadd.f32 %v1339, %v1631
          %v1668 = vadd.f32 %v1342, %v1634
          %s1669 = sadd.s32 %s755, 1
          %s1670 = smul.u32 %s1669, 48
          %s1671 = sadd.s32 %s1670, %s757
          %s1672 = scalar_lea.vmem [#allocation2], %s1671
          %v1673 = vld [vmem:[%s1672 + $0x7] sm:$0xff]
          %v1674 = vld [vmem:[%s1672 + $0xf] sm:$0xff]
          %v1675 = vld [vmem:[%s1672 + $0x17] sm:$0xff]
          %v1676 = vld [vmem:[%s1672 + $0x1f] sm:$0xff]
          %v1677 = vld [vmem:[%s1672 + $0x37] sm:$0xff]
          %v1678 = vld [vmem:[%s1672 + $0x3f] sm:$0xff]
          %v1679 = vld [vmem:[%s1672 + $0x47] sm:$0xff]
          %v1680 = vld [vmem:[%s1672 + $0x4f] sm:$0xff]
          %v1681 = vld [vmem:[%s1672 + $0x67] sm:$0xff]
          %v1682 = vld [vmem:[%s1672 + $0x6f] sm:$0xff]
          %v1683 = vld [vmem:[%s1672 + $0x77] sm:$0xff]
          %v1684 = vld [vmem:[%s1672 + $0x7f] sm:$0xff]
          %v1685 = vld [vmem:[%s1672 + $0x97] sm:$0xff]
          %v1686 = vld [vmem:[%s1672 + $0x9f] sm:$0xff]
          %v1687 = vld [vmem:[%s1672 + $0xa7] sm:$0xff]
          %v1688 = vld [vmem:[%s1672 + $0xaf] sm:$0xff]
          %v1689 = vld [vmem:[%s1672 + $0xc7] sm:$0xff]
          %v1690 = vld [vmem:[%s1672 + $0xcf] sm:$0xff]
          %v1691 = vld [vmem:[%s1672 + $0xd7] sm:$0xff]
          %v1692 = vld [vmem:[%s1672 + $0xdf] sm:$0xff]
          %v1693 = vld [vmem:[%s1672 + $0xf7] sm:$0xff]
          %v1694 = vld [vmem:[%s1672 + $0xff] sm:$0xff]
          %v1695 = vld [vmem:[%s1672 + $0x107] sm:$0xff]
          %v1696 = vld [vmem:[%s1672 + $0x10f] sm:$0xff]
          %v1697 = vld [vmem:[%s1672 + $0x127] sm:$0xff]
          %v1698 = vld [vmem:[%s1672 + $0x12f] sm:$0xff]
          %v1699 = vld [vmem:[%s1672 + $0x137] sm:$0xff]
          %v1700 = vld [vmem:[%s1672 + $0x13f] sm:$0xff]
          %v1701 = vld [vmem:[%s1672 + $0x157] sm:$0xff]
          %v1702 = vld [vmem:[%s1672 + $0x15f] sm:$0xff]
          %v1703 = vld [vmem:[%s1672 + $0x167] sm:$0xff]
          %v1704 = vld [vmem:[%s1672 + $0x16f] sm:$0xff]
          %v1705 = vpack.c.bf16 %v1674, %v1673
          %v1706 = vpack.c.bf16 %v1676, %v1675
          %v1707 = vpack.c.bf16 %v1678, %v1677
          %v1708 = vpack.c.bf16 %v1680, %v1679
          %v1709 = vpack.c.bf16 %v1682, %v1681
          %v1710 = vpack.c.bf16 %v1684, %v1683
          %v1711 = vpack.c.bf16 %v1686, %v1685
          %v1712 = vpack.c.bf16 %v1688, %v1687
          %v1713 = vpack.c.bf16 %v1690, %v1689
          %v1714 = vpack.c.bf16 %v1692, %v1691
          %v1715 = vpack.c.bf16 %v1694, %v1693
          %v1716 = vpack.c.bf16 %v1696, %v1695
          %v1717 = vpack.c.bf16 %v1698, %v1697
          %v1718 = vpack.c.bf16 %v1700, %v1699
          %v1719 = vpack.c.bf16 %v1702, %v1701
          %v1720 = vpack.c.bf16 %v1704, %v1703
          %s1721 = sadd.s32 24, %s808
          %s1722 = smul.addr %s1721, 4
          %s1723 = scalar_lea.vmem %s1, %s1722
          %v1724 = vld [vmem:[%s1723] sm:$0xf]
          %v1725 = vld [vmem:[%s1723 + $0x4] sm:$0xf]
          %v1726 = vld [vmem:[%s1723 + $0x8] sm:$0xf]
          %v1727 = vld [vmem:[%s1723 + $0xc] sm:$0xf]
          %v1728 = vld [vmem:[%s1723 + $0x10] sm:$0xf]
          %v1729 = vld [vmem:[%s1723 + $0x14] sm:$0xf]
          %v1730 = vld [vmem:[%s1723 + $0x18] sm:$0xf]
          %v1731 = vld [vmem:[%s1723 + $0x1c] sm:$0xf]
          %v1740 = vunpack.c.l.b16 %v1724
          %v1741 = vunpack.c.l.b16 %v1725
          %v1742 = vunpack.c.l.b16 %v1726
          %v1743 = vunpack.c.l.b16 %v1727
          %v1744 = vunpack.c.l.b16 %v1728
          %v1745 = vunpack.c.l.b16 %v1729
          %v1746 = vunpack.c.l.b16 %v1730
          %v1747 = vunpack.c.l.b16 %v1731
          %v1748 = vpack.c.b16 %v1741, %v1740
          %v1749 = vpack.c.b16 %v1743, %v1742
          %v1750 = vpack.c.b16 %v1745, %v1744
          %v1751 = vpack.c.b16 %v1747, %v1746
          %v1757 = vsel %vm902, %v1705, 0
          %v1760 = vsel %vm902, %v1706, 0
          %v1763 = vsel %vm902, %v1707, 0
          %v1766 = vsel %vm902, %v1708, 0
          %v1769 = vsel %vm902, %v1709, 0
          %v1772 = vsel %vm902, %v1710, 0
          %v1775 = vsel %vm902, %v1711, 0
          %v1778 = vsel %vm902, %v1712, 0
          %v1781 = vsel %vm902, %v1713, 0
          %v1784 = vsel %vm902, %v1714, 0
          %v1787 = vsel %vm902, %v1715, 0
          %v1790 = vsel %vm902, %v1716, 0
          %v1793 = vsel %vm902, %v1717, 0
          %v1796 = vsel %vm902, %v1718, 0
          %v1799 = vsel %vm902, %v1719, 0
          %v1802 = vsel %vm902, %v1720, 0
          %1804 = vmatprep.subr.bf16.mxu0 0
          %1805 = vmatpush1.bf16.msra.mxu0 %v1748
          %1806 = vmatprep.subr.bf16.mxu0 0
          %1807 = vmatpush1.bf16.msra.mxu0 %v1749
          %1808 = vmatprep.subr.bf16.mxu0 0
          %1809 = vmatpush1.bf16.msra.mxu0 %v1750
          %1810 = vmatprep.subr.bf16.mxu0 0
          %1811 = vmatpush1.bf16.msra.mxu0 %v1751
          %1812 = vmatprep.subr.bf16.mxu0 0
          %1813 = vmatpush1.bf16.msra.mxu0 0
          %1814 = vmatprep.subr.bf16.mxu0 0
          %1815 = vmatpush1.bf16.msra.mxu0 0
          %1816 = vmatprep.subr.bf16.mxu0 0
          %1817 = vmatpush1.bf16.msra.mxu0 0
          %1818 = vmatprep.subr.bf16.mxu0 0
          %1819 = vmatpush1.bf16.msra.mxu0 0
          %1820 = vmatprep.subr.bf16.mxu0 0
          %1821 = vmatpush1.bf16.msra.mxu0 0
          %1822 = vmatprep.subr.bf16.mxu0 0
          %1823 = vmatpush1.bf16.msra.mxu0 0
          %1824 = vmatprep.subr.bf16.mxu0 0
          %1825 = vmatpush1.bf16.msra.mxu0 0
          %1826 = vmatprep.subr.bf16.mxu0 0
          %1827 = vmatpush1.bf16.msra.mxu0 0
          %1828 = vmatprep.subr.bf16.mxu0 0
          %1829 = vmatpush1.bf16.msra.mxu0 0
          %1830 = vmatprep.subr.bf16.mxu0 0
          %1831 = vmatpush1.bf16.msra.mxu0 0
          %1832 = vmatprep.subr.bf16.mxu0 0
          %1833 = vmatpush1.bf16.msra.mxu0 0
          %1834 = vmatprep.subr.bf16.mxu0 0
          %1835 = vmatpush1.bf16.msra.mxu0 0
          %1836 = vmatprep.mubr.bf16.mxu0 0
          %1837 = vmatmul.mubr.bf16.gmra.mrb[0].mxu0 %v1757
          %v1838 = vpop.f32.mrb[0].mxu0
          %v1839 = vadd.f32 0.0, %v1838
          %v1840 = vpop.f32.mrb[0].mxu0
          %v1841 = vpop.f32.mrb[0].mxu0
          %v1842 = vadd.f32 0.0, %v1841
          %v1843 = vpop.f32.mrb[0].mxu0
          %1844 = vmatprep.mubr.bf16.mxu0 0
          %1845 = vmatmul.mubr.bf16.gmra.mrb[0].mxu0 %v1760
          %v1846 = vpop.f32.mrb[0].mxu0
          %v1847 = vadd.f32 0.0, %v1846
          %v1848 = vpop.f32.mrb[0].mxu0
          %v1849 = vpop.f32.mrb[0].mxu0
          %v1850 = vadd.f32 0.0, %v1849
          %v1851 = vpop.f32.mrb[0].mxu0
          %1852 = vmatprep.mubr.bf16.mxu0 0
          %1853 = vmatmul.mubr.bf16.gmra.mrb[0].mxu0 %v1763
          %v1854 = vpop.f32.mrb[0].mxu0
          %v1855 = vadd.f32 0.0, %v1854
          %v1856 = vpop.f32.mrb[0].mxu0
          %v1857 = vpop.f32.mrb[0].mxu0
          %v1858 = vadd.f32 0.0, %v1857
          %v1859 = vpop.f32.mrb[0].mxu0
          %1860 = vmatprep.mubr.bf16.mxu0 0
          %1861 = vmatmul.mubr.bf16.gmra.mrb[0].mxu0 %v1766
          %v1862 = vpop.f32.mrb[0].mxu0
          %v1863 = vadd.f32 0.0, %v1862
          %v1864 = vpop.f32.mrb[0].mxu0
          %v1865 = vpop.f32.mrb[0].mxu0
          %v1866 = vadd.f32 0.0, %v1865
          %v1867 = vpop.f32.mrb[0].mxu0
          %1868 = vmatprep.mubr.bf16.mxu0 0
          %1869 = vmatmul.mubr.bf16.gmra.mrb[0].mxu0 %v1769
          %v1870 = vpop.f32.mrb[0].mxu0
          %v1871 = vadd.f32 0.0, %v1870
          %v1872 = vpop.f32.mrb[0].mxu0
          %v1873 = vpop.f32.mrb[0].mxu0
          %v1874 = vadd.f32 0.0, %v1873
          %v1875 = vpop.f32.mrb[0].mxu0
          %1876 = vmatprep.mubr.bf16.mxu0 0
          %1877 = vmatmul.mubr.bf16.gmra.mrb[0].mxu0 %v1772
          %v1878 = vpop.f32.mrb[0].mxu0
          %v1879 = vadd.f32 0.0, %v1878
          %v1880 = vpop.f32.mrb[0].mxu0
          %v1881 = vpop.f32.mrb[0].mxu0
          %v1882 = vadd.f32 0.0, %v1881
          %v1883 = vpop.f32.mrb[0].mxu0
          %1884 = vmatprep.mubr.bf16.mxu0 0
          %1885 = vmatmul.mubr.bf16.gmra.mrb[0].mxu0 %v1775
          %v1886 = vpop.f32.mrb[0].mxu0
          %v1887 = vadd.f32 0.0, %v1886
          %v1888 = vpop.f32.mrb[0].mxu0
          %v1889 = vpop.f32.mrb[0].mxu0
          %v1890 = vadd.f32 0.0, %v1889
          %v1891 = vpop.f32.mrb[0].mxu0
          %1892 = vmatprep.mubr.bf16.mxu0 0
          %1893 = vmatmul.mubr.bf16.gmra.mrb[0].mxu0 %v1778
          %v1894 = vpop.f32.mrb[0].mxu0
          %v1895 = vadd.f32 0.0, %v1894
          %v1896 = vpop.f32.mrb[0].mxu0
          %v1897 = vpop.f32.mrb[0].mxu0
          %v1898 = vadd.f32 0.0, %v1897
          %v1899 = vpop.f32.mrb[0].mxu0
          %1900 = vmatprep.mubr.bf16.mxu0 0
          %1901 = vmatmul.mubr.bf16.gmra.mrb[0].mxu0 %v1781
          %v1902 = vpop.f32.mrb[0].mxu0
          %v1903 = vadd.f32 0.0, %v1902
          %v1904 = vpop.f32.mrb[0].mxu0
          %v1905 = vpop.f32.mrb[0].mxu0
          %v1906 = vadd.f32 0.0, %v1905
          %v1907 = vpop.f32.mrb[0].mxu0
          %1908 = vmatprep.mubr.bf16.mxu0 0
          %1909 = vmatmul.mubr.bf16.gmra.mrb[0].mxu0 %v1784
          %v1910 = vpop.f32.mrb[0].mxu0
          %v1911 = vadd.f32 0.0, %v1910
          %v1912 = vpop.f32.mrb[0].mxu0
          %v1913 = vpop.f32.mrb[0].mxu0
          %v1914 = vadd.f32 0.0, %v1913
          %v1915 = vpop.f32.mrb[0].mxu0
          %1916 = vmatprep.mubr.bf16.mxu0 0
          %1917 = vmatmul.mubr.bf16.gmra.mrb[0].mxu0 %v1787
          %v1918 = vpop.f32.mrb[0].mxu0
          %v1919 = vadd.f32 0.0, %v1918
          %v1920 = vpop.f32.mrb[0].mxu0
          %v1921 = vpop.f32.mrb[0].mxu0
          %v1922 = vadd.f32 0.0, %v1921
          %v1923 = vpop.f32.mrb[0].mxu0
          %1924 = vmatprep.mubr.bf16.mxu0 0
          %1925 = vmatmul.mubr.bf16.gmra.mrb[0].mxu0 %v1790
          %v1926 = vpop.f32.mrb[0].mxu0
          %v1927 = vadd.f32 0.0, %v1926
          %v1928 = vpop.f32.mrb[0].mxu0
          %v1929 = vpop.f32.mrb[0].mxu0
          %v1930 = vadd.f32 0.0, %v1929
          %v1931 = vpop.f32.mrb[0].mxu0
          %1932 = vmatprep.mubr.bf16.mxu0 0
          %1933 = vmatmul.mubr.bf16.gmra.mrb[0].mxu0 %v1793
          %v1934 = vpop.f32.mrb[0].mxu0
          %v1935 = vadd.f32 0.0, %v1934
          %v1936 = vpop.f32.mrb[0].mxu0
          %v1937 = vpop.f32.mrb[0].mxu0
          %v1938 = vadd.f32 0.0, %v1937
          %v1939 = vpop.f32.mrb[0].mxu0
          %1940 = vmatprep.mubr.bf16.mxu0 0
          %1941 = vmatmul.mubr.bf16.gmra.mrb[0].mxu0 %v1796
          %v1942 = vpop.f32.mrb[0].mxu0
          %v1943 = vadd.f32 0.0, %v1942
          %v1944 = vpop.f32.mrb[0].mxu0
          %v1945 = vpop.f32.mrb[0].mxu0
          %v1946 = vadd.f32 0.0, %v1945
          %v1947 = vpop.f32.mrb[0].mxu0
          %1948 = vmatprep.mubr.bf16.mxu0 0
          %1949 = vmatmul.mubr.bf16.gmra.mrb[0].mxu0 %v1799
          %v1950 = vpop.f32.mrb[0].mxu0
          %v1951 = vadd.f32 0.0, %v1950
          %v1952 = vpop.f32.mrb[0].mxu0
          %v1953 = vpop.f32.mrb[0].mxu0
          %v1954 = vadd.f32 0.0, %v1953
          %v1955 = vpop.f32.mrb[0].mxu0
          %1956 = vmatprep.mubr.bf16.mxu0 0
          %1957 = vmatmul.mubr.bf16.gmra.mrb[0].mxu0 %v1802
          %v1958 = vpop.f32.mrb[0].mxu0
          %v1959 = vadd.f32 0.0, %v1958
          %v1960 = vpop.f32.mrb[0].mxu0
          %v1961 = vpop.f32.mrb[0].mxu0
          %v1962 = vadd.f32 0.0, %v1961
          %v1963 = vpop.f32.mrb[0].mxu0
          %1964 = vdwg.mxu0
          %v1965 = vadd.f32 %v1637, %v1839
          %v1966 = vadd.f32 %v1638, %v1842
          %v1967 = vadd.f32 %v1639, %v1847
          %v1968 = vadd.f32 %v1640, %v1850
          %v1969 = vadd.f32 %v1641, %v1855
          %v1970 = vadd.f32 %v1642, %v1858
          %v1971 = vadd.f32 %v1643, %v1863
          %v1972 = vadd.f32 %v1644, %v1866
          %v1973 = vadd.f32 %v1645, %v1871
          %v1974 = vadd.f32 %v1646, %v1874
          %v1975 = vadd.f32 %v1647, %v1879
          %v1976 = vadd.f32 %v1648, %v1882
          %v1977 = vadd.f32 %v1649, %v1887
          %v1978 = vadd.f32 %v1650, %v1890
          %v1979 = vadd.f32 %v1651, %v1895
          %v1980 = vadd.f32 %v1652, %v1898
          %v1981 = vadd.f32 %v1653, %v1903
          %v1982 = vadd.f32 %v1654, %v1906
          %v1983 = vadd.f32 %v1655, %v1911
          %v1984 = vadd.f32 %v1656, %v1914
          %v1985 = vadd.f32 %v1657, %v1919
          %v1986 = vadd.f32 %v1658, %v1922
          %v1987 = vadd.f32 %v1659, %v1927
          %v1988 = vadd.f32 %v1660, %v1930
          %v1989 = vadd.f32 %v1661, %v1935
          %v1990 = vadd.f32 %v1662, %v1938
          %v1991 = vadd.f32 %v1663, %v1943
          %v1992 = vadd.f32 %v1664, %v1946
          %v1993 = vadd.f32 %v1665, %v1951
          %v1994 = vadd.f32 %v1666, %v1954
          %v1995 = vadd.f32 %v1667, %v1959
          %v1996 = vadd.f32 %v1668, %v1962
          %v1997 = vld [vmem:[%s1672 + $0x8] sm:$0xff]
          %v1998 = vld [vmem:[%s1672 + $0x10] sm:$0xff]
          %v1999 = vld [vmem:[%s1672 + $0x18] sm:$0xff]
          %v2000 = vld [vmem:[%s1672 + $0x20] sm:$0xff]
          %v2001 = vld [vmem:[%s1672 + $0x38] sm:$0xff]
          %v2002 = vld [vmem:[%s1672 + $0x40] sm:$0xff]
          %v2003 = vld [vmem:[%s1672 + $0x48] sm:$0xff]
          %v2004 = vld [vmem:[%s1672 + $0x50] sm:$0xff]
          %v2005 = vld [vmem:[%s1672 + $0x68] sm:$0xff]
          %v2006 = vld [vmem:[%s1672 + $0x70] sm:$0xff]
          %v2007 = vld [vmem:[%s1672 + $0x78] sm:$0xff]
          %v2008 = vld [vmem:[%s1672 + $0x80] sm:$0xff]
          %v2009 = vld [vmem:[%s1672 + $0x98] sm:$0xff]
          %v2010 = vld [vmem:[%s1672 + $0xa0] sm:$0xff]
          %v2011 = vld [vmem:[%s1672 + $0xa8] sm:$0xff]
          %v2012 = vld [vmem:[%s1672 + $0xb0] sm:$0xff]
          %v2013 = vld [vmem:[%s1672 + $0xc8] sm:$0xff]
          %v2014 = vld [vmem:[%s1672 + $0xd0] sm:$0xff]
          %v2015 = vld [vmem:[%s1672 + $0xd8] sm:$0xff]
          %v2016 = vld [vmem:[%s1672 + $0xe0] sm:$0xff]
          %v2017 = vld [vmem:[%s1672 + $0xf8] sm:$0xff]
          %v2018 = vld [vmem:[%s1672 + $0x100] sm:$0xff]
          %v2019 = vld [vmem:[%s1672 + $0x108] sm:$0xff]
          %v2020 = vld [vmem:[%s1672 + $0x110] sm:$0xff]
          %v2021 = vld [vmem:[%s1672 + $0x128] sm:$0xff]
          %v2022 = vld [vmem:[%s1672 + $0x130] sm:$0xff]
          %v2023 = vld [vmem:[%s1672 + $0x138] sm:$0xff]
          %v2024 = vld [vmem:[%s1672 + $0x140] sm:$0xff]
          %v2025 = vld [vmem:[%s1672 + $0x158] sm:$0xff]
          %v2026 = vld [vmem:[%s1672 + $0x160] sm:$0xff]
          %v2027 = vld [vmem:[%s1672 + $0x168] sm:$0xff]
          %v2028 = vld [vmem:[%s1672 + $0x170] sm:$0xff]
          %v2029 = vpack.c.bf16 %v1998, %v1997
          %v2030 = vpack.c.bf16 %v2000, %v1999
          %v2031 = vpack.c.bf16 %v2002, %v2001
          %v2032 = vpack.c.bf16 %v2004, %v2003
          %v2033 = vpack.c.bf16 %v2006, %v2005
          %v2034 = vpack.c.bf16 %v2008, %v2007
          %v2035 = vpack.c.bf16 %v2010, %v2009
          %v2036 = vpack.c.bf16 %v2012, %v2011
          %v2037 = vpack.c.bf16 %v2014, %v2013
          %v2038 = vpack.c.bf16 %v2016, %v2015
          %v2039 = vpack.c.bf16 %v2018, %v2017
          %v2040 = vpack.c.bf16 %v2020, %v2019
          %v2041 = vpack.c.bf16 %v2022, %v2021
          %v2042 = vpack.c.bf16 %v2024, %v2023
          %v2043 = vpack.c.bf16 %v2026, %v2025
          %v2044 = vpack.c.bf16 %v2028, %v2027
          %s2045 = sadd.s32 32, %s808
          %s2046 = smul.addr %s2045, 4
          %s2047 = scalar_lea.vmem %s1, %s2046
          %v2048 = vld [vmem:[%s2047] sm:$0xf]
          %v2049 = vld [vmem:[%s2047 + $0x4] sm:$0xf]
          %v2050 = vld [vmem:[%s2047 + $0x8] sm:$0xf]
          %v2051 = vld [vmem:[%s2047 + $0xc] sm:$0xf]
          %v2052 = vld [vmem:[%s2047 + $0x10] sm:$0xf]
          %v2053 = vld [vmem:[%s2047 + $0x14] sm:$0xf]
          %v2054 = vld [vmem:[%s2047 + $0x18] sm:$0xf]
          %v2055 = vld [vmem:[%s2047 + $0x1c] sm:$0xf]
          %v2064 = vunpack.c.l.b16 %v2048
          %v2065 = vunpack.c.l.b16 %v2049
          %v2066 = vunpack.c.l.b16 %v2050
          %v2067 = vunpack.c.l.b16 %v2051
          %v2068 = vunpack.c.l.b16 %v2052
          %v2069 = vunpack.c.l.b16 %v2053
          %v2070 = vunpack.c.l.b16 %v2054
          %v2071 = vunpack.c.l.b16 %v2055
          %v2072 = vpack.c.b16 %v2065, %v2064
          %v2073 = vpack.c.b16 %v2067, %v2066
          %v2074 = vpack.c.b16 %v2069, %v2068
          %v2075 = vpack.c.b16 %v2071, %v2070
          %v2081 = vsel %vm902, %v2029, 0
          %v2084 = vsel %vm902, %v2030, 0
          %v2087 = vsel %vm902, %v2031, 0
          %v2090 = vsel %vm902, %v2032, 0
          %v2093 = vsel %vm902, %v2033, 0
          %v2096 = vsel %vm902, %v2034, 0
          %v2099 = vsel %vm902, %v2035, 0
          %v2102 = vsel %vm902, %v2036, 0
          %v2105 = vsel %vm902, %v2037, 0
          %v2108 = vsel %vm902, %v2038, 0
          %v2111 = vsel %vm902, %v2039, 0
          %v2114 = vsel %vm902, %v2040, 0
          %v2117 = vsel %vm902, %v2041, 0
          %v2120 = vsel %vm902, %v2042, 0
          %v2123 = vsel %vm902, %v2043, 0
          %v2126 = vsel %vm902, %v2044, 0
          %2128 = vmatprep.subr.bf16.mxu0 0
          %2129 = vmatpush1.bf16.msra.mxu0 %v2072
          %2130 = vmatprep.subr.bf16.mxu0 0
          %2131 = vmatpush1.bf16.msra.mxu0 %v2073
          %2132 = vmatprep.subr.bf16.mxu0 0
          %2133 = vmatpush1.bf16.msra.mxu0 %v2074
          %2134 = vmatprep.subr.bf16.mxu0 0
          %2135 = vmatpush1.bf16.msra.mxu0 %v2075
          %2136 = vmatprep.subr.bf16.mxu0 0
          %2137 = vmatpush1.bf16.msra.mxu0 0
          %2138 = vmatprep.subr.bf16.mxu0 0
          %2139 = vmatpush1.bf16.msra.mxu0 0
          %2140 = vmatprep.subr.bf16.mxu0 0
          %2141 = vmatpush1.bf16.msra.mxu0 0
          %2142 = vmatprep.subr.bf16.mxu0 0
          %2143 = vmatpush1.bf16.msra.mxu0 0
          %2144 = vmatprep.subr.bf16.mxu0 0
          %2145 = vmatpush1.bf16.msra.mxu0 0
          %2146 = vmatprep.subr.bf16.mxu0 0
          %2147 = vmatpush1.bf16.msra.mxu0 0
          %2148 = vmatprep.subr.bf16.mxu0 0
          %2149 = vmatpush1.bf16.msra.mxu0 0
          %2150 = vmatprep.subr.bf16.mxu0 0
          %2151 = vmatpush1.bf16.msra.mxu0 0
          %2152 = vmatprep.subr.bf16.mxu0 0
          %2153 = vmatpush1.bf16.msra.mxu0 0
          %2154 = vmatprep.subr.bf16.mxu0 0
          %2155 = vmatpush1.bf16.msra.mxu0 0
          %2156 = vmatprep.subr.bf16.mxu0 0
          %2157 = vmatpush1.bf16.msra.mxu0 0
          %2158 = vmatprep.subr.bf16.mxu0 0
          %2159 = vmatpush1.bf16.msra.mxu0 0
          %2160 = vmatprep.mubr.bf16.mxu0 0
          %2161 = vmatmul.mubr.bf16.gmra.mrb[0].mxu0 %v2081
          %v2162 = vpop.f32.mrb[0].mxu0
          %v2163 = vadd.f32 0.0, %v2162
          %v2164 = vpop.f32.mrb[0].mxu0
          %v2165 = vpop.f32.mrb[0].mxu0
          %v2166 = vadd.f32 0.0, %v2165
          %v2167 = vpop.f32.mrb[0].mxu0
          %2168 = vmatprep.mubr.bf16.mxu0 0
          %2169 = vmatmul.mubr.bf16.gmra.mrb[0].mxu0 %v2084
          %v2170 = vpop.f32.mrb[0].mxu0
          %v2171 = vadd.f32 0.0, %v2170
          %v2172 = vpop.f32.mrb[0].mxu0
          %v2173 = vpop.f32.mrb[0].mxu0
          %v2174 = vadd.f32 0.0, %v2173
          %v2175 = vpop.f32.mrb[0].mxu0
          %2176 = vmatprep.mubr.bf16.mxu0 0
          %2177 = vmatmul.mubr.bf16.gmra.mrb[0].mxu0 %v2087
          %v2178 = vpop.f32.mrb[0].mxu0
          %v2179 = vadd.f32 0.0, %v2178
          %v2180 = vpop.f32.mrb[0].mxu0
          %v2181 = vpop.f32.mrb[0].mxu0
          %v2182 = vadd.f32 0.0, %v2181
          %v2183 = vpop.f32.mrb[0].mxu0
          %2184 = vmatprep.mubr.bf16.mxu0 0
          %2185 = vmatmul.mubr.bf16.gmra.mrb[0].mxu0 %v2090
          %v2186 = vpop.f32.mrb[0].mxu0
          %v2187 = vadd.f32 0.0, %v2186
          %v2188 = vpop.f32.mrb[0].mxu0
          %v2189 = vpop.f32.mrb[0].mxu0
          %v2190 = vadd.f32 0.0, %v2189
          %v2191 = vpop.f32.mrb[0].mxu0
          %2192 = vmatprep.mubr.bf16.mxu0 0
          %2193 = vmatmul.mubr.bf16.gmra.mrb[0].mxu0 %v2093
          %v2194 = vpop.f32.mrb[0].mxu0
          %v2195 = vadd.f32 0.0, %v2194
          %v2196 = vpop.f32.mrb[0].mxu0
          %v2197 = vpop.f32.mrb[0].mxu0
          %v2198 = vadd.f32 0.0, %v2197
          %v2199 = vpop.f32.mrb[0].mxu0
          %2200 = vmatprep.mubr.bf16.mxu0 0
          %2201 = vmatmul.mubr.bf16.gmra.mrb[0].mxu0 %v2096
          %v2202 = vpop.f32.mrb[0].mxu0
          %v2203 = vadd.f32 0.0, %v2202
          %v2204 = vpop.f32.mrb[0].mxu0
          %v2205 = vpop.f32.mrb[0].mxu0
          %v2206 = vadd.f32 0.0, %v2205
          %v2207 = vpop.f32.mrb[0].mxu0
          %2208 = vmatprep.mubr.bf16.mxu0 0
          %2209 = vmatmul.mubr.bf16.gmra.mrb[0].mxu0 %v2099
          %v2210 = vpop.f32.mrb[0].mxu0
          %v2211 = vadd.f32 0.0, %v2210
          %v2212 = vpop.f32.mrb[0].mxu0
          %v2213 = vpop.f32.mrb[0].mxu0
          %v2214 = vadd.f32 0.0, %v2213
          %v2215 = vpop.f32.mrb[0].mxu0
          %2216 = vmatprep.mubr.bf16.mxu0 0
          %2217 = vmatmul.mubr.bf16.gmra.mrb[0].mxu0 %v2102
          %v2218 = vpop.f32.mrb[0].mxu0
          %v2219 = vadd.f32 0.0, %v2218
          %v2220 = vpop.f32.mrb[0].mxu0
          %v2221 = vpop.f32.mrb[0].mxu0
          %v2222 = vadd.f32 0.0, %v2221
          %v2223 = vpop.f32.mrb[0].mxu0
          %2224 = vmatprep.mubr.bf16.mxu0 0
          %2225 = vmatmul.mubr.bf16.gmra.mrb[0].mxu0 %v2105
          %v2226 = vpop.f32.mrb[0].mxu0
          %v2227 = vadd.f32 0.0, %v2226
          %v2228 = vpop.f32.mrb[0].mxu0
          %v2229 = vpop.f32.mrb[0].mxu0
          %v2230 = vadd.f32 0.0, %v2229
          %v2231 = vpop.f32.mrb[0].mxu0
          %2232 = vmatprep.mubr.bf16.mxu0 0
          %2233 = vmatmul.mubr.bf16.gmra.mrb[0].mxu0 %v2108
          %v2234 = vpop.f32.mrb[0].mxu0
          %v2235 = vadd.f32 0.0, %v2234
          %v2236 = vpop.f32.mrb[0].mxu0
          %v2237 = vpop.f32.mrb[0].mxu0
          %v2238 = vadd.f32 0.0, %v2237
          %v2239 = vpop.f32.mrb[0].mxu0
          %2240 = vmatprep.mubr.bf16.mxu0 0
          %2241 = vmatmul.mubr.bf16.gmra.mrb[0].mxu0 %v2111
          %v2242 = vpop.f32.mrb[0].mxu0
          %v2243 = vadd.f32 0.0, %v2242
          %v2244 = vpop.f32.mrb[0].mxu0
          %v2245 = vpop.f32.mrb[0].mxu0
          %v2246 = vadd.f32 0.0, %v2245
          %v2247 = vpop.f32.mrb[0].mxu0
          %2248 = vmatprep.mubr.bf16.mxu0 0
          %2249 = vmatmul.mubr.bf16.gmra.mrb[0].mxu0 %v2114
          %v2250 = vpop.f32.mrb[0].mxu0
          %v2251 = vadd.f32 0.0, %v2250
          %v2252 = vpop.f32.mrb[0].mxu0
          %v2253 = vpop.f32.mrb[0].mxu0
          %v2254 = vadd.f32 0.0, %v2253
          %v2255 = vpop.f32.mrb[0].mxu0
          %2256 = vmatprep.mubr.bf16.mxu0 0
          %2257 = vmatmul.mubr.bf16.gmra.mrb[0].mxu0 %v2117
          %v2258 = vpop.f32.mrb[0].mxu0
          %v2259 = vadd.f32 0.0, %v2258
          %v2260 = vpop.f32.mrb[0].mxu0
          %v2261 = vpop.f32.mrb[0].mxu0
          %v2262 = vadd.f32 0.0, %v2261
          %v2263 = vpop.f32.mrb[0].mxu0
          %2264 = vmatprep.mubr.bf16.mxu0 0
          %2265 = vmatmul.mubr.bf16.gmra.mrb[0].mxu0 %v2120
          %v2266 = vpop.f32.mrb[0].mxu0
          %v2267 = vadd.f32 0.0, %v2266
          %v2268 = vpop.f32.mrb[0].mxu0
          %v2269 = vpop.f32.mrb[0].mxu0
          %v2270 = vadd.f32 0.0, %v2269
          %v2271 = vpop.f32.mrb[0].mxu0
          %2272 = vmatprep.mubr.bf16.mxu0 0
          %2273 = vmatmul.mubr.bf16.gmra.mrb[0].mxu0 %v2123
          %v2274 = vpop.f32.mrb[0].mxu0
          %v2275 = vadd.f32 0.0, %v2274
          %v2276 = vpop.f32.mrb[0].mxu0
          %v2277 = vpop.f32.mrb[0].mxu0
          %v2278 = vadd.f32 0.0, %v2277
          %v2279 = vpop.f32.mrb[0].mxu0
          %2280 = vmatprep.mubr.bf16.mxu0 0
          %2281 = vmatmul.mubr.bf16.gmra.mrb[0].mxu0 %v2126
          %v2282 = vpop.f32.mrb[0].mxu0
          %v2283 = vadd.f32 0.0, %v2282
          %v2284 = vpop.f32.mrb[0].mxu0
          %v2285 = vpop.f32.mrb[0].mxu0
          %v2286 = vadd.f32 0.0, %v2285
          %v2287 = vpop.f32.mrb[0].mxu0
          %2288 = vdwg.mxu0
          %v2289 = vadd.f32 %v1965, %v2163
          %v2290 = vadd.f32 %v1966, %v2166
          %v2291 = vadd.f32 %v1967, %v2171
          %v2292 = vadd.f32 %v1968, %v2174
          %v2293 = vadd.f32 %v1969, %v2179
          %v2294 = vadd.f32 %v1970, %v2182
          %v2295 = vadd.f32 %v1971, %v2187
          %v2296 = vadd.f32 %v1972, %v2190
          %v2297 = vadd.f32 %v1973, %v2195
          %v2298 = vadd.f32 %v1974, %v2198
          %v2299 = vadd.f32 %v1975, %v2203
          %v2300 = vadd.f32 %v1976, %v2206
          %v2301 = vadd.f32 %v1977, %v2211
          %v2302 = vadd.f32 %v1978, %v2214
          %v2303 = vadd.f32 %v1979, %v2219
          %v2304 = vadd.f32 %v1980, %v2222
          %v2305 = vadd.f32 %v1981, %v2227
          %v2306 = vadd.f32 %v1982, %v2230
          %v2307 = vadd.f32 %v1983, %v2235
          %v2308 = vadd.f32 %v1984, %v2238
          %v2309 = vadd.f32 %v1985, %v2243
          %v2310 = vadd.f32 %v1986, %v2246
          %v2311 = vadd.f32 %v1987, %v2251
          %v2312 = vadd.f32 %v1988, %v2254
          %v2313 = vadd.f32 %v1989, %v2259
          %v2314 = vadd.f32 %v1990, %v2262
          %v2315 = vadd.f32 %v1991, %v2267
          %v2316 = vadd.f32 %v1992, %v2270
          %v2317 = vadd.f32 %v1993, %v2275
          %v2318 = vadd.f32 %v1994, %v2278
          %v2319 = vadd.f32 %v1995, %v2283
          %v2320 = vadd.f32 %v1996, %v2286
          %v2321 = vld [vmem:[%s1672 + $0x9] sm:$0xff]
          %v2322 = vld [vmem:[%s1672 + $0x11] sm:$0xff]
          %v2323 = vld [vmem:[%s1672 + $0x19] sm:$0xff]
          %v2324 = vld [vmem:[%s1672 + $0x21] sm:$0xff]
          %v2325 = vld [vmem:[%s1672 + $0x39] sm:$0xff]
          %v2326 = vld [vmem:[%s1672 + $0x41] sm:$0xff]
          %v2327 = vld [vmem:[%s1672 + $0x49] sm:$0xff]
          %v2328 = vld [vmem:[%s1672 + $0x51] sm:$0xff]
          %v2329 = vld [vmem:[%s1672 + $0x69] sm:$0xff]
          %v2330 = vld [vmem:[%s1672 + $0x71] sm:$0xff]
          %v2331 = vld [vmem:[%s1672 + $0x79] sm:$0xff]
          %v2332 = vld [vmem:[%s1672 + $0x81] sm:$0xff]
          %v2333 = vld [vmem:[%s1672 + $0x99] sm:$0xff]
          %v2334 = vld [vmem:[%s1672 + $0xa1] sm:$0xff]
          %v2335 = vld [vmem:[%s1672 + $0xa9] sm:$0xff]
          %v2336 = vld [vmem:[%s1672 + $0xb1] sm:$0xff]
          %v2337 = vld [vmem:[%s1672 + $0xc9] sm:$0xff]
          %v2338 = vld [vmem:[%s1672 + $0xd1] sm:$0xff]
          %v2339 = vld [vmem:[%s1672 + $0xd9] sm:$0xff]
          %v2340 = vld [vmem:[%s1672 + $0xe1] sm:$0xff]
          %v2341 = vld [vmem:[%s1672 + $0xf9] sm:$0xff]
          %v2342 = vld [vmem:[%s1672 + $0x101] sm:$0xff]
          %v2343 = vld [vmem:[%s1672 + $0x109] sm:$0xff]
          %v2344 = vld [vmem:[%s1672 + $0x111] sm:$0xff]
          %v2345 = vld [vmem:[%s1672 + $0x129] sm:$0xff]
          %v2346 = vld [vmem:[%s1672 + $0x131] sm:$0xff]
          %v2347 = vld [vmem:[%s1672 + $0x139] sm:$0xff]
          %v2348 = vld [vmem:[%s1672 + $0x141] sm:$0xff]
          %v2349 = vld [vmem:[%s1672 + $0x159] sm:$0xff]
          %v2350 = vld [vmem:[%s1672 + $0x161] sm:$0xff]
          %v2351 = vld [vmem:[%s1672 + $0x169] sm:$0xff]
          %v2352 = vld [vmem:[%s1672 + $0x171] sm:$0xff]
          %v2353 = vpack.c.bf16 %v2322, %v2321
          %v2354 = vpack.c.bf16 %v2324, %v2323
          %v2355 = vpack.c.bf16 %v2326, %v2325
          %v2356 = vpack.c.bf16 %v2328, %v2327
          %v2357 = vpack.c.bf16 %v2330, %v2329
          %v2358 = vpack.c.bf16 %v2332, %v2331
          %v2359 = vpack.c.bf16 %v2334, %v2333
          %v2360 = vpack.c.bf16 %v2336, %v2335
          %v2361 = vpack.c.bf16 %v2338, %v2337
          %v2362 = vpack.c.bf16 %v2340, %v2339
          %v2363 = vpack.c.bf16 %v2342, %v2341
          %v2364 = vpack.c.bf16 %v2344, %v2343
          %v2365 = vpack.c.bf16 %v2346, %v2345
          %v2366 = vpack.c.bf16 %v2348, %v2347
          %v2367 = vpack.c.bf16 %v2350, %v2349
          %v2368 = vpack.c.bf16 %v2352, %v2351
          %s2369 = sadd.s32 40, %s808
          %s2370 = smul.addr %s2369, 4
          %s2371 = scalar_lea.vmem %s1, %s2370
          %v2372 = vld [vmem:[%s2371] sm:$0xf]
          %v2373 = vld [vmem:[%s2371 + $0x4] sm:$0xf]
          %v2374 = vld [vmem:[%s2371 + $0x8] sm:$0xf]
          %v2375 = vld [vmem:[%s2371 + $0xc] sm:$0xf]
          %v2376 = vld [vmem:[%s2371 + $0x10] sm:$0xf]
          %v2377 = vld [vmem:[%s2371 + $0x14] sm:$0xf]
          %v2378 = vld [vmem:[%s2371 + $0x18] sm:$0xf]
          %v2379 = vld [vmem:[%s2371 + $0x1c] sm:$0xf]
          %v2388 = vunpack.c.l.b16 %v2372
          %v2389 = vunpack.c.l.b16 %v2373
          %v2390 = vunpack.c.l.b16 %v2374
          %v2391 = vunpack.c.l.b16 %v2375
          %v2392 = vunpack.c.l.b16 %v2376
          %v2393 = vunpack.c.l.b16 %v2377
          %v2394 = vunpack.c.l.b16 %v2378
          %v2395 = vunpack.c.l.b16 %v2379
          %v2396 = vpack.c.b16 %v2389, %v2388
          %v2397 = vpack.c.b16 %v2391, %v2390
          %v2398 = vpack.c.b16 %v2393, %v2392
          %v2399 = vpack.c.b16 %v2395, %v2394
          %v2405 = vsel %vm902, %v2353, 0
          %v2408 = vsel %vm902, %v2354, 0
          %v2411 = vsel %vm902, %v2355, 0
          %v2414 = vsel %vm902, %v2356, 0
          %v2417 = vsel %vm902, %v2357, 0
          %v2420 = vsel %vm902, %v2358, 0
          %v2423 = vsel %vm902, %v2359, 0
          %v2426 = vsel %vm902, %v2360, 0
          %v2429 = vsel %vm902, %v2361, 0
          %v2432 = vsel %vm902, %v2362, 0
          %v2435 = vsel %vm902, %v2363, 0
          %v2438 = vsel %vm902, %v2364, 0
          %v2441 = vsel %vm902, %v2365, 0
          %v2444 = vsel %vm902, %v2366, 0
          %v2447 = vsel %vm902, %v2367, 0
          %v2450 = vsel %vm902, %v2368, 0
          %2452 = vmatprep.subr.bf16.mxu0 0
          %2453 = vmatpush1.bf16.msra.mxu0 %v2396
          %2454 = vmatprep.subr.bf16.mxu0 0
          %2455 = vmatpush1.bf16.msra.mxu0 %v2397
          %2456 = vmatprep.subr.bf16.mxu0 0
          %2457 = vmatpush1.bf16.msra.mxu0 %v2398
          %2458 = vmatprep.subr.bf16.mxu0 0
          %2459 = vmatpush1.bf16.msra.mxu0 %v2399
          %2460 = vmatprep.subr.bf16.mxu0 0
          %2461 = vmatpush1.bf16.msra.mxu0 0
          %2462 = vmatprep.subr.bf16.mxu0 0
          %2463 = vmatpush1.bf16.msra.mxu0 0
          %2464 = vmatprep.subr.bf16.mxu0 0
          %2465 = vmatpush1.bf16.msra.mxu0 0
          %2466 = vmatprep.subr.bf16.mxu0 0
          %2467 = vmatpush1.bf16.msra.mxu0 0
          %2468 = vmatprep.subr.bf16.mxu0 0
          %2469 = vmatpush1.bf16.msra.mxu0 0
          %2470 = vmatprep.subr.bf16.mxu0 0
          %2471 = vmatpush1.bf16.msra.mxu0 0
          %2472 = vmatprep.subr.bf16.mxu0 0
          %2473 = vmatpush1.bf16.msra.mxu0 0
          %2474 = vmatprep.subr.bf16.mxu0 0
          %2475 = vmatpush1.bf16.msra.mxu0 0
          %2476 = vmatprep.subr.bf16.mxu0 0
          %2477 = vmatpush1.bf16.msra.mxu0 0
          %2478 = vmatprep.subr.bf16.mxu0 0
          %2479 = vmatpush1.bf16.msra.mxu0 0
          %2480 = vmatprep.subr.bf16.mxu0 0
          %2481 = vmatpush1.bf16.msra.mxu0 0
          %2482 = vmatprep.subr.bf16.mxu0 0
          %2483 = vmatpush1.bf16.msra.mxu0 0
          %2484 = vmatprep.mubr.bf16.mxu0 0
          %2485 = vmatmul.mubr.bf16.gmra.mrb[0].mxu0 %v2405
          %v2486 = vpop.f32.mrb[0].mxu0
          %v2487 = vadd.f32 0.0, %v2486
          %v2488 = vpop.f32.mrb[0].mxu0
          %v2489 = vpop.f32.mrb[0].mxu0
          %v2490 = vadd.f32 0.0, %v2489
          %v2491 = vpop.f32.mrb[0].mxu0
          %2492 = vmatprep.mubr.bf16.mxu0 0
          %2493 = vmatmul.mubr.bf16.gmra.mrb[0].mxu0 %v2408
          %v2494 = vpop.f32.mrb[0].mxu0
          %v2495 = vadd.f32 0.0, %v2494
          %v2496 = vpop.f32.mrb[0].mxu0
          %v2497 = vpop.f32.mrb[0].mxu0
          %v2498 = vadd.f32 0.0, %v2497
          %v2499 = vpop.f32.mrb[0].mxu0
          %2500 = vmatprep.mubr.bf16.mxu0 0
          %2501 = vmatmul.mubr.bf16.gmra.mrb[0].mxu0 %v2411
          %v2502 = vpop.f32.mrb[0].mxu0
          %v2503 = vadd.f32 0.0, %v2502
          %v2504 = vpop.f32.mrb[0].mxu0
          %v2505 = vpop.f32.mrb[0].mxu0
          %v2506 = vadd.f32 0.0, %v2505
          %v2507 = vpop.f32.mrb[0].mxu0
          %2508 = vmatprep.mubr.bf16.mxu0 0
          %2509 = vmatmul.mubr.bf16.gmra.mrb[0].mxu0 %v2414
          %v2510 = vpop.f32.mrb[0].mxu0
          %v2511 = vadd.f32 0.0, %v2510
          %v2512 = vpop.f32.mrb[0].mxu0
          %v2513 = vpop.f32.mrb[0].mxu0
          %v2514 = vadd.f32 0.0, %v2513
          %v2515 = vpop.f32.mrb[0].mxu0
          %2516 = vmatprep.mubr.bf16.mxu0 0
          %2517 = vmatmul.mubr.bf16.gmra.mrb[0].mxu0 %v2417
          %v2518 = vpop.f32.mrb[0].mxu0
          %v2519 = vadd.f32 0.0, %v2518
          %v2520 = vpop.f32.mrb[0].mxu0
          %v2521 = vpop.f32.mrb[0].mxu0
          %v2522 = vadd.f32 0.0, %v2521
          %v2523 = vpop.f32.mrb[0].mxu0
          %2524 = vmatprep.mubr.bf16.mxu0 0
          %2525 = vmatmul.mubr.bf16.gmra.mrb[0].mxu0 %v2420
          %v2526 = vpop.f32.mrb[0].mxu0
          %v2527 = vadd.f32 0.0, %v2526
          %v2528 = vpop.f32.mrb[0].mxu0
          %v2529 = vpop.f32.mrb[0].mxu0
          %v2530 = vadd.f32 0.0, %v2529
          %v2531 = vpop.f32.mrb[0].mxu0
          %2532 = vmatprep.mubr.bf16.mxu0 0
          %2533 = vmatmul.mubr.bf16.gmra.mrb[0].mxu0 %v2423
          %v2534 = vpop.f32.mrb[0].mxu0
          %v2535 = vadd.f32 0.0, %v2534
          %v2536 = vpop.f32.mrb[0].mxu0
          %v2537 = vpop.f32.mrb[0].mxu0
          %v2538 = vadd.f32 0.0, %v2537
          %v2539 = vpop.f32.mrb[0].mxu0
          %2540 = vmatprep.mubr.bf16.mxu0 0
          %2541 = vmatmul.mubr.bf16.gmra.mrb[0].mxu0 %v2426
          %v2542 = vpop.f32.mrb[0].mxu0
          %v2543 = vadd.f32 0.0, %v2542
          %v2544 = vpop.f32.mrb[0].mxu0
          %v2545 = vpop.f32.mrb[0].mxu0
          %v2546 = vadd.f32 0.0, %v2545
          %v2547 = vpop.f32.mrb[0].mxu0
          %2548 = vmatprep.mubr.bf16.mxu0 0
          %2549 = vmatmul.mubr.bf16.gmra.mrb[0].mxu0 %v2429
          %v2550 = vpop.f32.mrb[0].mxu0
          %v2551 = vadd.f32 0.0, %v2550
          %v2552 = vpop.f32.mrb[0].mxu0
          %v2553 = vpop.f32.mrb[0].mxu0
          %v2554 = vadd.f32 0.0, %v2553
          %v2555 = vpop.f32.mrb[0].mxu0
          %2556 = vmatprep.mubr.bf16.mxu0 0
          %2557 = vmatmul.mubr.bf16.gmra.mrb[0].mxu0 %v2432
          %v2558 = vpop.f32.mrb[0].mxu0
          %v2559 = vadd.f32 0.0, %v2558
          %v2560 = vpop.f32.mrb[0].mxu0
          %v2561 = vpop.f32.mrb[0].mxu0
          %v2562 = vadd.f32 0.0, %v2561
          %v2563 = vpop.f32.mrb[0].mxu0
          %2564 = vmatprep.mubr.bf16.mxu0 0
          %2565 = vmatmul.mubr.bf16.gmra.mrb[0].mxu0 %v2435
          %v2566 = vpop.f32.mrb[0].mxu0
          %v2567 = vadd.f32 0.0, %v2566
          %v2568 = vpop.f32.mrb[0].mxu0
          %v2569 = vpop.f32.mrb[0].mxu0
          %v2570 = vadd.f32 0.0, %v2569
          %v2571 = vpop.f32.mrb[0].mxu0
          %2572 = vmatprep.mubr.bf16.mxu0 0
          %2573 = vmatmul.mubr.bf16.gmra.mrb[0].mxu0 %v2438
          %v2574 = vpop.f32.mrb[0].mxu0
          %v2575 = vadd.f32 0.0, %v2574
          %v2576 = vpop.f32.mrb[0].mxu0
          %v2577 = vpop.f32.mrb[0].mxu0
          %v2578 = vadd.f32 0.0, %v2577
          %v2579 = vpop.f32.mrb[0].mxu0
          %2580 = vmatprep.mubr.bf16.mxu0 0
          %2581 = vmatmul.mubr.bf16.gmra.mrb[0].mxu0 %v2441
          %v2582 = vpop.f32.mrb[0].mxu0
          %v2583 = vadd.f32 0.0, %v2582
          %v2584 = vpop.f32.mrb[0].mxu0
          %v2585 = vpop.f32.mrb[0].mxu0
          %v2586 = vadd.f32 0.0, %v2585
          %v2587 = vpop.f32.mrb[0].mxu0
          %2588 = vmatprep.mubr.bf16.mxu0 0
          %2589 = vmatmul.mubr.bf16.gmra.mrb[0].mxu0 %v2444
          %v2590 = vpop.f32.mrb[0].mxu0
          %v2591 = vadd.f32 0.0, %v2590
          %v2592 = vpop.f32.mrb[0].mxu0
          %v2593 = vpop.f32.mrb[0].mxu0
          %v2594 = vadd.f32 0.0, %v2593
          %v2595 = vpop.f32.mrb[0].mxu0
          %2596 = vmatprep.mubr.bf16.mxu0 0
          %2597 = vmatmul.mubr.bf16.gmra.mrb[0].mxu0 %v2447
          %v2598 = vpop.f32.mrb[0].mxu0
          %v2599 = vadd.f32 0.0, %v2598
          %v2600 = vpop.f32.mrb[0].mxu0
          %v2601 = vpop.f32.mrb[0].mxu0
          %v2602 = vadd.f32 0.0, %v2601
          %v2603 = vpop.f32.mrb[0].mxu0
          %2604 = vmatprep.mubr.bf16.mxu0 0
          %2605 = vmatmul.mubr.bf16.gmra.mrb[0].mxu0 %v2450
          %v2606 = vpop.f32.mrb[0].mxu0
          %v2607 = vadd.f32 0.0, %v2606
          %v2608 = vpop.f32.mrb[0].mxu0
          %v2609 = vpop.f32.mrb[0].mxu0
          %v2610 = vadd.f32 0.0, %v2609
          %v2611 = vpop.f32.mrb[0].mxu0
          %2612 = vdwg.mxu0
          %v2613 = vadd.f32 %v2289, %v2487
          %v2614 = vadd.f32 %v2290, %v2490
          %v2615 = vadd.f32 %v2291, %v2495
          %v2616 = vadd.f32 %v2292, %v2498
          %v2617 = vadd.f32 %v2293, %v2503
          %v2618 = vadd.f32 %v2294, %v2506
          %v2619 = vadd.f32 %v2295, %v2511
          %v2620 = vadd.f32 %v2296, %v2514
          %v2621 = vadd.f32 %v2297, %v2519
          %v2622 = vadd.f32 %v2298, %v2522
          %v2623 = vadd.f32 %v2299, %v2527
          %v2624 = vadd.f32 %v2300, %v2530
          %v2625 = vadd.f32 %v2301, %v2535
          %v2626 = vadd.f32 %v2302, %v2538
          %v2627 = vadd.f32 %v2303, %v2543
          %v2628 = vadd.f32 %v2304, %v2546
          %v2629 = vadd.f32 %v2305, %v2551
          %v2630 = vadd.f32 %v2306, %v2554
          %v2631 = vadd.f32 %v2307, %v2559
          %v2632 = vadd.f32 %v2308, %v2562
          %v2633 = vadd.f32 %v2309, %v2567
          %v2634 = vadd.f32 %v2310, %v2570
          %v2635 = vadd.f32 %v2311, %v2575
          %v2636 = vadd.f32 %v2312, %v2578
          %v2637 = vadd.f32 %v2313, %v2583
          %v2638 = vadd.f32 %v2314, %v2586
          %v2639 = vadd.f32 %v2315, %v2591
          %v2640 = vadd.f32 %v2316, %v2594
          %v2641 = vadd.f32 %v2317, %v2599
          %v2642 = vadd.f32 %v2318, %v2602
          %v2643 = vadd.f32 %v2319, %v2607
          %v2644 = vadd.f32 %v2320, %v2610
          %s2645 = sadd.s32 %s755, 2
          %s2646 = smul.u32 %s2645, 48
          %s2647 = sadd.s32 %s2646, %s757
          %s2648 = scalar_lea.vmem [#allocation2], %s2647
          %v2649 = vld [vmem:[%s2648 + $0x7] sm:$0xff]
          %v2650 = vld [vmem:[%s2648 + $0xf] sm:$0xff]
          %v2651 = vld [vmem:[%s2648 + $0x17] sm:$0xff]
          %v2652 = vld [vmem:[%s2648 + $0x1f] sm:$0xff]
          %v2653 = vld [vmem:[%s2648 + $0x37] sm:$0xff]
          %v2654 = vld [vmem:[%s2648 + $0x3f] sm:$0xff]
          %v2655 = vld [vmem:[%s2648 + $0x47] sm:$0xff]
          %v2656 = vld [vmem:[%s2648 + $0x4f] sm:$0xff]
          %v2657 = vld [vmem:[%s2648 + $0x67] sm:$0xff]
          %v2658 = vld [vmem:[%s2648 + $0x6f] sm:$0xff]
          %v2659 = vld [vmem:[%s2648 + $0x77] sm:$0xff]
          %v2660 = vld [vmem:[%s2648 + $0x7f] sm:$0xff]
          %v2661 = vld [vmem:[%s2648 + $0x97] sm:$0xff]
          %v2662 = vld [vmem:[%s2648 + $0x9f] sm:$0xff]
          %v2663 = vld [vmem:[%s2648 + $0xa7] sm:$0xff]
          %v2664 = vld [vmem:[%s2648 + $0xaf] sm:$0xff]
          %v2665 = vld [vmem:[%s2648 + $0xc7] sm:$0xff]
          %v2666 = vld [vmem:[%s2648 + $0xcf] sm:$0xff]
          %v2667 = vld [vmem:[%s2648 + $0xd7] sm:$0xff]
          %v2668 = vld [vmem:[%s2648 + $0xdf] sm:$0xff]
          %v2669 = vld [vmem:[%s2648 + $0xf7] sm:$0xff]
          %v2670 = vld [vmem:[%s2648 + $0xff] sm:$0xff]
          %v2671 = vld [vmem:[%s2648 + $0x107] sm:$0xff]
          %v2672 = vld [vmem:[%s2648 + $0x10f] sm:$0xff]
          %v2673 = vld [vmem:[%s2648 + $0x127] sm:$0xff]
          %v2674 = vld [vmem:[%s2648 + $0x12f] sm:$0xff]
          %v2675 = vld [vmem:[%s2648 + $0x137] sm:$0xff]
          %v2676 = vld [vmem:[%s2648 + $0x13f] sm:$0xff]
          %v2677 = vld [vmem:[%s2648 + $0x157] sm:$0xff]
          %v2678 = vld [vmem:[%s2648 + $0x15f] sm:$0xff]
          %v2679 = vld [vmem:[%s2648 + $0x167] sm:$0xff]
          %v2680 = vld [vmem:[%s2648 + $0x16f] sm:$0xff]
          %v2681 = vpack.c.bf16 %v2650, %v2649
          %v2682 = vpack.c.bf16 %v2652, %v2651
          %v2683 = vpack.c.bf16 %v2654, %v2653
          %v2684 = vpack.c.bf16 %v2656, %v2655
          %v2685 = vpack.c.bf16 %v2658, %v2657
          %v2686 = vpack.c.bf16 %v2660, %v2659
          %v2687 = vpack.c.bf16 %v2662, %v2661
          %v2688 = vpack.c.bf16 %v2664, %v2663
          %v2689 = vpack.c.bf16 %v2666, %v2665
          %v2690 = vpack.c.bf16 %v2668, %v2667
          %v2691 = vpack.c.bf16 %v2670, %v2669
          %v2692 = vpack.c.bf16 %v2672, %v2671
          %v2693 = vpack.c.bf16 %v2674, %v2673
          %v2694 = vpack.c.bf16 %v2676, %v2675
          %v2695 = vpack.c.bf16 %v2678, %v2677
          %v2696 = vpack.c.bf16 %v2680, %v2679
          %s2697 = sadd.s32 48, %s808
          %s2698 = smul.addr %s2697, 4
          %s2699 = scalar_lea.vmem %s1, %s2698
          %v2700 = vld [vmem:[%s2699] sm:$0xf]
          %v2701 = vld [vmem:[%s2699 + $0x4] sm:$0xf]
          %v2702 = vld [vmem:[%s2699 + $0x8] sm:$0xf]
          %v2703 = vld [vmem:[%s2699 + $0xc] sm:$0xf]
          %v2704 = vld [vmem:[%s2699 + $0x10] sm:$0xf]
          %v2705 = vld [vmem:[%s2699 + $0x14] sm:$0xf]
          %v2706 = vld [vmem:[%s2699 + $0x18] sm:$0xf]
          %v2707 = vld [vmem:[%s2699 + $0x1c] sm:$0xf]
          %v2716 = vunpack.c.l.b16 %v2700
          %v2717 = vunpack.c.l.b16 %v2701
          %v2718 = vunpack.c.l.b16 %v2702
          %v2719 = vunpack.c.l.b16 %v2703
          %v2720 = vunpack.c.l.b16 %v2704
          %v2721 = vunpack.c.l.b16 %v2705
          %v2722 = vunpack.c.l.b16 %v2706
          %v2723 = vunpack.c.l.b16 %v2707
          %v2724 = vpack.c.b16 %v2717, %v2716
          %v2725 = vpack.c.b16 %v2719, %v2718
          %v2726 = vpack.c.b16 %v2721, %v2720
          %v2727 = vpack.c.b16 %v2723, %v2722
          %v2733 = vsel %vm902, %v2681, 0
          %v2736 = vsel %vm902, %v2682, 0
          %v2739 = vsel %vm902, %v2683, 0
          %v2742 = vsel %vm902, %v2684, 0
          %v2745 = vsel %vm902, %v2685, 0
          %v2748 = vsel %vm902, %v2686, 0
          %v2751 = vsel %vm902, %v2687, 0
          %v2754 = vsel %vm902, %v2688, 0
          %v2757 = vsel %vm902, %v2689, 0
          %v2760 = vsel %vm902, %v2690, 0
          %v2763 = vsel %vm902, %v2691, 0
          %v2766 = vsel %vm902, %v2692, 0
          %v2769 = vsel %vm902, %v2693, 0
          %v2772 = vsel %vm902, %v2694, 0
          %v2775 = vsel %vm902, %v2695, 0
          %v2778 = vsel %vm902, %v2696, 0
          %2780 = vmatprep.subr.bf16.mxu0 0
          %2781 = vmatpush1.bf16.msra.mxu0 %v2724
          %2782 = vmatprep.subr.bf16.mxu0 0
          %2783 = vmatpush1.bf16.msra.mxu0 %v2725
          %2784 = vmatprep.subr.bf16.mxu0 0
          %2785 = vmatpush1.bf16.msra.mxu0 %v2726
          %2786 = vmatprep.subr.bf16.mxu0 0
          %2787 = vmatpush1.bf16.msra.mxu0 %v2727
          %2788 = vmatprep.subr.bf16.mxu0 0
          %2789 = vmatpush1.bf16.msra.mxu0 0
          %2790 = vmatprep.subr.bf16.mxu0 0
          %2791 = vmatpush1.bf16.msra.mxu0 0
          %2792 = vmatprep.subr.bf16.mxu0 0
          %2793 = vmatpush1.bf16.msra.mxu0 0
          %2794 = vmatprep.subr.bf16.mxu0 0
          %2795 = vmatpush1.bf16.msra.mxu0 0
          %2796 = vmatprep.subr.bf16.mxu0 0
          %2797 = vmatpush1.bf16.msra.mxu0 0
          %2798 = vmatprep.subr.bf16.mxu0 0
          %2799 = vmatpush1.bf16.msra.mxu0 0
          %2800 = vmatprep.subr.bf16.mxu0 0
          %2801 = vmatpush1.bf16.msra.mxu0 0
          %2802 = vmatprep.subr.bf16.mxu0 0
          %2803 = vmatpush1.bf16.msra.mxu0 0
          %2804 = vmatprep.subr.bf16.mxu0 0
          %2805 = vmatpush1.bf16.msra.mxu0 0
          %2806 = vmatprep.subr.bf16.mxu0 0
          %2807 = vmatpush1.bf16.msra.mxu0 0
          %2808 = vmatprep.subr.bf16.mxu0 0
          %2809 = vmatpush1.bf16.msra.mxu0 0
          %2810 = vmatprep.subr.bf16.mxu0 0
          %2811 = vmatpush1.bf16.msra.mxu0 0
          %2812 = vmatprep.mubr.bf16.mxu0 0
          %2813 = vmatmul.mubr.bf16.gmra.mrb[0].mxu0 %v2733
          %v2814 = vpop.f32.mrb[0].mxu0
          %v2815 = vadd.f32 0.0, %v2814
          %v2816 = vpop.f32.mrb[0].mxu0
          %v2817 = vpop.f32.mrb[0].mxu0
          %v2818 = vadd.f32 0.0, %v2817
          %v2819 = vpop.f32.mrb[0].mxu0
          %2820 = vmatprep.mubr.bf16.mxu0 0
          %2821 = vmatmul.mubr.bf16.gmra.mrb[0].mxu0 %v2736
          %v2822 = vpop.f32.mrb[0].mxu0
          %v2823 = vadd.f32 0.0, %v2822
          %v2824 = vpop.f32.mrb[0].mxu0
          %v2825 = vpop.f32.mrb[0].mxu0
          %v2826 = vadd.f32 0.0, %v2825
          %v2827 = vpop.f32.mrb[0].mxu0
          %2828 = vmatprep.mubr.bf16.mxu0 0
          %2829 = vmatmul.mubr.bf16.gmra.mrb[0].mxu0 %v2739
          %v2830 = vpop.f32.mrb[0].mxu0
          %v2831 = vadd.f32 0.0, %v2830
          %v2832 = vpop.f32.mrb[0].mxu0
          %v2833 = vpop.f32.mrb[0].mxu0
          %v2834 = vadd.f32 0.0, %v2833
          %v2835 = vpop.f32.mrb[0].mxu0
          %2836 = vmatprep.mubr.bf16.mxu0 0
          %2837 = vmatmul.mubr.bf16.gmra.mrb[0].mxu0 %v2742
          %v2838 = vpop.f32.mrb[0].mxu0
          %v2839 = vadd.f32 0.0, %v2838
          %v2840 = vpop.f32.mrb[0].mxu0
          %v2841 = vpop.f32.mrb[0].mxu0
          %v2842 = vadd.f32 0.0, %v2841
          %v2843 = vpop.f32.mrb[0].mxu0
          %2844 = vmatprep.mubr.bf16.mxu0 0
          %2845 = vmatmul.mubr.bf16.gmra.mrb[0].mxu0 %v2745
          %v2846 = vpop.f32.mrb[0].mxu0
          %v2847 = vadd.f32 0.0, %v2846
          %v2848 = vpop.f32.mrb[0].mxu0
          %v2849 = vpop.f32.mrb[0].mxu0
          %v2850 = vadd.f32 0.0, %v2849
          %v2851 = vpop.f32.mrb[0].mxu0
          %2852 = vmatprep.mubr.bf16.mxu0 0
          %2853 = vmatmul.mubr.bf16.gmra.mrb[0].mxu0 %v2748
          %v2854 = vpop.f32.mrb[0].mxu0
          %v2855 = vadd.f32 0.0, %v2854
          %v2856 = vpop.f32.mrb[0].mxu0
          %v2857 = vpop.f32.mrb[0].mxu0
          %v2858 = vadd.f32 0.0, %v2857
          %v2859 = vpop.f32.mrb[0].mxu0
          %2860 = vmatprep.mubr.bf16.mxu0 0
          %2861 = vmatmul.mubr.bf16.gmra.mrb[0].mxu0 %v2751
          %v2862 = vpop.f32.mrb[0].mxu0
          %v2863 = vadd.f32 0.0, %v2862
          %v2864 = vpop.f32.mrb[0].mxu0
          %v2865 = vpop.f32.mrb[0].mxu0
          %v2866 = vadd.f32 0.0, %v2865
          %v2867 = vpop.f32.mrb[0].mxu0
          %2868 = vmatprep.mubr.bf16.mxu0 0
          %2869 = vmatmul.mubr.bf16.gmra.mrb[0].mxu0 %v2754
          %v2870 = vpop.f32.mrb[0].mxu0
          %v2871 = vadd.f32 0.0, %v2870
          %v2872 = vpop.f32.mrb[0].mxu0
          %v2873 = vpop.f32.mrb[0].mxu0
          %v2874 = vadd.f32 0.0, %v2873
          %v2875 = vpop.f32.mrb[0].mxu0
          %2876 = vmatprep.mubr.bf16.mxu0 0
          %2877 = vmatmul.mubr.bf16.gmra.mrb[0].mxu0 %v2757
          %v2878 = vpop.f32.mrb[0].mxu0
          %v2879 = vadd.f32 0.0, %v2878
          %v2880 = vpop.f32.mrb[0].mxu0
          %v2881 = vpop.f32.mrb[0].mxu0
          %v2882 = vadd.f32 0.0, %v2881
          %v2883 = vpop.f32.mrb[0].mxu0
          %2884 = vmatprep.mubr.bf16.mxu0 0
          %2885 = vmatmul.mubr.bf16.gmra.mrb[0].mxu0 %v2760
          %v2886 = vpop.f32.mrb[0].mxu0
          %v2887 = vadd.f32 0.0, %v2886
          %v2888 = vpop.f32.mrb[0].mxu0
          %v2889 = vpop.f32.mrb[0].mxu0
          %v2890 = vadd.f32 0.0, %v2889
          %v2891 = vpop.f32.mrb[0].mxu0
          %2892 = vmatprep.mubr.bf16.mxu0 0
          %2893 = vmatmul.mubr.bf16.gmra.mrb[0].mxu0 %v2763
          %v2894 = vpop.f32.mrb[0].mxu0
          %v2895 = vadd.f32 0.0, %v2894
          %v2896 = vpop.f32.mrb[0].mxu0
          %v2897 = vpop.f32.mrb[0].mxu0
          %v2898 = vadd.f32 0.0, %v2897
          %v2899 = vpop.f32.mrb[0].mxu0
          %2900 = vmatprep.mubr.bf16.mxu0 0
          %2901 = vmatmul.mubr.bf16.gmra.mrb[0].mxu0 %v2766
          %v2902 = vpop.f32.mrb[0].mxu0
          %v2903 = vadd.f32 0.0, %v2902
          %v2904 = vpop.f32.mrb[0].mxu0
          %v2905 = vpop.f32.mrb[0].mxu0
          %v2906 = vadd.f32 0.0, %v2905
          %v2907 = vpop.f32.mrb[0].mxu0
          %2908 = vmatprep.mubr.bf16.mxu0 0
          %2909 = vmatmul.mubr.bf16.gmra.mrb[0].mxu0 %v2769
          %v2910 = vpop.f32.mrb[0].mxu0
          %v2911 = vadd.f32 0.0, %v2910
          %v2912 = vpop.f32.mrb[0].mxu0
          %v2913 = vpop.f32.mrb[0].mxu0
          %v2914 = vadd.f32 0.0, %v2913
          %v2915 = vpop.f32.mrb[0].mxu0
          %2916 = vmatprep.mubr.bf16.mxu0 0
          %2917 = vmatmul.mubr.bf16.gmra.mrb[0].mxu0 %v2772
          %v2918 = vpop.f32.mrb[0].mxu0
          %v2919 = vadd.f32 0.0, %v2918
          %v2920 = vpop.f32.mrb[0].mxu0
          %v2921 = vpop.f32.mrb[0].mxu0
          %v2922 = vadd.f32 0.0, %v2921
          %v2923 = vpop.f32.mrb[0].mxu0
          %2924 = vmatprep.mubr.bf16.mxu0 0
          %2925 = vmatmul.mubr.bf16.gmra.mrb[0].mxu0 %v2775
          %v2926 = vpop.f32.mrb[0].mxu0
          %v2927 = vadd.f32 0.0, %v2926
          %v2928 = vpop.f32.mrb[0].mxu0
          %v2929 = vpop.f32.mrb[0].mxu0
          %v2930 = vadd.f32 0.0, %v2929
          %v2931 = vpop.f32.mrb[0].mxu0
          %2932 = vmatprep.mubr.bf16.mxu0 0
          %2933 = vmatmul.mubr.bf16.gmra.mrb[0].mxu0 %v2778
          %v2934 = vpop.f32.mrb[0].mxu0
          %v2935 = vadd.f32 0.0, %v2934
          %v2936 = vpop.f32.mrb[0].mxu0
          %v2937 = vpop.f32.mrb[0].mxu0
          %v2938 = vadd.f32 0.0, %v2937
          %v2939 = vpop.f32.mrb[0].mxu0
          %2940 = vdwg.mxu0
          %v2941 = vadd.f32 %v2613, %v2815
          %v2942 = vadd.f32 %v2614, %v2818
          %v2943 = vadd.f32 %v2615, %v2823
          %v2944 = vadd.f32 %v2616, %v2826
          %v2945 = vadd.f32 %v2617, %v2831
          %v2946 = vadd.f32 %v2618, %v2834
          %v2947 = vadd.f32 %v2619, %v2839
          %v2948 = vadd.f32 %v2620, %v2842
          %v2949 = vadd.f32 %v2621, %v2847
          %v2950 = vadd.f32 %v2622, %v2850
          %v2951 = vadd.f32 %v2623, %v2855
          %v2952 = vadd.f32 %v2624, %v2858
          %v2953 = vadd.f32 %v2625, %v2863
          %v2954 = vadd.f32 %v2626, %v2866
          %v2955 = vadd.f32 %v2627, %v2871
          %v2956 = vadd.f32 %v2628, %v2874
          %v2957 = vadd.f32 %v2629, %v2879
          %v2958 = vadd.f32 %v2630, %v2882
          %v2959 = vadd.f32 %v2631, %v2887
          %v2960 = vadd.f32 %v2632, %v2890
          %v2961 = vadd.f32 %v2633, %v2895
          %v2962 = vadd.f32 %v2634, %v2898
          %v2963 = vadd.f32 %v2635, %v2903
          %v2964 = vadd.f32 %v2636, %v2906
          %v2965 = vadd.f32 %v2637, %v2911
          %v2966 = vadd.f32 %v2638, %v2914
          %v2967 = vadd.f32 %v2639, %v2919
          %v2968 = vadd.f32 %v2640, %v2922
          %v2969 = vadd.f32 %v2641, %v2927
          %v2970 = vadd.f32 %v2642, %v2930
          %v2971 = vadd.f32 %v2643, %v2935
          %v2972 = vadd.f32 %v2644, %v2938
          %v2973 = vld [vmem:[%s2648 + $0x8] sm:$0xff]
          %v2974 = vld [vmem:[%s2648 + $0x10] sm:$0xff]
          %v2975 = vld [vmem:[%s2648 + $0x18] sm:$0xff]
          %v2976 = vld [vmem:[%s2648 + $0x20] sm:$0xff]
          %v2977 = vld [vmem:[%s2648 + $0x38] sm:$0xff]
          %v2978 = vld [vmem:[%s2648 + $0x40] sm:$0xff]
          %v2979 = vld [vmem:[%s2648 + $0x48] sm:$0xff]
          %v2980 = vld [vmem:[%s2648 + $0x50] sm:$0xff]
          %v2981 = vld [vmem:[%s2648 + $0x68] sm:$0xff]
          %v2982 = vld [vmem:[%s2648 + $0x70] sm:$0xff]
          %v2983 = vld [vmem:[%s2648 + $0x78] sm:$0xff]
          %v2984 = vld [vmem:[%s2648 + $0x80] sm:$0xff]
          %v2985 = vld [vmem:[%s2648 + $0x98] sm:$0xff]
          %v2986 = vld [vmem:[%s2648 + $0xa0] sm:$0xff]
          %v2987 = vld [vmem:[%s2648 + $0xa8] sm:$0xff]
          %v2988 = vld [vmem:[%s2648 + $0xb0] sm:$0xff]
          %v2989 = vld [vmem:[%s2648 + $0xc8] sm:$0xff]
          %v2990 = vld [vmem:[%s2648 + $0xd0] sm:$0xff]
          %v2991 = vld [vmem:[%s2648 + $0xd8] sm:$0xff]
          %v2992 = vld [vmem:[%s2648 + $0xe0] sm:$0xff]
          %v2993 = vld [vmem:[%s2648 + $0xf8] sm:$0xff]
          %v2994 = vld [vmem:[%s2648 + $0x100] sm:$0xff]
          %v2995 = vld [vmem:[%s2648 + $0x108] sm:$0xff]
          %v2996 = vld [vmem:[%s2648 + $0x110] sm:$0xff]
          %v2997 = vld [vmem:[%s2648 + $0x128] sm:$0xff]
          %v2998 = vld [vmem:[%s2648 + $0x130] sm:$0xff]
          %v2999 = vld [vmem:[%s2648 + $0x138] sm:$0xff]
          %v3000 = vld [vmem:[%s2648 + $0x140] sm:$0xff]
          %v3001 = vld [vmem:[%s2648 + $0x158] sm:$0xff]
          %v3002 = vld [vmem:[%s2648 + $0x160] sm:$0xff]
          %v3003 = vld [vmem:[%s2648 + $0x168] sm:$0xff]
          %v3004 = vld [vmem:[%s2648 + $0x170] sm:$0xff]
          %v3005 = vpack.c.bf16 %v2974, %v2973
          %v3006 = vpack.c.bf16 %v2976, %v2975
          %v3007 = vpack.c.bf16 %v2978, %v2977
          %v3008 = vpack.c.bf16 %v2980, %v2979
          %v3009 = vpack.c.bf16 %v2982, %v2981
          %v3010 = vpack.c.bf16 %v2984, %v2983
          %v3011 = vpack.c.bf16 %v2986, %v2985
          %v3012 = vpack.c.bf16 %v2988, %v2987
          %v3013 = vpack.c.bf16 %v2990, %v2989
          %v3014 = vpack.c.bf16 %v2992, %v2991
          %v3015 = vpack.c.bf16 %v2994, %v2993
          %v3016 = vpack.c.bf16 %v2996, %v2995
          %v3017 = vpack.c.bf16 %v2998, %v2997
          %v3018 = vpack.c.bf16 %v3000, %v2999
          %v3019 = vpack.c.bf16 %v3002, %v3001
          %v3020 = vpack.c.bf16 %v3004, %v3003
          %s3021 = sadd.s32 56, %s808
          %s3022 = smul.addr %s3021, 4
          %s3023 = scalar_lea.vmem %s1, %s3022
          %v3024 = vld [vmem:[%s3023] sm:$0xf]
          %v3025 = vld [vmem:[%s3023 + $0x4] sm:$0xf]
          %v3026 = vld [vmem:[%s3023 + $0x8] sm:$0xf]
          %v3027 = vld [vmem:[%s3023 + $0xc] sm:$0xf]
          %v3028 = vld [vmem:[%s3023 + $0x10] sm:$0xf]
          %v3029 = vld [vmem:[%s3023 + $0x14] sm:$0xf]
          %v3030 = vld [vmem:[%s3023 + $0x18] sm:$0xf]
          %v3031 = vld [vmem:[%s3023 + $0x1c] sm:$0xf]
          %v3040 = vunpack.c.l.b16 %v3024
          %v3041 = vunpack.c.l.b16 %v3025
          %v3042 = vunpack.c.l.b16 %v3026
          %v3043 = vunpack.c.l.b16 %v3027
          %v3044 = vunpack.c.l.b16 %v3028
          %v3045 = vunpack.c.l.b16 %v3029
          %v3046 = vunpack.c.l.b16 %v3030
          %v3047 = vunpack.c.l.b16 %v3031
          %v3048 = vpack.c.b16 %v3041, %v3040
          %v3049 = vpack.c.b16 %v3043, %v3042
          %v3050 = vpack.c.b16 %v3045, %v3044
          %v3051 = vpack.c.b16 %v3047, %v3046
          %v3057 = vsel %vm902, %v3005, 0
          %v3060 = vsel %vm902, %v3006, 0
          %v3063 = vsel %vm902, %v3007, 0
          %v3066 = vsel %vm902, %v3008, 0
          %v3069 = vsel %vm902, %v3009, 0
          %v3072 = vsel %vm902, %v3010, 0
          %v3075 = vsel %vm902, %v3011, 0
          %v3078 = vsel %vm902, %v3012, 0
          %v3081 = vsel %vm902, %v3013, 0
          %v3084 = vsel %vm902, %v3014, 0
          %v3087 = vsel %vm902, %v3015, 0
          %v3090 = vsel %vm902, %v3016, 0
          %v3093 = vsel %vm902, %v3017, 0
          %v3096 = vsel %vm902, %v3018, 0
          %v3099 = vsel %vm902, %v3019, 0
          %v3102 = vsel %vm902, %v3020, 0
          %3104 = vmatprep.subr.bf16.mxu0 0
          %3105 = vmatpush1.bf16.msra.mxu0 %v3048
          %3106 = vmatprep.subr.bf16.mxu0 0
          %3107 = vmatpush1.bf16.msra.mxu0 %v3049
          %3108 = vmatprep.subr.bf16.mxu0 0
          %3109 = vmatpush1.bf16.msra.mxu0 %v3050
          %3110 = vmatprep.subr.bf16.mxu0 0
          %3111 = vmatpush1.bf16.msra.mxu0 %v3051
          %3112 = vmatprep.subr.bf16.mxu0 0
          %3113 = vmatpush1.bf16.msra.mxu0 0
          %3114 = vmatprep.subr.bf16.mxu0 0
          %3115 = vmatpush1.bf16.msra.mxu0 0
          %3116 = vmatprep.subr.bf16.mxu0 0
          %3117 = vmatpush1.bf16.msra.mxu0 0
          %3118 = vmatprep.subr.bf16.mxu0 0
          %3119 = vmatpush1.bf16.msra.mxu0 0
          %3120 = vmatprep.subr.bf16.mxu0 0
          %3121 = vmatpush1.bf16.msra.mxu0 0
          %3122 = vmatprep.subr.bf16.mxu0 0
          %3123 = vmatpush1.bf16.msra.mxu0 0
          %3124 = vmatprep.subr.bf16.mxu0 0
          %3125 = vmatpush1.bf16.msra.mxu0 0
          %3126 = vmatprep.subr.bf16.mxu0 0
          %3127 = vmatpush1.bf16.msra.mxu0 0
          %3128 = vmatprep.subr.bf16.mxu0 0
          %3129 = vmatpush1.bf16.msra.mxu0 0
          %3130 = vmatprep.subr.bf16.mxu0 0
          %3131 = vmatpush1.bf16.msra.mxu0 0
          %3132 = vmatprep.subr.bf16.mxu0 0
          %3133 = vmatpush1.bf16.msra.mxu0 0
          %3134 = vmatprep.subr.bf16.mxu0 0
          %3135 = vmatpush1.bf16.msra.mxu0 0
          %3136 = vmatprep.mubr.bf16.mxu0 0
          %3137 = vmatmul.mubr.bf16.gmra.mrb[0].mxu0 %v3057
          %v3138 = vpop.f32.mrb[0].mxu0
          %v3139 = vadd.f32 0.0, %v3138
          %v3140 = vpop.f32.mrb[0].mxu0
          %v3141 = vpop.f32.mrb[0].mxu0
          %v3142 = vadd.f32 0.0, %v3141
          %v3143 = vpop.f32.mrb[0].mxu0
          %3144 = vmatprep.mubr.bf16.mxu0 0
          %3145 = vmatmul.mubr.bf16.gmra.mrb[0].mxu0 %v3060
          %v3146 = vpop.f32.mrb[0].mxu0
          %v3147 = vadd.f32 0.0, %v3146
          %v3148 = vpop.f32.mrb[0].mxu0
          %v3149 = vpop.f32.mrb[0].mxu0
          %v3150 = vadd.f32 0.0, %v3149
          %v3151 = vpop.f32.mrb[0].mxu0
          %3152 = vmatprep.mubr.bf16.mxu0 0
          %3153 = vmatmul.mubr.bf16.gmra.mrb[0].mxu0 %v3063
          %v3154 = vpop.f32.mrb[0].mxu0
          %v3155 = vadd.f32 0.0, %v3154
          %v3156 = vpop.f32.mrb[0].mxu0
          %v3157 = vpop.f32.mrb[0].mxu0
          %v3158 = vadd.f32 0.0, %v3157
          %v3159 = vpop.f32.mrb[0].mxu0
          %3160 = vmatprep.mubr.bf16.mxu0 0
          %3161 = vmatmul.mubr.bf16.gmra.mrb[0].mxu0 %v3066
          %v3162 = vpop.f32.mrb[0].mxu0
          %v3163 = vadd.f32 0.0, %v3162
          %v3164 = vpop.f32.mrb[0].mxu0
          %v3165 = vpop.f32.mrb[0].mxu0
          %v3166 = vadd.f32 0.0, %v3165
          %v3167 = vpop.f32.mrb[0].mxu0
          %3168 = vmatprep.mubr.bf16.mxu0 0
          %3169 = vmatmul.mubr.bf16.gmra.mrb[0].mxu0 %v3069
          %v3170 = vpop.f32.mrb[0].mxu0
          %v3171 = vadd.f32 0.0, %v3170
          %v3172 = vpop.f32.mrb[0].mxu0
          %v3173 = vpop.f32.mrb[0].mxu0
          %v3174 = vadd.f32 0.0, %v3173
          %v3175 = vpop.f32.mrb[0].mxu0
          %3176 = vmatprep.mubr.bf16.mxu0 0
          %3177 = vmatmul.mubr.bf16.gmra.mrb[0].mxu0 %v3072
          %v3178 = vpop.f32.mrb[0].mxu0
          %v3179 = vadd.f32 0.0, %v3178
          %v3180 = vpop.f32.mrb[0].mxu0
          %v3181 = vpop.f32.mrb[0].mxu0
          %v3182 = vadd.f32 0.0, %v3181
          %v3183 = vpop.f32.mrb[0].mxu0
          %3184 = vmatprep.mubr.bf16.mxu0 0
          %3185 = vmatmul.mubr.bf16.gmra.mrb[0].mxu0 %v3075
          %v3186 = vpop.f32.mrb[0].mxu0
          %v3187 = vadd.f32 0.0, %v3186
          %v3188 = vpop.f32.mrb[0].mxu0
          %v3189 = vpop.f32.mrb[0].mxu0
          %v3190 = vadd.f32 0.0, %v3189
          %v3191 = vpop.f32.mrb[0].mxu0
          %3192 = vmatprep.mubr.bf16.mxu0 0
          %3193 = vmatmul.mubr.bf16.gmra.mrb[0].mxu0 %v3078
          %v3194 = vpop.f32.mrb[0].mxu0
          %v3195 = vadd.f32 0.0, %v3194
          %v3196 = vpop.f32.mrb[0].mxu0
          %v3197 = vpop.f32.mrb[0].mxu0
          %v3198 = vadd.f32 0.0, %v3197
          %v3199 = vpop.f32.mrb[0].mxu0
          %3200 = vmatprep.mubr.bf16.mxu0 0
          %3201 = vmatmul.mubr.bf16.gmra.mrb[0].mxu0 %v3081
          %v3202 = vpop.f32.mrb[0].mxu0
          %v3203 = vadd.f32 0.0, %v3202
          %v3204 = vpop.f32.mrb[0].mxu0
          %v3205 = vpop.f32.mrb[0].mxu0
          %v3206 = vadd.f32 0.0, %v3205
          %v3207 = vpop.f32.mrb[0].mxu0
          %3208 = vmatprep.mubr.bf16.mxu0 0
          %3209 = vmatmul.mubr.bf16.gmra.mrb[0].mxu0 %v3084
          %v3210 = vpop.f32.mrb[0].mxu0
          %v3211 = vadd.f32 0.0, %v3210
          %v3212 = vpop.f32.mrb[0].mxu0
          %v3213 = vpop.f32.mrb[0].mxu0
          %v3214 = vadd.f32 0.0, %v3213
          %v3215 = vpop.f32.mrb[0].mxu0
          %3216 = vmatprep.mubr.bf16.mxu0 0
          %3217 = vmatmul.mubr.bf16.gmra.mrb[0].mxu0 %v3087
          %v3218 = vpop.f32.mrb[0].mxu0
          %v3219 = vadd.f32 0.0, %v3218
          %v3220 = vpop.f32.mrb[0].mxu0
          %v3221 = vpop.f32.mrb[0].mxu0
          %v3222 = vadd.f32 0.0, %v3221
          %v3223 = vpop.f32.mrb[0].mxu0
          %3224 = vmatprep.mubr.bf16.mxu0 0
          %3225 = vmatmul.mubr.bf16.gmra.mrb[0].mxu0 %v3090
          %v3226 = vpop.f32.mrb[0].mxu0
          %v3227 = vadd.f32 0.0, %v3226
          %v3228 = vpop.f32.mrb[0].mxu0
          %v3229 = vpop.f32.mrb[0].mxu0
          %v3230 = vadd.f32 0.0, %v3229
          %v3231 = vpop.f32.mrb[0].mxu0
          %3232 = vmatprep.mubr.bf16.mxu0 0
          %3233 = vmatmul.mubr.bf16.gmra.mrb[0].mxu0 %v3093
          %v3234 = vpop.f32.mrb[0].mxu0
          %v3235 = vadd.f32 0.0, %v3234
          %v3236 = vpop.f32.mrb[0].mxu0
          %v3237 = vpop.f32.mrb[0].mxu0
          %v3238 = vadd.f32 0.0, %v3237
          %v3239 = vpop.f32.mrb[0].mxu0
          %3240 = vmatprep.mubr.bf16.mxu0 0
          %3241 = vmatmul.mubr.bf16.gmra.mrb[0].mxu0 %v3096
          %v3242 = vpop.f32.mrb[0].mxu0
          %v3243 = vadd.f32 0.0, %v3242
          %v3244 = vpop.f32.mrb[0].mxu0
          %v3245 = vpop.f32.mrb[0].mxu0
          %v3246 = vadd.f32 0.0, %v3245
          %v3247 = vpop.f32.mrb[0].mxu0
          %3248 = vmatprep.mubr.bf16.mxu0 0
          %3249 = vmatmul.mubr.bf16.gmra.mrb[0].mxu0 %v3099
          %v3250 = vpop.f32.mrb[0].mxu0
          %v3251 = vadd.f32 0.0, %v3250
          %v3252 = vpop.f32.mrb[0].mxu0
          %v3253 = vpop.f32.mrb[0].mxu0
          %v3254 = vadd.f32 0.0, %v3253
          %v3255 = vpop.f32.mrb[0].mxu0
          %3256 = vmatprep.mubr.bf16.mxu0 0
          %3257 = vmatmul.mubr.bf16.gmra.mrb[0].mxu0 %v3102
          %v3258 = vpop.f32.mrb[0].mxu0
          %v3259 = vadd.f32 0.0, %v3258
          %v3260 = vpop.f32.mrb[0].mxu0
          %v3261 = vpop.f32.mrb[0].mxu0
          %v3262 = vadd.f32 0.0, %v3261
          %v3263 = vpop.f32.mrb[0].mxu0
          %3264 = vdwg.mxu0
          %v3265 = vadd.f32 %v2941, %v3139
          %v3266 = vadd.f32 %v2942, %v3142
          %v3267 = vadd.f32 %v2943, %v3147
          %v3268 = vadd.f32 %v2944, %v3150
          %v3269 = vadd.f32 %v2945, %v3155
          %v3270 = vadd.f32 %v2946, %v3158
          %v3271 = vadd.f32 %v2947, %v3163
          %v3272 = vadd.f32 %v2948, %v3166
          %v3273 = vadd.f32 %v2949, %v3171
          %v3274 = vadd.f32 %v2950, %v3174
          %v3275 = vadd.f32 %v2951, %v3179
          %v3276 = vadd.f32 %v2952, %v3182
          %v3277 = vadd.f32 %v2953, %v3187
          %v3278 = vadd.f32 %v2954, %v3190
          %v3279 = vadd.f32 %v2955, %v3195
          %v3280 = vadd.f32 %v2956, %v3198
          %v3281 = vadd.f32 %v2957, %v3203
          %v3282 = vadd.f32 %v2958, %v3206
          %v3283 = vadd.f32 %v2959, %v3211
          %v3284 = vadd.f32 %v2960, %v3214
          %v3285 = vadd.f32 %v2961, %v3219
          %v3286 = vadd.f32 %v2962, %v3222
          %v3287 = vadd.f32 %v2963, %v3227
          %v3288 = vadd.f32 %v2964, %v3230
          %v3289 = vadd.f32 %v2965, %v3235
          %v3290 = vadd.f32 %v2966, %v3238
          %v3291 = vadd.f32 %v2967, %v3243
          %v3292 = vadd.f32 %v2968, %v3246
          %v3293 = vadd.f32 %v2969, %v3251
          %v3294 = vadd.f32 %v2970, %v3254
          %v3295 = vadd.f32 %v2971, %v3259
          %v3296 = vadd.f32 %v2972, %v3262
          %v3297 = vld [vmem:[%s2648 + $0x9] sm:$0xff]
          %v3298 = vld [vmem:[%s2648 + $0x11] sm:$0xff]
          %v3299 = vld [vmem:[%s2648 + $0x19] sm:$0xff]
          %v3300 = vld [vmem:[%s2648 + $0x21] sm:$0xff]
          %v3301 = vld [vmem:[%s2648 + $0x39] sm:$0xff]
          %v3302 = vld [vmem:[%s2648 + $0x41] sm:$0xff]
          %v3303 = vld [vmem:[%s2648 + $0x49] sm:$0xff]
          %v3304 = vld [vmem:[%s2648 + $0x51] sm:$0xff]
          %v3305 = vld [vmem:[%s2648 + $0x69] sm:$0xff]
          %v3306 = vld [vmem:[%s2648 + $0x71] sm:$0xff]
          %v3307 = vld [vmem:[%s2648 + $0x79] sm:$0xff]
          %v3308 = vld [vmem:[%s2648 + $0x81] sm:$0xff]
          %v3309 = vld [vmem:[%s2648 + $0x99] sm:$0xff]
          %v3310 = vld [vmem:[%s2648 + $0xa1] sm:$0xff]
          %v3311 = vld [vmem:[%s2648 + $0xa9] sm:$0xff]
          %v3312 = vld [vmem:[%s2648 + $0xb1] sm:$0xff]
          %v3313 = vld [vmem:[%s2648 + $0xc9] sm:$0xff]
          %v3314 = vld [vmem:[%s2648 + $0xd1] sm:$0xff]
          %v3315 = vld [vmem:[%s2648 + $0xd9] sm:$0xff]
          %v3316 = vld [vmem:[%s2648 + $0xe1] sm:$0xff]
          %v3317 = vld [vmem:[%s2648 + $0xf9] sm:$0xff]
          %v3318 = vld [vmem:[%s2648 + $0x101] sm:$0xff]
          %v3319 = vld [vmem:[%s2648 + $0x109] sm:$0xff]
          %v3320 = vld [vmem:[%s2648 + $0x111] sm:$0xff]
          %v3321 = vld [vmem:[%s2648 + $0x129] sm:$0xff]
          %v3322 = vld [vmem:[%s2648 + $0x131] sm:$0xff]
          %v3323 = vld [vmem:[%s2648 + $0x139] sm:$0xff]
          %v3324 = vld [vmem:[%s2648 + $0x141] sm:$0xff]
          %v3325 = vld [vmem:[%s2648 + $0x159] sm:$0xff]
          %v3326 = vld [vmem:[%s2648 + $0x161] sm:$0xff]
          %v3327 = vld [vmem:[%s2648 + $0x169] sm:$0xff]
          %v3328 = vld [vmem:[%s2648 + $0x171] sm:$0xff]
          %v3329 = vpack.c.bf16 %v3298, %v3297
          %v3330 = vpack.c.bf16 %v3300, %v3299
          %v3331 = vpack.c.bf16 %v3302, %v3301
          %v3332 = vpack.c.bf16 %v3304, %v3303
          %v3333 = vpack.c.bf16 %v3306, %v3305
          %v3334 = vpack.c.bf16 %v3308, %v3307
          %v3335 = vpack.c.bf16 %v3310, %v3309
          %v3336 = vpack.c.bf16 %v3312, %v3311
          %v3337 = vpack.c.bf16 %v3314, %v3313
          %v3338 = vpack.c.bf16 %v3316, %v3315
          %v3339 = vpack.c.bf16 %v3318, %v3317
          %v3340 = vpack.c.bf16 %v3320, %v3319
          %v3341 = vpack.c.bf16 %v3322, %v3321
          %v3342 = vpack.c.bf16 %v3324, %v3323
          %v3343 = vpack.c.bf16 %v3326, %v3325
          %v3344 = vpack.c.bf16 %v3328, %v3327
          %s3345 = sadd.s32 64, %s808
          %s3346 = smul.addr %s3345, 4
          %s3347 = scalar_lea.vmem %s1, %s3346
          %v3348 = vld [vmem:[%s3347] sm:$0xf]
          %v3349 = vld [vmem:[%s3347 + $0x4] sm:$0xf]
          %v3350 = vld [vmem:[%s3347 + $0x8] sm:$0xf]
          %v3351 = vld [vmem:[%s3347 + $0xc] sm:$0xf]
          %v3352 = vld [vmem:[%s3347 + $0x10] sm:$0xf]
          %v3353 = vld [vmem:[%s3347 + $0x14] sm:$0xf]
          %v3354 = vld [vmem:[%s3347 + $0x18] sm:$0xf]
          %v3355 = vld [vmem:[%s3347 + $0x1c] sm:$0xf]
          %v3364 = vunpack.c.l.b16 %v3348
          %v3365 = vunpack.c.l.b16 %v3349
          %v3366 = vunpack.c.l.b16 %v3350
          %v3367 = vunpack.c.l.b16 %v3351
          %v3368 = vunpack.c.l.b16 %v3352
          %v3369 = vunpack.c.l.b16 %v3353
          %v3370 = vunpack.c.l.b16 %v3354
          %v3371 = vunpack.c.l.b16 %v3355
          %v3372 = vpack.c.b16 %v3365, %v3364
          %v3373 = vpack.c.b16 %v3367, %v3366
          %v3374 = vpack.c.b16 %v3369, %v3368
          %v3375 = vpack.c.b16 %v3371, %v3370
          %v3381 = vsel %vm902, %v3329, 0
          %v3384 = vsel %vm902, %v3330, 0
          %v3387 = vsel %vm902, %v3331, 0
          %v3390 = vsel %vm902, %v3332, 0
          %v3393 = vsel %vm902, %v3333, 0
          %v3396 = vsel %vm902, %v3334, 0
          %v3399 = vsel %vm902, %v3335, 0
          %v3402 = vsel %vm902, %v3336, 0
          %v3405 = vsel %vm902, %v3337, 0
          %v3408 = vsel %vm902, %v3338, 0
          %v3411 = vsel %vm902, %v3339, 0
          %v3414 = vsel %vm902, %v3340, 0
          %v3417 = vsel %vm902, %v3341, 0
          %v3420 = vsel %vm902, %v3342, 0
          %v3423 = vsel %vm902, %v3343, 0
          %v3426 = vsel %vm902, %v3344, 0
          %3428 = vmatprep.subr.bf16.mxu0 0
          %3429 = vmatpush1.bf16.msra.mxu0 %v3372
          %3430 = vmatprep.subr.bf16.mxu0 0
          %3431 = vmatpush1.bf16.msra.mxu0 %v3373
          %3432 = vmatprep.subr.bf16.mxu0 0
          %3433 = vmatpush1.bf16.msra.mxu0 %v3374
          %3434 = vmatprep.subr.bf16.mxu0 0
          %3435 = vmatpush1.bf16.msra.mxu0 %v3375
          %3436 = vmatprep.subr.bf16.mxu0 0
          %3437 = vmatpush1.bf16.msra.mxu0 0
          %3438 = vmatprep.subr.bf16.mxu0 0
          %3439 = vmatpush1.bf16.msra.mxu0 0
          %3440 = vmatprep.subr.bf16.mxu0 0
          %3441 = vmatpush1.bf16.msra.mxu0 0
          %3442 = vmatprep.subr.bf16.mxu0 0
          %3443 = vmatpush1.bf16.msra.mxu0 0
          %3444 = vmatprep.subr.bf16.mxu0 0
          %3445 = vmatpush1.bf16.msra.mxu0 0
          %3446 = vmatprep.subr.bf16.mxu0 0
          %3447 = vmatpush1.bf16.msra.mxu0 0
          %3448 = vmatprep.subr.bf16.mxu0 0
          %3449 = vmatpush1.bf16.msra.mxu0 0
          %3450 = vmatprep.subr.bf16.mxu0 0
          %3451 = vmatpush1.bf16.msra.mxu0 0
          %3452 = vmatprep.subr.bf16.mxu0 0
          %3453 = vmatpush1.bf16.msra.mxu0 0
          %3454 = vmatprep.subr.bf16.mxu0 0
          %3455 = vmatpush1.bf16.msra.mxu0 0
          %3456 = vmatprep.subr.bf16.mxu0 0
          %3457 = vmatpush1.bf16.msra.mxu0 0
          %3458 = vmatprep.subr.bf16.mxu0 0
          %3459 = vmatpush1.bf16.msra.mxu0 0
          %3460 = vmatprep.mubr.bf16.mxu0 0
          %3461 = vmatmul.mubr.bf16.gmra.mrb[0].mxu0 %v3381
          %v3462 = vpop.f32.mrb[0].mxu0
          %v3463 = vadd.f32 0.0, %v3462
          %v3464 = vpop.f32.mrb[0].mxu0
          %v3465 = vpop.f32.mrb[0].mxu0
          %v3466 = vadd.f32 0.0, %v3465
          %v3467 = vpop.f32.mrb[0].mxu0
          %3468 = vmatprep.mubr.bf16.mxu0 0
          %3469 = vmatmul.mubr.bf16.gmra.mrb[0].mxu0 %v3384
          %v3470 = vpop.f32.mrb[0].mxu0
          %v3471 = vadd.f32 0.0, %v3470
          %v3472 = vpop.f32.mrb[0].mxu0
          %v3473 = vpop.f32.mrb[0].mxu0
          %v3474 = vadd.f32 0.0, %v3473
          %v3475 = vpop.f32.mrb[0].mxu0
          %3476 = vmatprep.mubr.bf16.mxu0 0
          %3477 = vmatmul.mubr.bf16.gmra.mrb[0].mxu0 %v3387
          %v3478 = vpop.f32.mrb[0].mxu0
          %v3479 = vadd.f32 0.0, %v3478
          %v3480 = vpop.f32.mrb[0].mxu0
          %v3481 = vpop.f32.mrb[0].mxu0
          %v3482 = vadd.f32 0.0, %v3481
          %v3483 = vpop.f32.mrb[0].mxu0
          %3484 = vmatprep.mubr.bf16.mxu0 0
          %3485 = vmatmul.mubr.bf16.gmra.mrb[0].mxu0 %v3390
          %v3486 = vpop.f32.mrb[0].mxu0
          %v3487 = vadd.f32 0.0, %v3486
          %v3488 = vpop.f32.mrb[0].mxu0
          %v3489 = vpop.f32.mrb[0].mxu0
          %v3490 = vadd.f32 0.0, %v3489
          %v3491 = vpop.f32.mrb[0].mxu0
          %3492 = vmatprep.mubr.bf16.mxu0 0
          %3493 = vmatmul.mubr.bf16.gmra.mrb[0].mxu0 %v3393
          %v3494 = vpop.f32.mrb[0].mxu0
          %v3495 = vadd.f32 0.0, %v3494
          %v3496 = vpop.f32.mrb[0].mxu0
          %v3497 = vpop.f32.mrb[0].mxu0
          %v3498 = vadd.f32 0.0, %v3497
          %v3499 = vpop.f32.mrb[0].mxu0
          %3500 = vmatprep.mubr.bf16.mxu0 0
          %3501 = vmatmul.mubr.bf16.gmra.mrb[0].mxu0 %v3396
          %v3502 = vpop.f32.mrb[0].mxu0
          %v3503 = vadd.f32 0.0, %v3502
          %v3504 = vpop.f32.mrb[0].mxu0
          %v3505 = vpop.f32.mrb[0].mxu0
          %v3506 = vadd.f32 0.0, %v3505
          %v3507 = vpop.f32.mrb[0].mxu0
          %3508 = vmatprep.mubr.bf16.mxu0 0
          %3509 = vmatmul.mubr.bf16.gmra.mrb[0].mxu0 %v3399
          %v3510 = vpop.f32.mrb[0].mxu0
          %v3511 = vadd.f32 0.0, %v3510
          %v3512 = vpop.f32.mrb[0].mxu0
          %v3513 = vpop.f32.mrb[0].mxu0
          %v3514 = vadd.f32 0.0, %v3513
          %v3515 = vpop.f32.mrb[0].mxu0
          %3516 = vmatprep.mubr.bf16.mxu0 0
          %3517 = vmatmul.mubr.bf16.gmra.mrb[0].mxu0 %v3402
          %v3518 = vpop.f32.mrb[0].mxu0
          %v3519 = vadd.f32 0.0, %v3518
          %v3520 = vpop.f32.mrb[0].mxu0
          %v3521 = vpop.f32.mrb[0].mxu0
          %v3522 = vadd.f32 0.0, %v3521
          %v3523 = vpop.f32.mrb[0].mxu0
          %3524 = vmatprep.mubr.bf16.mxu0 0
          %3525 = vmatmul.mubr.bf16.gmra.mrb[0].mxu0 %v3405
          %v3526 = vpop.f32.mrb[0].mxu0
          %v3527 = vadd.f32 0.0, %v3526
          %v3528 = vpop.f32.mrb[0].mxu0
          %v3529 = vpop.f32.mrb[0].mxu0
          %v3530 = vadd.f32 0.0, %v3529
          %v3531 = vpop.f32.mrb[0].mxu0
          %3532 = vmatprep.mubr.bf16.mxu0 0
          %3533 = vmatmul.mubr.bf16.gmra.mrb[0].mxu0 %v3408
          %v3534 = vpop.f32.mrb[0].mxu0
          %v3535 = vadd.f32 0.0, %v3534
          %v3536 = vpop.f32.mrb[0].mxu0
          %v3537 = vpop.f32.mrb[0].mxu0
          %v3538 = vadd.f32 0.0, %v3537
          %v3539 = vpop.f32.mrb[0].mxu0
          %3540 = vmatprep.mubr.bf16.mxu0 0
          %3541 = vmatmul.mubr.bf16.gmra.mrb[0].mxu0 %v3411
          %v3542 = vpop.f32.mrb[0].mxu0
          %v3543 = vadd.f32 0.0, %v3542
          %v3544 = vpop.f32.mrb[0].mxu0
          %v3545 = vpop.f32.mrb[0].mxu0
          %v3546 = vadd.f32 0.0, %v3545
          %v3547 = vpop.f32.mrb[0].mxu0
          %3548 = vmatprep.mubr.bf16.mxu0 0
          %3549 = vmatmul.mubr.bf16.gmra.mrb[0].mxu0 %v3414
          %v3550 = vpop.f32.mrb[0].mxu0
          %v3551 = vadd.f32 0.0, %v3550
          %v3552 = vpop.f32.mrb[0].mxu0
          %v3553 = vpop.f32.mrb[0].mxu0
          %v3554 = vadd.f32 0.0, %v3553
          %v3555 = vpop.f32.mrb[0].mxu0
          %3556 = vmatprep.mubr.bf16.mxu0 0
          %3557 = vmatmul.mubr.bf16.gmra.mrb[0].mxu0 %v3417
          %v3558 = vpop.f32.mrb[0].mxu0
          %v3559 = vadd.f32 0.0, %v3558
          %v3560 = vpop.f32.mrb[0].mxu0
          %v3561 = vpop.f32.mrb[0].mxu0
          %v3562 = vadd.f32 0.0, %v3561
          %v3563 = vpop.f32.mrb[0].mxu0
          %3564 = vmatprep.mubr.bf16.mxu0 0
          %3565 = vmatmul.mubr.bf16.gmra.mrb[0].mxu0 %v3420
          %v3566 = vpop.f32.mrb[0].mxu0
          %v3567 = vadd.f32 0.0, %v3566
          %v3568 = vpop.f32.mrb[0].mxu0
          %v3569 = vpop.f32.mrb[0].mxu0
          %v3570 = vadd.f32 0.0, %v3569
          %v3571 = vpop.f32.mrb[0].mxu0
          %3572 = vmatprep.mubr.bf16.mxu0 0
          %3573 = vmatmul.mubr.bf16.gmra.mrb[0].mxu0 %v3423
          %v3574 = vpop.f32.mrb[0].mxu0
          %v3575 = vadd.f32 0.0, %v3574
          %v3576 = vpop.f32.mrb[0].mxu0
          %v3577 = vpop.f32.mrb[0].mxu0
          %v3578 = vadd.f32 0.0, %v3577
          %v3579 = vpop.f32.mrb[0].mxu0
          %3580 = vmatprep.mubr.bf16.mxu0 0
          %3581 = vmatmul.mubr.bf16.gmra.mrb[0].mxu0 %v3426
          %v3582 = vpop.f32.mrb[0].mxu0
          %v3583 = vadd.f32 0.0, %v3582
          %v3584 = vpop.f32.mrb[0].mxu0
          %v3585 = vpop.f32.mrb[0].mxu0
          %v3586 = vadd.f32 0.0, %v3585
          %v3587 = vpop.f32.mrb[0].mxu0
          %3588 = vdwg.mxu0
          %v3589 = vadd.f32 %v3265, %v3463
          %v3590 = vadd.f32 %v3266, %v3466
          %v3591 = vadd.f32 %v3267, %v3471
          %v3592 = vadd.f32 %v3268, %v3474
          %v3593 = vadd.f32 %v3269, %v3479
          %v3594 = vadd.f32 %v3270, %v3482
          %v3595 = vadd.f32 %v3271, %v3487
          %v3596 = vadd.f32 %v3272, %v3490
          %v3597 = vadd.f32 %v3273, %v3495
          %v3598 = vadd.f32 %v3274, %v3498
          %v3599 = vadd.f32 %v3275, %v3503
          %v3600 = vadd.f32 %v3276, %v3506
          %v3601 = vadd.f32 %v3277, %v3511
          %v3602 = vadd.f32 %v3278, %v3514
          %v3603 = vadd.f32 %v3279, %v3519
          %v3604 = vadd.f32 %v3280, %v3522
          %v3605 = vadd.f32 %v3281, %v3527
          %v3606 = vadd.f32 %v3282, %v3530
          %v3607 = vadd.f32 %v3283, %v3535
          %v3608 = vadd.f32 %v3284, %v3538
          %v3609 = vadd.f32 %v3285, %v3543
          %v3610 = vadd.f32 %v3286, %v3546
          %v3611 = vadd.f32 %v3287, %v3551
          %v3612 = vadd.f32 %v3288, %v3554
          %v3613 = vadd.f32 %v3289, %v3559
          %v3614 = vadd.f32 %v3290, %v3562
          %v3615 = vadd.f32 %v3291, %v3567
          %v3616 = vadd.f32 %v3292, %v3570
          %v3617 = vadd.f32 %v3293, %v3575
          %v3618 = vadd.f32 %v3294, %v3578
          %v3619 = vadd.f32 %v3295, %v3583
          %v3620 = vadd.f32 %v3296, %v3586
          %v3622 = vlaneseq
          %v3623 = vshrl.u32 %v3622, 7
          %v3624 = vsub.s32 0, %v3623
          %v3625 = vrot.slane %v748, %v3624
          %v3627 = vadd.f32 %v3589, %v3625
          %v3628 = vadd.f32 %v3590, %v3625
          %v3629 = vadd.f32 %v3591, %v3625
          %v3630 = vadd.f32 %v3592, %v3625
          %v3631 = vadd.f32 %v3593, %v3625
          %v3632 = vadd.f32 %v3594, %v3625
          %v3633 = vadd.f32 %v3595, %v3625
          %v3634 = vadd.f32 %v3596, %v3625
          %v3635 = vadd.f32 %v3597, %v3625
          %v3636 = vadd.f32 %v3598, %v3625
          %v3637 = vadd.f32 %v3599, %v3625
          %v3638 = vadd.f32 %v3600, %v3625
          %v3639 = vadd.f32 %v3601, %v3625
          %v3640 = vadd.f32 %v3602, %v3625
          %v3641 = vadd.f32 %v3603, %v3625
          %v3642 = vadd.f32 %v3604, %v3625
          %v3643 = vadd.f32 %v3605, %v3625
          %v3644 = vadd.f32 %v3606, %v3625
          %v3645 = vadd.f32 %v3607, %v3625
          %v3646 = vadd.f32 %v3608, %v3625
          %v3647 = vadd.f32 %v3609, %v3625
          %v3648 = vadd.f32 %v3610, %v3625
          %v3649 = vadd.f32 %v3611, %v3625
          %v3650 = vadd.f32 %v3612, %v3625
          %v3651 = vadd.f32 %v3613, %v3625
          %v3652 = vadd.f32 %v3614, %v3625
          %v3653 = vadd.f32 %v3615, %v3625
          %v3654 = vadd.f32 %v3616, %v3625
          %v3655 = vadd.f32 %v3617, %v3625
          %v3656 = vadd.f32 %v3618, %v3625
          %v3657 = vadd.f32 %v3619, %v3625
          %v3658 = vadd.f32 %v3620, %v3625
          %v3659 = vmax.f32 %v3627, 0.0
          %v3660 = vmax.f32 %v3628, 0.0
          %v3661 = vmax.f32 %v3629, 0.0
          %v3662 = vmax.f32 %v3630, 0.0
          %v3663 = vmax.f32 %v3631, 0.0
          %v3664 = vmax.f32 %v3632, 0.0
          %v3665 = vmax.f32 %v3633, 0.0
          %v3666 = vmax.f32 %v3634, 0.0
          %v3667 = vmax.f32 %v3635, 0.0
          %v3668 = vmax.f32 %v3636, 0.0
          %v3669 = vmax.f32 %v3637, 0.0
          %v3670 = vmax.f32 %v3638, 0.0
          %v3671 = vmax.f32 %v3639, 0.0
          %v3672 = vmax.f32 %v3640, 0.0
          %v3673 = vmax.f32 %v3641, 0.0
          %v3674 = vmax.f32 %v3642, 0.0
          %v3675 = vmax.f32 %v3643, 0.0
          %v3676 = vmax.f32 %v3644, 0.0
          %v3677 = vmax.f32 %v3645, 0.0
          %v3678 = vmax.f32 %v3646, 0.0
          %v3679 = vmax.f32 %v3647, 0.0
          %v3680 = vmax.f32 %v3648, 0.0
          %v3681 = vmax.f32 %v3649, 0.0
          %v3682 = vmax.f32 %v3650, 0.0
          %v3683 = vmax.f32 %v3651, 0.0
          %v3684 = vmax.f32 %v3652, 0.0
          %v3685 = vmax.f32 %v3653, 0.0
          %v3686 = vmax.f32 %v3654, 0.0
          %v3687 = vmax.f32 %v3655, 0.0
          %v3688 = vmax.f32 %v3656, 0.0
          %v3689 = vmax.f32 %v3657, 0.0
          %v3690 = vmax.f32 %v3658, 0.0
          %p3691 = scmp.lt.s32.totalorder %s22, 1
          // Predicated region
          $region44: #{tpu_custom_call.1} parent=40 // pred_check
            %p3692 = pneg %p3691
          $region45: #{tpu_custom_call.1} parent=40 // pred_check_branch
            %3694 = sbr.rel (%p3692) target = $region47
          $region46: #{tpu_custom_call.1} parent=40 // pred_region
            %s3695 = smul.u32 %s746, 1632
            %s3696 = sadd.s32 %s1670, %s3695
            %s3697 = scalar_lea.vmem [#allocation2], %s3696
            %3698 = vst.msk [vmem:[%s3697 + $0x8] sm:$0xff] %vm902, %v3659
            %3699 = vst.msk [vmem:[%s3697 + $0x10] sm:$0xff] %vm902, %v3660
            %3700 = vst.msk [vmem:[%s3697 + $0x18] sm:$0xff] %vm902, %v3661
            %3701 = vst.msk [vmem:[%s3697 + $0x20] sm:$0xff] %vm902, %v3662
            %3702 = vst.msk [vmem:[%s3697 + $0x38] sm:$0xff] %vm902, %v3663
            %3703 = vst.msk [vmem:[%s3697 + $0x40] sm:$0xff] %vm902, %v3664
            %3704 = vst.msk [vmem:[%s3697 + $0x48] sm:$0xff] %vm902, %v3665
            %3705 = vst.msk [vmem:[%s3697 + $0x50] sm:$0xff] %vm902, %v3666
            %3706 = vst.msk [vmem:[%s3697 + $0x68] sm:$0xff] %vm902, %v3667
            %3707 = vst.msk [vmem:[%s3697 + $0x70] sm:$0xff] %vm902, %v3668
            %3708 = vst.msk [vmem:[%s3697 + $0x78] sm:$0xff] %vm902, %v3669
            %3709 = vst.msk [vmem:[%s3697 + $0x80] sm:$0xff] %vm902, %v3670
            %3710 = vst.msk [vmem:[%s3697 + $0x98] sm:$0xff] %vm902, %v3671
            %3711 = vst.msk [vmem:[%s3697 + $0xa0] sm:$0xff] %vm902, %v3672
            %3712 = vst.msk [vmem:[%s3697 + $0xa8] sm:$0xff] %vm902, %v3673
            %3713 = vst.msk [vmem:[%s3697 + $0xb0] sm:$0xff] %vm902, %v3674
            %3714 = vst.msk [vmem:[%s3697 + $0xc8] sm:$0xff] %vm902, %v3675
            %3715 = vst.msk [vmem:[%s3697 + $0xd0] sm:$0xff] %vm902, %v3676
            %3716 = vst.msk [vmem:[%s3697 + $0xd8] sm:$0xff] %vm902, %v3677
            %3717 = vst.msk [vmem:[%s3697 + $0xe0] sm:$0xff] %vm902, %v3678
            %3718 = vst.msk [vmem:[%s3697 + $0xf8] sm:$0xff] %vm902, %v3679
            %3719 = vst.msk [vmem:[%s3697 + $0x100] sm:$0xff] %vm902, %v3680
            %3720 = vst.msk [vmem:[%s3697 + $0x108] sm:$0xff] %vm902, %v3681
            %3721 = vst.msk [vmem:[%s3697 + $0x110] sm:$0xff] %vm902, %v3682
            %3722 = vst.msk [vmem:[%s3697 + $0x128] sm:$0xff] %vm902, %v3683
            %3723 = vst.msk [vmem:[%s3697 + $0x130] sm:$0xff] %vm902, %v3684
            %3724 = vst.msk [vmem:[%s3697 + $0x138] sm:$0xff] %vm902, %v3685
            %3725 = vst.msk [vmem:[%s3697 + $0x140] sm:$0xff] %vm902, %v3686
            %3726 = vst.msk [vmem:[%s3697 + $0x158] sm:$0xff] %vm902, %v3687
            %3727 = vst.msk [vmem:[%s3697 + $0x160] sm:$0xff] %vm902, %v3688
            %3728 = vst.msk [vmem:[%s3697 + $0x168] sm:$0xff] %vm902, %v3689
            %3729 = vst.msk [vmem:[%s3697 + $0x170] sm:$0xff] %vm902, %v3690
          $region47: #{tpu_custom_call.1} parent=40 // pred_fallthru
            _
          %p3730 = scmp.eq.s32.totalorder %s22, 1
          // Predicated region
          $region48: #{tpu_custom_call.1} parent=40 // pred_check
            %p3731 = pneg %p3730
          $region49: #{tpu_custom_call.1} parent=40 // pred_check_branch
            %3733 = sbr.rel (%p3731) target = $region51
          $region50: #{tpu_custom_call.1} parent=40 // pred_region
            %v3734 = vsel %vm902, %v3659, -inf
            %v3735 = vsel %vm902, %v3663, -inf
            %v3736 = vmax.f32 %v3734, %v3735
            %v3737 = vsel %vm902, %v3660, -inf
            %v3738 = vsel %vm902, %v3664, -inf
            %v3739 = vmax.f32 %v3737, %v3738
            %v3740 = vsel %vm902, %v3661, -inf
            %v3741 = vsel %vm902, %v3665, -inf
            %v3742 = vmax.f32 %v3740, %v3741
            %v3743 = vsel %vm902, %v3662, -inf
            %v3744 = vsel %vm902, %v3666, -inf
            %v3745 = vmax.f32 %v3743, %v3744
            %v3746 = vsel %vm902, %v3667, -inf
            %v3747 = vsel %vm902, %v3671, -inf
            %v3748 = vmax.f32 %v3746, %v3747
            %v3749 = vsel %vm902, %v3668, -inf
            %v3750 = vsel %vm902, %v3672, -inf
            %v3751 = vmax.f32 %v3749, %v3750
            %v3752 = vsel %vm902, %v3669, -inf
            %v3753 = vsel %vm902, %v3673, -inf
            %v3754 = vmax.f32 %v3752, %v3753
            %v3755 = vsel %vm902, %v3670, -inf
            %v3756 = vsel %vm902, %v3674, -inf
            %v3757 = vmax.f32 %v3755, %v3756
            %v3758 = vsel %vm902, %v3675, -inf
            %v3759 = vsel %vm902, %v3679, -inf
            %v3760 = vmax.f32 %v3758, %v3759
            %v3761 = vsel %vm902, %v3676, -inf
            %v3762 = vsel %vm902, %v3680, -inf
            %v3763 = vmax.f32 %v3761, %v3762
            %v3764 = vsel %vm902, %v3677, -inf
            %v3765 = vsel %vm902, %v3681, -inf
            %v3766 = vmax.f32 %v3764, %v3765
            %v3767 = vsel %vm902, %v3678, -inf
            %v3768 = vsel %vm902, %v3682, -inf
            %v3769 = vmax.f32 %v3767, %v3768
            %v3770 = vsel %vm902, %v3683, -inf
            %v3771 = vsel %vm902, %v3687, -inf
            %v3772 = vmax.f32 %v3770, %v3771
            %v3773 = vsel %vm902, %v3684, -inf
            %v3774 = vsel %vm902, %v3688, -inf
            %v3775 = vmax.f32 %v3773, %v3774
            %v3776 = vsel %vm902, %v3685, -inf
            %v3777 = vsel %vm902, %v3689, -inf
            %v3778 = vmax.f32 %v3776, %v3777
            %v3779 = vsel %vm902, %v3686, -inf
            %v3780 = vsel %vm902, %v3690, -inf
            %v3781 = vmax.f32 %v3779, %v3780
            %v3798 = vcombine.high %v3736, %v3736
            %v3800 = vunpack.c.l.s4 1983009808
            %v3801 = vunpack.c.0.s8 %v3800
            %v3802 = vlaneseq
            %v3803 = vshrl.u32 %v3802, 7
            %v3804 = vsub.s32 %v3801, %v3803
            %v3805 = vrot.slane %v3736, %v3804
            %v3807 = vunpack.c.l.s4 1983009808
            %v3808 = vunpack.c.0.s8 %v3807
            %v3809 = vlaneseq
            %v3810 = vshrl.u32 %v3809, 7
            %v3811 = vsub.s32 %v3808, %v3810
            %v3812 = vrot.slane %v3798, %v3811
            %v3813 = vcombine.high %v3805, %v3805
            %v3814 = vcombine.high %v3812, %v3812
            %v3815 = vcombine.high %v3739, %v3739
            %v3817 = vunpack.c.l.s4 1983009808
            %v3818 = vunpack.c.0.s8 %v3817
            %v3819 = vlaneseq
            %v3820 = vshrl.u32 %v3819, 7
            %v3821 = vsub.s32 %v3818, %v3820
            %v3822 = vrot.slane %v3739, %v3821
            %v3824 = vunpack.c.l.s4 1983009808
            %v3825 = vunpack.c.0.s8 %v3824
            %v3826 = vlaneseq
            %v3827 = vshrl.u32 %v3826, 7
            %v3828 = vsub.s32 %v3825, %v3827
            %v3829 = vrot.slane %v3815, %v3828
            %v3830 = vcombine.high %v3822, %v3822
            %v3831 = vcombine.high %v3829, %v3829
            %v3832 = vcombine.high %v3742, %v3742
            %v3834 = vunpack.c.l.s4 1983009808
            %v3835 = vunpack.c.0.s8 %v3834
            %v3836 = vlaneseq
            %v3837 = vshrl.u32 %v3836, 7
            %v3838 = vsub.s32 %v3835, %v3837
            %v3839 = vrot.slane %v3742, %v3838
            %v3841 = vunpack.c.l.s4 1983009808
            %v3842 = vunpack.c.0.s8 %v3841
            %v3843 = vlaneseq
            %v3844 = vshrl.u32 %v3843, 7
            %v3845 = vsub.s32 %v3842, %v3844
            %v3846 = vrot.slane %v3832, %v3845
            %v3847 = vcombine.high %v3839, %v3839
            %v3848 = vcombine.high %v3846, %v3846
            %v3849 = vcombine.high %v3745, %v3745
            %v3851 = vunpack.c.l.s4 1983009808
            %v3852 = vunpack.c.0.s8 %v3851
            %v3853 = vlaneseq
            %v3854 = vshrl.u32 %v3853, 7
            %v3855 = vsub.s32 %v3852, %v3854
            %v3856 = vrot.slane %v3745, %v3855
            %v3858 = vunpack.c.l.s4 1983009808
            %v3859 = vunpack.c.0.s8 %v3858
            %v3860 = vlaneseq
            %v3861 = vshrl.u32 %v3860, 7
            %v3862 = vsub.s32 %v3859, %v3861
            %v3863 = vrot.slane %v3849, %v3862
            %v3864 = vcombine.high %v3856, %v3856
            %v3865 = vcombine.high %v3863, %v3863
            %v3866 = vcombine.high %v3748, %v3748
            %v3868 = vunpack.c.l.s4 1983009808
            %v3869 = vunpack.c.0.s8 %v3868
            %v3870 = vlaneseq
            %v3871 = vshrl.u32 %v3870, 7
            %v3872 = vsub.s32 %v3869, %v3871
            %v3873 = vrot.slane %v3748, %v3872
            %v3875 = vunpack.c.l.s4 1983009808
            %v3876 = vunpack.c.0.s8 %v3875
            %v3877 = vlaneseq
            %v3878 = vshrl.u32 %v3877, 7
            %v3879 = vsub.s32 %v3876, %v3878
            %v3880 = vrot.slane %v3866, %v3879
            %v3881 = vcombine.high %v3873, %v3873
            %v3882 = vcombine.high %v3880, %v3880
            %v3883 = vcombine.high %v3751, %v3751
            %v3885 = vunpack.c.l.s4 1983009808
            %v3886 = vunpack.c.0.s8 %v3885
            %v3887 = vlaneseq
            %v3888 = vshrl.u32 %v3887, 7
            %v3889 = vsub.s32 %v3886, %v3888
            %v3890 = vrot.slane %v3751, %v3889
            %v3892 = vunpack.c.l.s4 1983009808
            %v3893 = vunpack.c.0.s8 %v3892
            %v3894 = vlaneseq
            %v3895 = vshrl.u32 %v3894, 7
            %v3896 = vsub.s32 %v3893, %v3895
            %v3897 = vrot.slane %v3883, %v3896
            %v3898 = vcombine.high %v3890, %v3890
            %v3899 = vcombine.high %v3897, %v3897
            %v3900 = vcombine.high %v3754, %v3754
            %v3902 = vunpack.c.l.s4 1983009808
            %v3903 = vunpack.c.0.s8 %v3902
            %v3904 = vlaneseq
            %v3905 = vshrl.u32 %v3904, 7
            %v3906 = vsub.s32 %v3903, %v3905
            %v3907 = vrot.slane %v3754, %v3906
            %v3909 = vunpack.c.l.s4 1983009808
            %v3910 = vunpack.c.0.s8 %v3909
            %v3911 = vlaneseq
            %v3912 = vshrl.u32 %v3911, 7
            %v3913 = vsub.s32 %v3910, %v3912
            %v3914 = vrot.slane %v3900, %v3913
            %v3915 = vcombine.high %v3907, %v3907
            %v3916 = vcombine.high %v3914, %v3914
            %v3917 = vcombine.high %v3757, %v3757
            %v3919 = vunpack.c.l.s4 1983009808
            %v3920 = vunpack.c.0.s8 %v3919
            %v3921 = vlaneseq
            %v3922 = vshrl.u32 %v3921, 7
            %v3923 = vsub.s32 %v3920, %v3922
            %v3924 = vrot.slane %v3757, %v3923
            %v3926 = vunpack.c.l.s4 1983009808
            %v3927 = vunpack.c.0.s8 %v3926
            %v3928 = vlaneseq
            %v3929 = vshrl.u32 %v3928, 7
            %v3930 = vsub.s32 %v3927, %v3929
            %v3931 = vrot.slane %v3917, %v3930
            %v3932 = vcombine.high %v3924, %v3924
            %v3933 = vcombine.high %v3931, %v3931
            %v3934 = vcombine.high %v3760, %v3760
            %v3936 = vunpack.c.l.s4 1983009808
            %v3937 = vunpack.c.0.s8 %v3936
            %v3938 = vlaneseq
            %v3939 = vshrl.u32 %v3938, 7
            %v3940 = vsub.s32 %v3937, %v3939
            %v3941 = vrot.slane %v3760, %v3940
            %v3943 = vunpack.c.l.s4 1983009808
            %v3944 = vunpack.c.0.s8 %v3943
            %v3945 = vlaneseq
            %v3946 = vshrl.u32 %v3945, 7
            %v3947 = vsub.s32 %v3944, %v3946
            %v3948 = vrot.slane %v3934, %v3947
            %v3949 = vcombine.high %v3941, %v3941
            %v3950 = vcombine.high %v3948, %v3948
            %v3951 = vcombine.high %v3763, %v3763
            %v3953 = vunpack.c.l.s4 1983009808
            %v3954 = vunpack.c.0.s8 %v3953
            %v3955 = vlaneseq
            %v3956 = vshrl.u32 %v3955, 7
            %v3957 = vsub.s32 %v3954, %v3956
            %v3958 = vrot.slane %v3763, %v3957
            %v3960 = vunpack.c.l.s4 1983009808
            %v3961 = vunpack.c.0.s8 %v3960
            %v3962 = vlaneseq
            %v3963 = vshrl.u32 %v3962, 7
            %v3964 = vsub.s32 %v3961, %v3963
            %v3965 = vrot.slane %v3951, %v3964
            %v3966 = vcombine.high %v3958, %v3958
            %v3967 = vcombine.high %v3965, %v3965
            %v3968 = vcombine.high %v3766, %v3766
            %v3970 = vunpack.c.l.s4 1983009808
            %v3971 = vunpack.c.0.s8 %v3970
            %v3972 = vlaneseq
            %v3973 = vshrl.u32 %v3972, 7
            %v3974 = vsub.s32 %v3971, %v3973
            %v3975 = vrot.slane %v3766, %v3974
            %v3977 = vunpack.c.l.s4 1983009808
            %v3978 = vunpack.c.0.s8 %v3977
            %v3979 = vlaneseq
            %v3980 = vshrl.u32 %v3979, 7
            %v3981 = vsub.s32 %v3978, %v3980
            %v3982 = vrot.slane %v3968, %v3981
            %v3983 = vcombine.high %v3975, %v3975
            %v3984 = vcombine.high %v3982, %v3982
            %v3985 = vcombine.high %v3769, %v3769
            %v3987 = vunpack.c.l.s4 1983009808
            %v3988 = vunpack.c.0.s8 %v3987
            %v3989 = vlaneseq
            %v3990 = vshrl.u32 %v3989, 7
            %v3991 = vsub.s32 %v3988, %v3990
            %v3992 = vrot.slane %v3769, %v3991
            %v3994 = vunpack.c.l.s4 1983009808
            %v3995 = vunpack.c.0.s8 %v3994
            %v3996 = vlaneseq
            %v3997 = vshrl.u32 %v3996, 7
            %v3998 = vsub.s32 %v3995, %v3997
            %v3999 = vrot.slane %v3985, %v3998
            %v4000 = vcombine.high %v3992, %v3992
            %v4001 = vcombine.high %v3999, %v3999
            %v4002 = vcombine.high %v3772, %v3772
            %v4004 = vunpack.c.l.s4 1983009808
            %v4005 = vunpack.c.0.s8 %v4004
            %v4006 = vlaneseq
            %v4007 = vshrl.u32 %v4006, 7
            %v4008 = vsub.s32 %v4005, %v4007
            %v4009 = vrot.slane %v3772, %v4008
            %v4011 = vunpack.c.l.s4 1983009808
            %v4012 = vunpack.c.0.s8 %v4011
            %v4013 = vlaneseq
            %v4014 = vshrl.u32 %v4013, 7
            %v4015 = vsub.s32 %v4012, %v4014
            %v4016 = vrot.slane %v4002, %v4015
            %v4017 = vcombine.high %v4009, %v4009
            %v4018 = vcombine.high %v4016, %v4016
            %v4019 = vcombine.high %v3775, %v3775
            %v4021 = vunpack.c.l.s4 1983009808
            %v4022 = vunpack.c.0.s8 %v4021
            %v4023 = vlaneseq
            %v4024 = vshrl.u32 %v4023, 7
            %v4025 = vsub.s32 %v4022, %v4024
            %v4026 = vrot.slane %v3775, %v4025
            %v4028 = vunpack.c.l.s4 1983009808
            %v4029 = vunpack.c.0.s8 %v4028
            %v4030 = vlaneseq
            %v4031 = vshrl.u32 %v4030, 7
            %v4032 = vsub.s32 %v4029, %v4031
            %v4033 = vrot.slane %v4019, %v4032
            %v4034 = vcombine.high %v4026, %v4026
            %v4035 = vcombine.high %v4033, %v4033
            %v4036 = vcombine.high %v3778, %v3778
            %v4038 = vunpack.c.l.s4 1983009808
            %v4039 = vunpack.c.0.s8 %v4038
            %v4040 = vlaneseq
            %v4041 = vshrl.u32 %v4040, 7
            %v4042 = vsub.s32 %v4039, %v4041
            %v4043 = vrot.slane %v3778, %v4042
            %v4045 = vunpack.c.l.s4 1983009808
            %v4046 = vunpack.c.0.s8 %v4045
            %v4047 = vlaneseq
            %v4048 = vshrl.u32 %v4047, 7
            %v4049 = vsub.s32 %v4046, %v4048
            %v4050 = vrot.slane %v4036, %v4049
            %v4051 = vcombine.high %v4043, %v4043
            %v4052 = vcombine.high %v4050, %v4050
            %v4053 = vcombine.high %v3781, %v3781
            %v4055 = vunpack.c.l.s4 1983009808
            %v4056 = vunpack.c.0.s8 %v4055
            %v4057 = vlaneseq
            %v4058 = vshrl.u32 %v4057, 7
            %v4059 = vsub.s32 %v4056, %v4058
            %v4060 = vrot.slane %v3781, %v4059
            %v4062 = vunpack.c.l.s4 1983009808
            %v4063 = vunpack.c.0.s8 %v4062
            %v4064 = vlaneseq
            %v4065 = vshrl.u32 %v4064, 7
            %v4066 = vsub.s32 %v4063, %v4065
            %v4067 = vrot.slane %v4053, %v4066
            %v4068 = vcombine.high %v4060, %v4060
            %v4069 = vcombine.high %v4067, %v4067
            %vm4134 = vcmask 517120
            %v4135 = vsel %vm4134, %v3805, -inf
            %v4136 = vrot.slane %v4135, 4
            %v4137 = vmax.f32 %v4135, %v4136
            %v4138 = vrot.slane %v4137, 2
            %v4139 = vmax.f32 %v4137, %v4138
            %v4140 = vrot.slane %v4139, 1
            %v4141 = vmax.f32 %v4139, %v4140
            %v4142 = vsel %vm4134, %v3813, -inf
            %v4143 = vrot.slane %v4142, 4
            %v4144 = vmax.f32 %v4142, %v4143
            %v4145 = vrot.slane %v4144, 2
            %v4146 = vmax.f32 %v4144, %v4145
            %v4147 = vrot.slane %v4146, 1
            %v4148 = vmax.f32 %v4146, %v4147
            %v4149 = vsel %vm4134, %v3812, -inf
            %v4150 = vrot.slane %v4149, 4
            %v4151 = vmax.f32 %v4149, %v4150
            %v4152 = vrot.slane %v4151, 2
            %v4153 = vmax.f32 %v4151, %v4152
            %v4154 = vrot.slane %v4153, 1
            %v4155 = vmax.f32 %v4153, %v4154
            %v4156 = vsel %vm4134, %v3814, -inf
            %v4157 = vrot.slane %v4156, 4
            %v4158 = vmax.f32 %v4156, %v4157
            %v4159 = vrot.slane %v4158, 2
            %v4160 = vmax.f32 %v4158, %v4159
            %v4161 = vrot.slane %v4160, 1
            %v4162 = vmax.f32 %v4160, %v4161
            %v4163 = vsel %vm4134, %v3822, -inf
            %v4164 = vrot.slane %v4163, 4
            %v4165 = vmax.f32 %v4163, %v4164
            %v4166 = vrot.slane %v4165, 2
            %v4167 = vmax.f32 %v4165, %v4166
            %v4168 = vrot.slane %v4167, 1
            %v4169 = vmax.f32 %v4167, %v4168
            %v4170 = vsel %vm4134, %v3830, -inf
            %v4171 = vrot.slane %v4170, 4
            %v4172 = vmax.f32 %v4170, %v4171
            %v4173 = vrot.slane %v4172, 2
            %v4174 = vmax.f32 %v4172, %v4173
            %v4175 = vrot.slane %v4174, 1
            %v4176 = vmax.f32 %v4174, %v4175
            %v4177 = vsel %vm4134, %v3829, -inf
            %v4178 = vrot.slane %v4177, 4
            %v4179 = vmax.f32 %v4177, %v4178
            %v4180 = vrot.slane %v4179, 2
            %v4181 = vmax.f32 %v4179, %v4180
            %v4182 = vrot.slane %v4181, 1
            %v4183 = vmax.f32 %v4181, %v4182
            %v4184 = vsel %vm4134, %v3831, -inf
            %v4185 = vrot.slane %v4184, 4
            %v4186 = vmax.f32 %v4184, %v4185
            %v4187 = vrot.slane %v4186, 2
            %v4188 = vmax.f32 %v4186, %v4187
            %v4189 = vrot.slane %v4188, 1
            %v4190 = vmax.f32 %v4188, %v4189
            %v4191 = vsel %vm4134, %v3839, -inf
            %v4192 = vrot.slane %v4191, 4
            %v4193 = vmax.f32 %v4191, %v4192
            %v4194 = vrot.slane %v4193, 2
            %v4195 = vmax.f32 %v4193, %v4194
            %v4196 = vrot.slane %v4195, 1
            %v4197 = vmax.f32 %v4195, %v4196
            %v4198 = vsel %vm4134, %v3847, -inf
            %v4199 = vrot.slane %v4198, 4
            %v4200 = vmax.f32 %v4198, %v4199
            %v4201 = vrot.slane %v4200, 2
            %v4202 = vmax.f32 %v4200, %v4201
            %v4203 = vrot.slane %v4202, 1
            %v4204 = vmax.f32 %v4202, %v4203
            %v4205 = vsel %vm4134, %v3846, -inf
            %v4206 = vrot.slane %v4205, 4
            %v4207 = vmax.f32 %v4205, %v4206
            %v4208 = vrot.slane %v4207, 2
            %v4209 = vmax.f32 %v4207, %v4208
            %v4210 = vrot.slane %v4209, 1
            %v4211 = vmax.f32 %v4209, %v4210
            %v4212 = vsel %vm4134, %v3848, -inf
            %v4213 = vrot.slane %v4212, 4
            %v4214 = vmax.f32 %v4212, %v4213
            %v4215 = vrot.slane %v4214, 2
            %v4216 = vmax.f32 %v4214, %v4215
            %v4217 = vrot.slane %v4216, 1
            %v4218 = vmax.f32 %v4216, %v4217
            %v4219 = vsel %vm4134, %v3856, -inf
            %v4220 = vrot.slane %v4219, 4
            %v4221 = vmax.f32 %v4219, %v4220
            %v4222 = vrot.slane %v4221, 2
            %v4223 = vmax.f32 %v4221, %v4222
            %v4224 = vrot.slane %v4223, 1
            %v4225 = vmax.f32 %v4223, %v4224
            %v4226 = vsel %vm4134, %v3864, -inf
            %v4227 = vrot.slane %v4226, 4
            %v4228 = vmax.f32 %v4226, %v4227
            %v4229 = vrot.slane %v4228, 2
            %v4230 = vmax.f32 %v4228, %v4229
            %v4231 = vrot.slane %v4230, 1
            %v4232 = vmax.f32 %v4230, %v4231
            %v4233 = vsel %vm4134, %v3863, -inf
            %v4234 = vrot.slane %v4233, 4
            %v4235 = vmax.f32 %v4233, %v4234
            %v4236 = vrot.slane %v4235, 2
            %v4237 = vmax.f32 %v4235, %v4236
            %v4238 = vrot.slane %v4237, 1
            %v4239 = vmax.f32 %v4237, %v4238
            %v4240 = vsel %vm4134, %v3865, -inf
            %v4241 = vrot.slane %v4240, 4
            %v4242 = vmax.f32 %v4240, %v4241
            %v4243 = vrot.slane %v4242, 2
            %v4244 = vmax.f32 %v4242, %v4243
            %v4245 = vrot.slane %v4244, 1
            %v4246 = vmax.f32 %v4244, %v4245
            %v4247 = vsel %vm4134, %v3873, -inf
            %v4248 = vrot.slane %v4247, 4
            %v4249 = vmax.f32 %v4247, %v4248
            %v4250 = vrot.slane %v4249, 2
            %v4251 = vmax.f32 %v4249, %v4250
            %v4252 = vrot.slane %v4251, 1
            %v4253 = vmax.f32 %v4251, %v4252
            %v4254 = vsel %vm4134, %v3881, -inf
            %v4255 = vrot.slane %v4254, 4
            %v4256 = vmax.f32 %v4254, %v4255
            %v4257 = vrot.slane %v4256, 2
            %v4258 = vmax.f32 %v4256, %v4257
            %v4259 = vrot.slane %v4258, 1
            %v4260 = vmax.f32 %v4258, %v4259
            %v4261 = vsel %vm4134, %v3880, -inf
            %v4262 = vrot.slane %v4261, 4
            %v4263 = vmax.f32 %v4261, %v4262
            %v4264 = vrot.slane %v4263, 2
            %v4265 = vmax.f32 %v4263, %v4264
            %v4266 = vrot.slane %v4265, 1
            %v4267 = vmax.f32 %v4265, %v4266
            %v4268 = vsel %vm4134, %v3882, -inf
            %v4269 = vrot.slane %v4268, 4
            %v4270 = vmax.f32 %v4268, %v4269
            %v4271 = vrot.slane %v4270, 2
            %v4272 = vmax.f32 %v4270, %v4271
            %v4273 = vrot.slane %v4272, 1
            %v4274 = vmax.f32 %v4272, %v4273
            %v4275 = vsel %vm4134, %v3890, -inf
            %v4276 = vrot.slane %v4275, 4
            %v4277 = vmax.f32 %v4275, %v4276
            %v4278 = vrot.slane %v4277, 2
            %v4279 = vmax.f32 %v4277, %v4278
            %v4280 = vrot.slane %v4279, 1
            %v4281 = vmax.f32 %v4279, %v4280
            %v4282 = vsel %vm4134, %v3898, -inf
            %v4283 = vrot.slane %v4282, 4
            %v4284 = vmax.f32 %v4282, %v4283
            %v4285 = vrot.slane %v4284, 2
            %v4286 = vmax.f32 %v4284, %v4285
            %v4287 = vrot.slane %v4286, 1
            %v4288 = vmax.f32 %v4286, %v4287
            %v4289 = vsel %vm4134, %v3897, -inf
            %v4290 = vrot.slane %v4289, 4
            %v4291 = vmax.f32 %v4289, %v4290
            %v4292 = vrot.slane %v4291, 2
            %v4293 = vmax.f32 %v4291, %v4292
            %v4294 = vrot.slane %v4293, 1
            %v4295 = vmax.f32 %v4293, %v4294
            %v4296 = vsel %vm4134, %v3899, -inf
            %v4297 = vrot.slane %v4296, 4
            %v4298 = vmax.f32 %v4296, %v4297
            %v4299 = vrot.slane %v4298, 2
            %v4300 = vmax.f32 %v4298, %v4299
            %v4301 = vrot.slane %v4300, 1
            %v4302 = vmax.f32 %v4300, %v4301
            %v4303 = vsel %vm4134, %v3907, -inf
            %v4304 = vrot.slane %v4303, 4
            %v4305 = vmax.f32 %v4303, %v4304
            %v4306 = vrot.slane %v4305, 2
            %v4307 = vmax.f32 %v4305, %v4306
            %v4308 = vrot.slane %v4307, 1
            %v4309 = vmax.f32 %v4307, %v4308
            %v4310 = vsel %vm4134, %v3915, -inf
            %v4311 = vrot.slane %v4310, 4
            %v4312 = vmax.f32 %v4310, %v4311
            %v4313 = vrot.slane %v4312, 2
            %v4314 = vmax.f32 %v4312, %v4313
            %v4315 = vrot.slane %v4314, 1
            %v4316 = vmax.f32 %v4314, %v4315
            %v4317 = vsel %vm4134, %v3914, -inf
            %v4318 = vrot.slane %v4317, 4
            %v4319 = vmax.f32 %v4317, %v4318
            %v4320 = vrot.slane %v4319, 2
            %v4321 = vmax.f32 %v4319, %v4320
            %v4322 = vrot.slane %v4321, 1
            %v4323 = vmax.f32 %v4321, %v4322
            %v4324 = vsel %vm4134, %v3916, -inf
            %v4325 = vrot.slane %v4324, 4
            %v4326 = vmax.f32 %v4324, %v4325
            %v4327 = vrot.slane %v4326, 2
            %v4328 = vmax.f32 %v4326, %v4327
            %v4329 = vrot.slane %v4328, 1
            %v4330 = vmax.f32 %v4328, %v4329
            %v4331 = vsel %vm4134, %v3924, -inf
            %v4332 = vrot.slane %v4331, 4
            %v4333 = vmax.f32 %v4331, %v4332
            %v4334 = vrot.slane %v4333, 2
            %v4335 = vmax.f32 %v4333, %v4334
            %v4336 = vrot.slane %v4335, 1
            %v4337 = vmax.f32 %v4335, %v4336
            %v4338 = vsel %vm4134, %v3932, -inf
            %v4339 = vrot.slane %v4338, 4
            %v4340 = vmax.f32 %v4338, %v4339
            %v4341 = vrot.slane %v4340, 2
            %v4342 = vmax.f32 %v4340, %v4341
            %v4343 = vrot.slane %v4342, 1
            %v4344 = vmax.f32 %v4342, %v4343
            %v4345 = vsel %vm4134, %v3931, -inf
            %v4346 = vrot.slane %v4345, 4
            %v4347 = vmax.f32 %v4345, %v4346
            %v4348 = vrot.slane %v4347, 2
            %v4349 = vmax.f32 %v4347, %v4348
            %v4350 = vrot.slane %v4349, 1
            %v4351 = vmax.f32 %v4349, %v4350
            %v4352 = vsel %vm4134, %v3933, -inf
            %v4353 = vrot.slane %v4352, 4
            %v4354 = vmax.f32 %v4352, %v4353
            %v4355 = vrot.slane %v4354, 2
            %v4356 = vmax.f32 %v4354, %v4355
            %v4357 = vrot.slane %v4356, 1
            %v4358 = vmax.f32 %v4356, %v4357
            %v4359 = vsel %vm4134, %v3941, -inf
            %v4360 = vrot.slane %v4359, 4
            %v4361 = vmax.f32 %v4359, %v4360
            %v4362 = vrot.slane %v4361, 2
            %v4363 = vmax.f32 %v4361, %v4362
            %v4364 = vrot.slane %v4363, 1
            %v4365 = vmax.f32 %v4363, %v4364
            %v4366 = vsel %vm4134, %v3949, -inf
            %v4367 = vrot.slane %v4366, 4
            %v4368 = vmax.f32 %v4366, %v4367
            %v4369 = vrot.slane %v4368, 2
            %v4370 = vmax.f32 %v4368, %v4369
            %v4371 = vrot.slane %v4370, 1
            %v4372 = vmax.f32 %v4370, %v4371
            %v4373 = vsel %vm4134, %v3948, -inf
            %v4374 = vrot.slane %v4373, 4
            %v4375 = vmax.f32 %v4373, %v4374
            %v4376 = vrot.slane %v4375, 2
            %v4377 = vmax.f32 %v4375, %v4376
            %v4378 = vrot.slane %v4377, 1
            %v4379 = vmax.f32 %v4377, %v4378
            %v4380 = vsel %vm4134, %v3950, -inf
            %v4381 = vrot.slane %v4380, 4
            %v4382 = vmax.f32 %v4380, %v4381
            %v4383 = vrot.slane %v4382, 2
            %v4384 = vmax.f32 %v4382, %v4383
            %v4385 = vrot.slane %v4384, 1
            %v4386 = vmax.f32 %v4384, %v4385
            %v4387 = vsel %vm4134, %v3958, -inf
            %v4388 = vrot.slane %v4387, 4
            %v4389 = vmax.f32 %v4387, %v4388
            %v4390 = vrot.slane %v4389, 2
            %v4391 = vmax.f32 %v4389, %v4390
            %v4392 = vrot.slane %v4391, 1
            %v4393 = vmax.f32 %v4391, %v4392
            %v4394 = vsel %vm4134, %v3966, -inf
            %v4395 = vrot.slane %v4394, 4
            %v4396 = vmax.f32 %v4394, %v4395
            %v4397 = vrot.slane %v4396, 2
            %v4398 = vmax.f32 %v4396, %v4397
            %v4399 = vrot.slane %v4398, 1
            %v4400 = vmax.f32 %v4398, %v4399
            %v4401 = vsel %vm4134, %v3965, -inf
            %v4402 = vrot.slane %v4401, 4
            %v4403 = vmax.f32 %v4401, %v4402
            %v4404 = vrot.slane %v4403, 2
            %v4405 = vmax.f32 %v4403, %v4404
            %v4406 = vrot.slane %v4405, 1
            %v4407 = vmax.f32 %v4405, %v4406
            %v4408 = vsel %vm4134, %v3967, -inf
            %v4409 = vrot.slane %v4408, 4
            %v4410 = vmax.f32 %v4408, %v4409
            %v4411 = vrot.slane %v4410, 2
            %v4412 = vmax.f32 %v4410, %v4411
            %v4413 = vrot.slane %v4412, 1
            %v4414 = vmax.f32 %v4412, %v4413
            %v4415 = vsel %vm4134, %v3975, -inf
            %v4416 = vrot.slane %v4415, 4
            %v4417 = vmax.f32 %v4415, %v4416
            %v4418 = vrot.slane %v4417, 2
            %v4419 = vmax.f32 %v4417, %v4418
            %v4420 = vrot.slane %v4419, 1
            %v4421 = vmax.f32 %v4419, %v4420
            %v4422 = vsel %vm4134, %v3983, -inf
            %v4423 = vrot.slane %v4422, 4
            %v4424 = vmax.f32 %v4422, %v4423
            %v4425 = vrot.slane %v4424, 2
            %v4426 = vmax.f32 %v4424, %v4425
            %v4427 = vrot.slane %v4426, 1
            %v4428 = vmax.f32 %v4426, %v4427
            %v4429 = vsel %vm4134, %v3982, -inf
            %v4430 = vrot.slane %v4429, 4
            %v4431 = vmax.f32 %v4429, %v4430
            %v4432 = vrot.slane %v4431, 2
            %v4433 = vmax.f32 %v4431, %v4432
            %v4434 = vrot.slane %v4433, 1
            %v4435 = vmax.f32 %v4433, %v4434
            %v4436 = vsel %vm4134, %v3984, -inf
            %v4437 = vrot.slane %v4436, 4
            %v4438 = vmax.f32 %v4436, %v4437
            %v4439 = vrot.slane %v4438, 2
            %v4440 = vmax.f32 %v4438, %v4439
            %v4441 = vrot.slane %v4440, 1
            %v4442 = vmax.f32 %v4440, %v4441
            %v4443 = vsel %vm4134, %v3992, -inf
            %v4444 = vrot.slane %v4443, 4
            %v4445 = vmax.f32 %v4443, %v4444
            %v4446 = vrot.slane %v4445, 2
            %v4447 = vmax.f32 %v4445, %v4446
            %v4448 = vrot.slane %v4447, 1
            %v4449 = vmax.f32 %v4447, %v4448
            %v4450 = vsel %vm4134, %v4000, -inf
            %v4451 = vrot.slane %v4450, 4
            %v4452 = vmax.f32 %v4450, %v4451
            %v4453 = vrot.slane %v4452, 2
            %v4454 = vmax.f32 %v4452, %v4453
            %v4455 = vrot.slane %v4454, 1
            %v4456 = vmax.f32 %v4454, %v4455
            %v4457 = vsel %vm4134, %v3999, -inf
            %v4458 = vrot.slane %v4457, 4
            %v4459 = vmax.f32 %v4457, %v4458
            %v4460 = vrot.slane %v4459, 2
            %v4461 = vmax.f32 %v4459, %v4460
            %v4462 = vrot.slane %v4461, 1
            %v4463 = vmax.f32 %v4461, %v4462
            %v4464 = vsel %vm4134, %v4001, -inf
            %v4465 = vrot.slane %v4464, 4
            %v4466 = vmax.f32 %v4464, %v4465
            %v4467 = vrot.slane %v4466, 2
            %v4468 = vmax.f32 %v4466, %v4467
            %v4469 = vrot.slane %v4468, 1
            %v4470 = vmax.f32 %v4468, %v4469
            %v4471 = vsel %vm4134, %v4009, -inf
            %v4472 = vrot.slane %v4471, 4
            %v4473 = vmax.f32 %v4471, %v4472
            %v4474 = vrot.slane %v4473, 2
            %v4475 = vmax.f32 %v4473, %v4474
            %v4476 = vrot.slane %v4475, 1
            %v4477 = vmax.f32 %v4475, %v4476
            %v4478 = vsel %vm4134, %v4017, -inf
            %v4479 = vrot.slane %v4478, 4
            %v4480 = vmax.f32 %v4478, %v4479
            %v4481 = vrot.slane %v4480, 2
            %v4482 = vmax.f32 %v4480, %v4481
            %v4483 = vrot.slane %v4482, 1
            %v4484 = vmax.f32 %v4482, %v4483
            %v4485 = vsel %vm4134, %v4016, -inf
            %v4486 = vrot.slane %v4485, 4
            %v4487 = vmax.f32 %v4485, %v4486
            %v4488 = vrot.slane %v4487, 2
            %v4489 = vmax.f32 %v4487, %v4488
            %v4490 = vrot.slane %v4489, 1
            %v4491 = vmax.f32 %v4489, %v4490
            %v4492 = vsel %vm4134, %v4018, -inf
            %v4493 = vrot.slane %v4492, 4
            %v4494 = vmax.f32 %v4492, %v4493
            %v4495 = vrot.slane %v4494, 2
            %v4496 = vmax.f32 %v4494, %v4495
            %v4497 = vrot.slane %v4496, 1
            %v4498 = vmax.f32 %v4496, %v4497
            %v4499 = vsel %vm4134, %v4026, -inf
            %v4500 = vrot.slane %v4499, 4
            %v4501 = vmax.f32 %v4499, %v4500
            %v4502 = vrot.slane %v4501, 2
            %v4503 = vmax.f32 %v4501, %v4502
            %v4504 = vrot.slane %v4503, 1
            %v4505 = vmax.f32 %v4503, %v4504
            %v4506 = vsel %vm4134, %v4034, -inf
            %v4507 = vrot.slane %v4506, 4
            %v4508 = vmax.f32 %v4506, %v4507
            %v4509 = vrot.slane %v4508, 2
            %v4510 = vmax.f32 %v4508, %v4509
            %v4511 = vrot.slane %v4510, 1
            %v4512 = vmax.f32 %v4510, %v4511
            %v4513 = vsel %vm4134, %v4033, -inf
            %v4514 = vrot.slane %v4513, 4
            %v4515 = vmax.f32 %v4513, %v4514
            %v4516 = vrot.slane %v4515, 2
            %v4517 = vmax.f32 %v4515, %v4516
            %v4518 = vrot.slane %v4517, 1
            %v4519 = vmax.f32 %v4517, %v4518
            %v4520 = vsel %vm4134, %v4035, -inf
            %v4521 = vrot.slane %v4520, 4
            %v4522 = vmax.f32 %v4520, %v4521
            %v4523 = vrot.slane %v4522, 2
            %v4524 = vmax.f32 %v4522, %v4523
            %v4525 = vrot.slane %v4524, 1
            %v4526 = vmax.f32 %v4524, %v4525
            %v4527 = vsel %vm4134, %v4043, -inf
            %v4528 = vrot.slane %v4527, 4
            %v4529 = vmax.f32 %v4527, %v4528
            %v4530 = vrot.slane %v4529, 2
            %v4531 = vmax.f32 %v4529, %v4530
            %v4532 = vrot.slane %v4531, 1
            %v4533 = vmax.f32 %v4531, %v4532
            %v4534 = vsel %vm4134, %v4051, -inf
            %v4535 = vrot.slane %v4534, 4
            %v4536 = vmax.f32 %v4534, %v4535
            %v4537 = vrot.slane %v4536, 2
            %v4538 = vmax.f32 %v4536, %v4537
            %v4539 = vrot.slane %v4538, 1
            %v4540 = vmax.f32 %v4538, %v4539
            %v4541 = vsel %vm4134, %v4050, -inf
            %v4542 = vrot.slane %v4541, 4
            %v4543 = vmax.f32 %v4541, %v4542
            %v4544 = vrot.slane %v4543, 2
            %v4545 = vmax.f32 %v4543, %v4544
            %v4546 = vrot.slane %v4545, 1
            %v4547 = vmax.f32 %v4545, %v4546
            %v4548 = vsel %vm4134, %v4052, -inf
            %v4549 = vrot.slane %v4548, 4
            %v4550 = vmax.f32 %v4548, %v4549
            %v4551 = vrot.slane %v4550, 2
            %v4552 = vmax.f32 %v4550, %v4551
            %v4553 = vrot.slane %v4552, 1
            %v4554 = vmax.f32 %v4552, %v4553
            %v4555 = vsel %vm4134, %v4060, -inf
            %v4556 = vrot.slane %v4555, 4
            %v4557 = vmax.f32 %v4555, %v4556
            %v4558 = vrot.slane %v4557, 2
            %v4559 = vmax.f32 %v4557, %v4558
            %v4560 = vrot.slane %v4559, 1
            %v4561 = vmax.f32 %v4559, %v4560
            %v4562 = vsel %vm4134, %v4068, -inf
            %v4563 = vrot.slane %v4562, 4
            %v4564 = vmax.f32 %v4562, %v4563
            %v4565 = vrot.slane %v4564, 2
            %v4566 = vmax.f32 %v4564, %v4565
            %v4567 = vrot.slane %v4566, 1
            %v4568 = vmax.f32 %v4566, %v4567
            %v4569 = vsel %vm4134, %v4067, -inf
            %v4570 = vrot.slane %v4569, 4
            %v4571 = vmax.f32 %v4569, %v4570
            %v4572 = vrot.slane %v4571, 2
            %v4573 = vmax.f32 %v4571, %v4572
            %v4574 = vrot.slane %v4573, 1
            %v4575 = vmax.f32 %v4573, %v4574
            %v4576 = vsel %vm4134, %v4069, -inf
            %v4577 = vrot.slane %v4576, 4
            %v4578 = vmax.f32 %v4576, %v4577
            %v4579 = vrot.slane %v4578, 2
            %v4580 = vmax.f32 %v4578, %v4579
            %v4581 = vrot.slane %v4580, 1
            %v4582 = vmax.f32 %v4580, %v4581
            %s4583 = smul.u32 %s750, 4
            %vm4648 = vcmask 1041409
            %v4649 = vsel %vm4648, %v4148, %v4141
            %vm4650 = vcmask 1042434
            %v4651 = vsel %vm4650, %v4155, %v4649
            %vm4652 = vcmask 1043459
            %v4653 = vsel %vm4652, %v4162, %v4651
            %vm4654 = vcmask 1044484
            %v4655 = vsel %vm4654, %v4169, %v4653
            %vm4656 = vcmask 1045509
            %v4657 = vsel %vm4656, %v4176, %v4655
            %vm4658 = vcmask 1046534
            %v4659 = vsel %vm4658, %v4183, %v4657
            %vm4660 = vcmask 1047559
            %v4661 = vsel %vm4660, %v4190, %v4659
            %v4662 = vsel %vm4648, %v4204, %v4197
            %v4663 = vsel %vm4650, %v4211, %v4662
            %v4664 = vsel %vm4652, %v4218, %v4663
            %v4665 = vsel %vm4654, %v4225, %v4664
            %v4666 = vsel %vm4656, %v4232, %v4665
            %v4667 = vsel %vm4658, %v4239, %v4666
            %v4668 = vsel %vm4660, %v4246, %v4667
            %v4669 = vsel %vm4648, %v4260, %v4253
            %v4670 = vsel %vm4650, %v4267, %v4669
            %v4671 = vsel %vm4652, %v4274, %v4670
            %v4672 = vsel %vm4654, %v4281, %v4671
            %v4673 = vsel %vm4656, %v4288, %v4672
            %v4674 = vsel %vm4658, %v4295, %v4673
            %v4675 = vsel %vm4660, %v4302, %v4674
            %v4676 = vsel %vm4648, %v4316, %v4309
            %v4677 = vsel %vm4650, %v4323, %v4676
            %v4678 = vsel %vm4652, %v4330, %v4677
            %v4679 = vsel %vm4654, %v4337, %v4678
            %v4680 = vsel %vm4656, %v4344, %v4679
            %v4681 = vsel %vm4658, %v4351, %v4680
            %v4682 = vsel %vm4660, %v4358, %v4681
            %v4683 = vsel %vm4648, %v4372, %v4365
            %v4684 = vsel %vm4650, %v4379, %v4683
            %v4685 = vsel %vm4652, %v4386, %v4684
            %v4686 = vsel %vm4654, %v4393, %v4685
            %v4687 = vsel %vm4656, %v4400, %v4686
            %v4688 = vsel %vm4658, %v4407, %v4687
            %v4689 = vsel %vm4660, %v4414, %v4688
            %v4690 = vsel %vm4648, %v4428, %v4421
            %v4691 = vsel %vm4650, %v4435, %v4690
            %v4692 = vsel %vm4652, %v4442, %v4691
            %v4693 = vsel %vm4654, %v4449, %v4692
            %v4694 = vsel %vm4656, %v4456, %v4693
            %v4695 = vsel %vm4658, %v4463, %v4694
            %v4696 = vsel %vm4660, %v4470, %v4695
            %v4697 = vsel %vm4648, %v4484, %v4477
            %v4698 = vsel %vm4650, %v4491, %v4697
            %v4699 = vsel %vm4652, %v4498, %v4698
            %v4700 = vsel %vm4654, %v4505, %v4699
            %v4701 = vsel %vm4656, %v4512, %v4700
            %v4702 = vsel %vm4658, %v4519, %v4701
            %v4703 = vsel %vm4660, %v4526, %v4702
            %v4704 = vsel %vm4648, %v4540, %v4533
            %v4705 = vsel %vm4650, %v4547, %v4704
            %v4706 = vsel %vm4652, %v4554, %v4705
            %v4707 = vsel %vm4654, %v4561, %v4706
            %v4708 = vsel %vm4656, %v4568, %v4707
            %v4709 = vsel %vm4658, %v4575, %v4708
            %v4710 = vsel %vm4660, %v4582, %v4709
            %s4719 = smul.u32 %s4583, 16
            %s4720 = scalar_lea.vmem %s175, %s4719 [#allocation3]
            %4721 = vst.msk [vmem:[%s4720] sm:$0xff] %vm902, %v4661
            %4722 = vst.msk [vmem:[%s4720 + $0x8] sm:$0xff] %vm902, %v4668
            %4723 = vst.msk [vmem:[%s4720 + $0x10] sm:$0xff] %vm902, %v4675
            %4724 = vst.msk [vmem:[%s4720 + $0x18] sm:$0xff] %vm902, %v4682
            %4725 = vst.msk [vmem:[%s4720 + $0x20] sm:$0xff] %vm902, %v4689
            %4726 = vst.msk [vmem:[%s4720 + $0x28] sm:$0xff] %vm902, %v4696
            %4727 = vst.msk [vmem:[%s4720 + $0x30] sm:$0xff] %vm902, %v4703
            %4728 = vst.msk [vmem:[%s4720 + $0x38] sm:$0xff] %vm902, %v4710
          $region51: #{tpu_custom_call.1} parent=40 // pred_fallthru
            _
        $region41: #{tpu_custom_call.1} parent=31 // loop_footer
          %s754 = sadd.s32 1, %s750
        $region42: #{tpu_custom_call.1} parent=31 // loop_footer_branch
          %749 = sbr.rel target = $region38
        $region43: #{tpu_custom_call.1} parent=31 // loop_exit
          _
        %s4729 = sand.u32 %s105, 1
        %s4730 = scalar_lea.sflag [#allocation4], %s4729
        %s4731 = sand.u32 %s105, 1
        %s4732 = smul.addr %s4731, 256
        %s4733 = scalar_lea.vmem [#allocation3], %s4732
        // Predicated region
        $region52: #{tpu_custom_call.1} parent=31 // pred_check
          %p4734 = pneg %p115
        $region53: #{tpu_custom_call.1} parent=31 // pred_check_branch
          %4736 = sbr.rel (%p4734) target = $region55
        $region54: #{tpu_custom_call.1} parent=31 // pred_region
          %s4738 = ssub.s32 4096, 4096
          %4739 = vsyncadd %s4730, %s4738
          %s4740 = smul.addr %s21, 32
          %s4741 = smul.addr %s4740, 128
          %s4742 = scalar_lea.hbm %s3, %s4741
          %s4743 = sshll.u32 %s4733, 4
          %s4744 = int_to_ptr.vmem [resolvable:$true] %s4743
          %4749 = dma.vmem_to_hbm [thread:$0]  %s4744, 4096, %s4742, %s4730, 128, 128, 8
        $region55: #{tpu_custom_call.1} parent=31 // pred_fallthru
          _
      $region32: #{tpu_custom_call.1} parent=5 // pred_fallthru
        _
      %p4750 = scmp.le.s32.totalorder 2, %s12
      // Predicated region
      $region56: #{tpu_custom_call.1} parent=5 // pred_check
        %p4751 = pneg %p4750
      $region57: #{tpu_custom_call.1} parent=5 // pred_check_branch
        %4753 = sbr.rel (%p4751) target = $region59
      $region58: #{tpu_custom_call.1} parent=5 // pred_region
        %s4754 = ssub.s32 %s12, 2
        // Predicated region
        $region60: #{tpu_custom_call.1} parent=58 // pred_check
          %p4755 = pneg %p121
        $region61: #{tpu_custom_call.1} parent=58 // pred_check_branch
          %4757 = sbr.rel (%p4755) target = $region63
        $region62: #{tpu_custom_call.1} parent=58 // pred_region
          %s4758 = sand.u32 %s106, 1
          %s4759 = scalar_lea.sflag [#allocation4], %s4758
          %s4760 = sand.u32 %s106, 1
          %s4761 = smul.addr %s4760, 256
          %s4762 = scalar_lea.vmem [#allocation3], %s4761
          %4763 = dma.done %s4759, 4096
        $region63: #{tpu_custom_call.1} parent=58 // pred_fallthru
          _
      $region59: #{tpu_custom_call.1} parent=5 // pred_fallthru
        _
    $region6: #{tpu_custom_call.1} parent=1 // loop_footer
      %s16 = sadd.s32 1, %s12
    $region7: #{tpu_custom_call.1} parent=1 // loop_footer_branch
      %11 = sbr.rel target = $region3
    $region8: #{tpu_custom_call.1} parent=1 // loop_exit
      _
    %4764 = vsyncpa [#allocation4], 1
    %s4765 = scalar_lea.sflag [#allocation4], 1
    %4766 = vsyncpa %s4765, 1

</llo_original>
